<compile_context>
chip_gen: v7x
topology: tpu7x:2x2x1
jax: 0.10.0
libtpu: 0.0.40
codegen_flags: <defaults>
</compile_context>

<pallas_src>
import functools

import numpy as np

import jax
import jax.numpy as jnp
from jax import lax
from jax.experimental import pallas as pl
from jax.experimental.pallas import tpu as pltpu


def s_clstm_kernel(xcol_ref, wconv_ref, bconv_ref, thrlif_ref, thr1_ref, thr2_ref,
                   wih1_ref, whh1_ref, b1_ref, wih2_ref, whh2_ref, b2_ref,
                   wfc_ref, bfc_ref, out_ref, spk_scr, xg1_scr,
                   *, T, B, H, Cout, beta_lif):
    f32 = jnp.float32

    def spike(m, thr):
        return (m > thr).astype(f32)

    # ---- Conv1d + folded BatchNorm: one im2col MXU matmul (contraction padded to 128)
    bn = (jnp.dot(xcol_ref[...], wconv_ref[...], preferred_element_type=f32)
          + bconv_ref[...])                                      # (T*B, Cout)

    # ---- snn.Leaky recurrence: pure VALU, no matmul on this chain.  Spikes for
    #      all timesteps are staged to VMEM scratch so SLSTM1's input projection
    #      can be hoisted into a single matmul below.
    thr_lif = jnp.broadcast_to(thrlif_ref[...], (B, Cout))
    mem_lif = jnp.zeros((B, Cout), f32)
    for t in range(T):
        inp = bn[t * B:(t + 1) * B, :]                           # 8-sublane static slice
        r0 = spike(mem_lif, thr_lif)                             # reset from previous mem
        mem_lif = beta_lif * mem_lif + inp - r0 * thr_lif
        spk_scr[t * B:(t + 1) * B, :] = spike(mem_lif, thr_lif)  # fire on new mem

    # ---- hoisted SLSTM1 input projection: ONE matmul for all timesteps (M = T*B)
    xg1_scr[...] = jnp.dot(spk_scr[...], wih1_ref[...], preferred_element_type=f32)

    # ---- loop-invariant small broadcasts
    thr1 = jnp.broadcast_to(thr1_ref[...], (B, H))
    thr2 = jnp.broadcast_to(thr2_ref[...], (B, H))
    b1 = jnp.broadcast_to(b1_ref[...], (B, 4 * H))
    b2 = jnp.broadcast_to(b2_ref[...], (B, 4 * H))

    def lstm_from_gates(gates, c):
        # torch.nn.LSTMCell gate order: i, f, g, o — two full-vreg EUP ops
        sg = jax.nn.sigmoid(gates)
        tg = jnp.tanh(gates)
        i = sg[:, 0 * H:1 * H]
        f = sg[:, 1 * H:2 * H]
        g = tg[:, 2 * H:3 * H]
        o = sg[:, 3 * H:4 * H]
        c_new = f * c + i * g
        h_new = o * jnp.tanh(c_new)
        return h_new, c_new

    syn1 = jnp.zeros((B, H), f32)
    mem1 = jnp.zeros((B, H), f32)
    syn2 = jnp.zeros((B, H), f32)
    mem2 = jnp.zeros((B, H), f32)
    acc = jnp.zeros((B, H), f32)

    # ---- fully unrolled recurrent loop (T small & static); weights are read from
    #      VMEM at the point of use so nothing big stays live across the unroll.
    # TODO(synk): Whh1/Whh2 could be held resident in MXU weight registers across
    #             the unroll via pltpu.matmul_push_rhs/_acc_lhs/_pop (per-chip tuning).
    for t in range(T):
        xg1 = xg1_scr[t * B:(t + 1) * B, :]                      # precomputed x-gates

        # snn.SLSTM 1 (hidden = mem1, cell = syn1); dropout2 = identity in eval
        r1 = spike(mem1, thr1)
        gates1 = xg1 + jnp.dot(mem1, whh1_ref[...], preferred_element_type=f32) + b1
        h1, c1 = lstm_from_gates(gates1, syn1)
        syn1 = c1
        mem1 = h1 - r1 * thr1              # reset-by-subtraction on the hidden state
        spk1 = spike(mem1, thr1)

        # snn.SLSTM 2 — its input depends on spk1, so two small dots (no lane concat)
        r2 = spike(mem2, thr2)
        gates2 = (jnp.dot(spk1, wih2_ref[...], preferred_element_type=f32)
                  + jnp.dot(mem2, whh2_ref[...], preferred_element_type=f32) + b2)
        h2, c2 = lstm_from_gates(gates2, syn2)
        syn2 = c2
        mem2 = h2 - r2 * thr2

        acc = acc + mem2                                         # accumulate for time-mean

    # features = mean_t(mem2) ; fc_gesture
    features = acc * (1.0 / T)
    out_ref[...] = (jnp.dot(features, wfc_ref[...], preferred_element_type=f32)
                    + bfc_ref[...])


def _fold_conv_bn(params, eps=1e-5):
    """Fold eval-mode BatchNorm1d into the Conv1d weight/bias (exact algebra)."""
    K, F, Cout = params["conv_w"].shape
    gamma, beta, mean, var = params["bn"]
    scale = gamma * lax.rsqrt(var + eps)                         # (Cout,)
    w = (params["conv_w"] * scale[None, None, :]).reshape(K * F, Cout)
    b = (beta - mean * scale).reshape(1, Cout)
    return w, b


def _im2col(x, K, b_pad):
    """Unfold (T, B, F) -> (T*b_pad, K*F) for the 'same'-padded Conv1d."""
    T, B, F = x.shape
    pad = K // 2
    xpad = jnp.pad(x.astype(jnp.float32), ((pad, pad), (0, b_pad - B), (0, 0)))
    cols = jnp.stack([xpad[k:k + T] for k in range(K)], axis=2)  # (T, b_pad, K, F)
    return cols.reshape(T * b_pad, K * F)


def s_clstm_forward(x, params, beta_lif=0.9):
    """x: (T, B, F) float32 — same layout the PyTorch module receives."""
    T, B, F = x.shape
    K, _, Cout = params["conv_w"].shape
    H = params["whh1_t"].shape[0]
    C = params["wfc_t"].shape[1]

    # pad batch to the 8-sublane width (padded rows are sliced off at the end)
    B_pad = max(8, -(-B // 8) * 8)

    # ---- im2col unfold + eval-mode BN folding (layout plumbing, once, wrapper-side)
    x_unfold = _im2col(x, K, B_pad)                              # (T*Bp, K*F)
    w_conv, b_conv = _fold_conv_bn(params)                       # (K*F, Cout), (1, Cout)

    # zero-pad the contraction dim K*F (=70) up to a full 128-lane tile (free, exact)
    KF = K * F
    KF_pad = -(-KF // 128) * 128
    x_unfold = jnp.pad(x_unfold, ((0, 0), (0, KF_pad - KF)))
    w_conv = jnp.pad(w_conv, ((0, KF_pad - KF), (0, 0)))

    kernel = functools.partial(s_clstm_kernel, T=T, B=B_pad, H=H, Cout=Cout,
                               beta_lif=beta_lif)
    inputs = (x_unfold, w_conv, b_conv,
              params["thr_lif"], params["thr1"], params["thr2"],
              params["wih1_t"], params["whh1_t"], params["b1"],
              params["wih2_t"], params["whh2_t"], params["b2"],
              params["wfc_t"], params["bfc"])

    vmem = pl.BlockSpec(memory_space=pltpu.MemorySpace.VMEM)
    out = pl.pallas_call(
        kernel,
        out_shape=jax.ShapeDtypeStruct((B_pad, C), jnp.float32),
        in_specs=[vmem] * len(inputs),
        out_specs=vmem,
        scratch_shapes=[
            pltpu.VMEM((T * B_pad, Cout), jnp.float32),          # staged LIF spikes
            pltpu.VMEM((T * B_pad, 4 * H), jnp.float32),         # hoisted SLSTM1 x-gates
        ],
    )(*inputs)
    # TODO(synk): for deployment throughput, batch many sequences per call (grow the
    #             M dim toward 128/256 rows) and add a "parallel" batch grid axis so
    #             v7x's second TensorCore is used; at B=2 the call is latency-bound.
    return out[:B]


def _conv_bn_reference(x, p):
    """Faithful (unfused) Conv1d -> BatchNorm1d in the original parameter layout."""
    hp = lax.Precision.HIGHEST
    T, B, F = x.shape
    K, _, Cout = p["conv_w"].shape
    pad = K // 2
    xpad = jnp.pad(x, ((pad, pad), (0, 0), (0, 0)))
    conv = jnp.zeros((T, B, Cout), jnp.float32)
    for k in range(K):
        conv = conv + jnp.einsum("tbf,fo->tbo", xpad[k:k + T], p["conv_w"][k],
                                 precision=hp)
    gamma, beta, rmean, rvar = p["bn"]
    return (conv - rmean) * gamma / jnp.sqrt(rvar + 1e-5) + beta


def s_clstm_reference(x, p, beta_lif=0.9):
    """Pure-JAX reference with the original (unfused) parameter layout."""
    hp = lax.Precision.HIGHEST
    T, B, F = x.shape
    H = p["whh1_t"].shape[0]
    Cout = p["conv_w"].shape[2]
    bnout = _conv_bn_reference(x, p)

    def cell(inp, h, c, wih, whh, b):
        g = jnp.dot(inp, wih, precision=hp) + jnp.dot(h, whh, precision=hp) + b
        i = jax.nn.sigmoid(g[:, :H])
        f = jax.nn.sigmoid(g[:, H:2 * H])
        gg = jnp.tanh(g[:, 2 * H:3 * H])
        o = jax.nn.sigmoid(g[:, 3 * H:])
        c_new = f * c + i * gg
        return o * jnp.tanh(c_new), c_new

    spike = lambda m, thr: (m > thr).astype(jnp.float32)
    mem_lif = jnp.zeros((B, Cout), jnp.float32)
    syn1 = jnp.zeros((B, H), jnp.float32)
    mem1 = jnp.zeros((B, H), jnp.float32)
    syn2 = jnp.zeros((B, H), jnp.float32)
    mem2 = jnp.zeros((B, H), jnp.float32)
    acc = jnp.zeros((B, H), jnp.float32)
    for t in range(T):
        inp = bnout[t]
        r0 = spike(mem_lif, p["thr_lif"])
        mem_lif = beta_lif * mem_lif + inp - r0 * p["thr_lif"]
        spk = spike(mem_lif, p["thr_lif"])

        r1 = spike(mem1, p["thr1"])
        h1, syn1 = cell(spk, mem1, syn1, p["wih1_t"], p["whh1_t"], p["b1"])
        mem1 = h1 - r1 * p["thr1"]
        spk1 = spike(mem1, p["thr1"])

        r2 = spike(mem2, p["thr2"])
        h2, syn2 = cell(spk1, mem2, syn2, p["wih2_t"], p["whh2_t"], p["b2"])
        mem2 = h2 - r2 * p["thr2"]
        acc = acc + mem2
    feats = acc / T
    return jnp.dot(feats, p["wfc_t"], precision=hp) + p["bfc"]


if __name__ == "__main__":
    # small shapes consistent with the module: seq T=8, batch B=2, features F=14,
    # conv channels 64 (fixed in the module), hidden H=32, classes C=8.
    T, B = 8, 2
    F, Cout, K = 14, 64, 5
    H, C = 32, 8

    key = jax.random.PRNGKey(0)
    ks = jax.random.split(key, 16)
    sc = 1.0 / np.sqrt(H)
    u = lambda k, shape, s: s * jax.random.uniform(k, shape, jnp.float32, -1.0, 1.0)

    params = {
        # Conv1d weight, stored (K, F, Cout)  (torch layout: (Cout, F, K))
        "conv_w": 0.2 * jax.random.normal(ks[0], (K, F, Cout), jnp.float32),
        # BatchNorm1d: rows = gamma, beta, running_mean, running_var
        "bn": jnp.stack([
            1.0 + 0.1 * jax.random.normal(ks[1], (Cout,), jnp.float32),
            0.1 * jax.random.normal(ks[2], (Cout,), jnp.float32),
            0.1 * jax.random.normal(ks[3], (Cout,), jnp.float32),
            1.0 + 0.1 * jnp.abs(jax.random.normal(ks[4], (Cout,), jnp.float32)),
        ]),
        # learnable thresholds (learn_threshold=True) — deterministic init
        "thr_lif": jnp.full((1, Cout), 0.5, jnp.float32),
        "thr1": jnp.full((1, H), 0.25, jnp.float32),
        "thr2": jnp.full((1, H), 0.25, jnp.float32),
        # SLSTM1 LSTMCell (input 64 -> hidden H), weights pre-transposed, biases fused
        "wih1_t": u(ks[5], (Cout, 4 * H), sc),
        "whh1_t": u(ks[6], (H, 4 * H), sc),
        "b1": u(ks[7], (1, 4 * H), sc),
        # SLSTM2 LSTMCell (H -> H)
        "wih2_t": u(ks[8], (H, 4 * H), sc),
        "whh2_t": u(ks[9], (H, 4 * H), sc),
        "b2": u(ks[10], (1, 4 * H), sc),
        # fc_gesture
        "wfc_t": u(ks[11], (H, C), sc),
        "bfc": u(ks[12], (1, C), sc),
    }

    x = jax.random.normal(ks[13], (T, B, F), jnp.float32)

    out = jax.block_until_ready(s_clstm_forward(x, params))
    assert out.shape == (B, C)
    assert bool(jnp.all(jnp.isfinite(out)))

    # 1) threshold-free check that the wrapper's BN fold + im2col matches the
    #    unfused conv -> BN of the original module (continuous quantity, tight tol).
    w_fold, b_fold = _fold_conv_bn(params)
    bn_fold = (jnp.dot(_im2col(x, K, B), w_fold, precision=lax.Precision.HIGHEST)
               + b_fold).reshape(T, B, Cout)
    np.testing.assert_allclose(np.asarray(bn_fold),
                               np.asarray(_conv_bn_reference(x, params)),
                               rtol=1e-4, atol=1e-4)

    # 2) end-to-end check against the pure-JAX reference in the original layout.
    #    (Spike thresholds are strict comparisons; a borderline membrane value could
    #     in principle flip under MXU-vs-XLA rounding, hence the loose tolerance.)
    ref = jax.block_until_ready(s_clstm_reference(x, params))
    np.testing.assert_allclose(np.asarray(out), np.asarray(ref), rtol=5e-2, atol=5e-2)

    print("KERNEL_OK")
</pallas_src>

<mosaic_0001>
module attributes {stable_mosaic.version = 11 : i64} {
  func.func @s_clstm_kernel(%arg0: memref<64x128xf32, #tpu.memory_space<vmem>>, %arg1: memref<128x64xf32, #tpu.memory_space<vmem>>, %arg2: memref<1x64xf32, #tpu.memory_space<vmem>>, %arg3: memref<1x64xf32, #tpu.memory_space<vmem>>, %arg4: memref<1x32xf32, #tpu.memory_space<vmem>>, %arg5: memref<1x32xf32, #tpu.memory_space<vmem>>, %arg6: memref<64x128xf32, #tpu.memory_space<vmem>>, %arg7: memref<32x128xf32, #tpu.memory_space<vmem>>, %arg8: memref<1x128xf32, #tpu.memory_space<vmem>>, %arg9: memref<32x128xf32, #tpu.memory_space<vmem>>, %arg10: memref<32x128xf32, #tpu.memory_space<vmem>>, %arg11: memref<1x128xf32, #tpu.memory_space<vmem>>, %arg12: memref<32x8xf32, #tpu.memory_space<vmem>>, %arg13: memref<1x8xf32, #tpu.memory_space<vmem>>, %arg14: memref<8x8xf32, #tpu.memory_space<vmem>>, %arg15: memref<64x64xf32, #tpu.memory_space<vmem>>, %arg16: memref<64x128xf32, #tpu.memory_space<vmem>>) attributes {dimension_semantics = [], scalar_prefetch = 0 : i64, scratch_operands = 2 : i64, tpu.core_type = #tpu.core_type<tc>} {
    %c0 = arith.constant 0 : index
    %c0_0 = arith.constant 0 : index
    %0 = vector.load %arg0[%c0, %c0_0] : memref<64x128xf32, #tpu.memory_space<vmem>>, vector<64x128xf32>
    %c0_1 = arith.constant 0 : index
    %c0_2 = arith.constant 0 : index
    %1 = vector.load %arg1[%c0_1, %c0_2] : memref<128x64xf32, #tpu.memory_space<vmem>>, vector<128x64xf32>
    %cst = arith.constant dense<0.000000e+00> : vector<64x64xf32>
    %2 = tpu.matmul %0, %1, %cst {dimension_numbers = #tpu.dot_dimension_numbers<[1], [0], [0], [1], [0, 0, 1, 1], [], []>} : vector<64x128xf32>, vector<128x64xf32>, vector<64x64xf32> -> vector<64x64xf32>
    %c0_3 = arith.constant 0 : index
    %c0_4 = arith.constant 0 : index
    %3 = vector.load %arg2[%c0_3, %c0_4] : memref<1x64xf32, #tpu.memory_space<vmem>>, vector<1x64xf32>
    %4 = vector.broadcast %3 : vector<1x64xf32> to vector<64x64xf32>
    %5 = arith.addf %2, %4 : vector<64x64xf32>
    %c0_5 = arith.constant 0 : index
    %c0_6 = arith.constant 0 : index
    %6 = vector.load %arg3[%c0_5, %c0_6] : memref<1x64xf32, #tpu.memory_space<vmem>>, vector<1x64xf32>
    %7 = vector.shape_cast %6 : vector<1x64xf32> to vector<1x64xf32>
    %8 = vector.broadcast %7 : vector<1x64xf32> to vector<8x64xf32>
    %cst_7 = arith.constant 0.000000e+00 : f32
    %9 = vector.broadcast %cst_7 : f32 to vector<8x64xf32>
    %10 = vector.extract_strided_slice %5 {offsets = [0, 0], sizes = [8, 64], strides = [1, 1]} : vector<64x64xf32> to vector<8x64xf32>
    %11 = arith.cmpf ogt, %9, %8 : vector<8x64xf32>
    %12 = arith.extui %11 : vector<8x64xi1> to vector<8x64xi32>
    %13 = arith.sitofp %12 : vector<8x64xi32> to vector<8x64xf32>
    %cst_8 = arith.constant 0.899999976 : f32
    %14 = vector.broadcast %cst_8 : f32 to vector<8x64xf32>
    %15 = arith.mulf %14, %9 : vector<8x64xf32>
    %16 = arith.addf %15, %10 : vector<8x64xf32>
    %17 = arith.mulf %13, %8 : vector<8x64xf32>
    %18 = arith.subf %16, %17 : vector<8x64xf32>
    %19 = arith.cmpf ogt, %18, %8 : vector<8x64xf32>
    %20 = arith.extui %19 : vector<8x64xi1> to vector<8x64xi32>
    %21 = arith.sitofp %20 : vector<8x64xi32> to vector<8x64xf32>
    %c0_9 = arith.constant 0 : index
    %c0_10 = arith.constant 0 : index
    %22 = vector.load %arg15[%c0_9, %c0_10] : memref<64x64xf32, #tpu.memory_space<vmem>>, vector<8x64xf32>
    tpu.vector_store %arg15[%c0_9, %c0_10], %21 {strides = array<i32>} : memref<64x64xf32, #tpu.memory_space<vmem>>, vector<8x64xf32>,
    %23 = vector.extract_strided_slice %5 {offsets = [8, 0], sizes = [8, 64], strides = [1, 1]} : vector<64x64xf32> to vector<8x64xf32>
    %24 = arith.cmpf ogt, %18, %8 : vector<8x64xf32>
    %25 = arith.extui %24 : vector<8x64xi1> to vector<8x64xi32>
    %26 = arith.sitofp %25 : vector<8x64xi32> to vector<8x64xf32>
    %cst_11 = arith.constant 0.899999976 : f32
    %27 = vector.broadcast %cst_11 : f32 to vector<8x64xf32>
    %28 = arith.mulf %27, %18 : vector<8x64xf32>
    %29 = arith.addf %28, %23 : vector<8x64xf32>
    %30 = arith.mulf %26, %8 : vector<8x64xf32>
    %31 = arith.subf %29, %30 : vector<8x64xf32>
    %32 = arith.cmpf ogt, %31, %8 : vector<8x64xf32>
    %33 = arith.extui %32 : vector<8x64xi1> to vector<8x64xi32>
    %34 = arith.sitofp %33 : vector<8x64xi32> to vector<8x64xf32>
    %c8 = arith.constant 8 : index
    %c0_12 = arith.constant 0 : index
    %35 = vector.load %arg15[%c8, %c0_12] : memref<64x64xf32, #tpu.memory_space<vmem>>, vector<8x64xf32>
    tpu.vector_store %arg15[%c8, %c0_12], %34 {strides = array<i32>} : memref<64x64xf32, #tpu.memory_space<vmem>>, vector<8x64xf32>,
    %36 = vector.extract_strided_slice %5 {offsets = [16, 0], sizes = [8, 64], strides = [1, 1]} : vector<64x64xf32> to vector<8x64xf32>
    %37 = arith.cmpf ogt, %31, %8 : vector<8x64xf32>
    %38 = arith.extui %37 : vector<8x64xi1> to vector<8x64xi32>
    %39 = arith.sitofp %38 : vector<8x64xi32> to vector<8x64xf32>
    %cst_13 = arith.constant 0.899999976 : f32
    %40 = vector.broadcast %cst_13 : f32 to vector<8x64xf32>
    %41 = arith.mulf %40, %31 : vector<8x64xf32>
    %42 = arith.addf %41, %36 : vector<8x64xf32>
    %43 = arith.mulf %39, %8 : vector<8x64xf32>
    %44 = arith.subf %42, %43 : vector<8x64xf32>
    %45 = arith.cmpf ogt, %44, %8 : vector<8x64xf32>
    %46 = arith.extui %45 : vector<8x64xi1> to vector<8x64xi32>
    %47 = arith.sitofp %46 : vector<8x64xi32> to vector<8x64xf32>
    %c16 = arith.constant 16 : index
    %c0_14 = arith.constant 0 : index
    %48 = vector.load %arg15[%c16, %c0_14] : memref<64x64xf32, #tpu.memory_space<vmem>>, vector<8x64xf32>
    tpu.vector_store %arg15[%c16, %c0_14], %47 {strides = array<i32>} : memref<64x64xf32, #tpu.memory_space<vmem>>, vector<8x64xf32>,
    %49 = vector.extract_strided_slice %5 {offsets = [24, 0], sizes = [8, 64], strides = [1, 1]} : vector<64x64xf32> to vector<8x64xf32>
    %50 = arith.cmpf ogt, %44, %8 : vector<8x64xf32>
    %51 = arith.extui %50 : vector<8x64xi1> to vector<8x64xi32>
    %52 = arith.sitofp %51 : vector<8x64xi32> to vector<8x64xf32>
    %cst_15 = arith.constant 0.899999976 : f32
    %53 = vector.broadcast %cst_15 : f32 to vector<8x64xf32>
    %54 = arith.mulf %53, %44 : vector<8x64xf32>
    %55 = arith.addf %54, %49 : vector<8x64xf32>
    %56 = arith.mulf %52, %8 : vector<8x64xf32>
    %57 = arith.subf %55, %56 : vector<8x64xf32>
    %58 = arith.cmpf ogt, %57, %8 : vector<8x64xf32>
    %59 = arith.extui %58 : vector<8x64xi1> to vector<8x64xi32>
    %60 = arith.sitofp %59 : vector<8x64xi32> to vector<8x64xf32>
    %c24 = arith.constant 24 : index
    %c0_16 = arith.constant 0 : index
    %61 = vector.load %arg15[%c24, %c0_16] : memref<64x64xf32, #tpu.memory_space<vmem>>, vector<8x64xf32>
    tpu.vector_store %arg15[%c24, %c0_16], %60 {strides = array<i32>} : memref<64x64xf32, #tpu.memory_space<vmem>>, vector<8x64xf32>,
    %62 = vector.extract_strided_slice %5 {offsets = [32, 0], sizes = [8, 64], strides = [1, 1]} : vector<64x64xf32> to vector<8x64xf32>
    %63 = arith.cmpf ogt, %57, %8 : vector<8x64xf32>
    %64 = arith.extui %63 : vector<8x64xi1> to vector<8x64xi32>
    %65 = arith.sitofp %64 : vector<8x64xi32> to vector<8x64xf32>
    %cst_17 = arith.constant 0.899999976 : f32
    %66 = vector.broadcast %cst_17 : f32 to vector<8x64xf32>
    %67 = arith.mulf %66, %57 : vector<8x64xf32>
    %68 = arith.addf %67, %62 : vector<8x64xf32>
    %69 = arith.mulf %65, %8 : vector<8x64xf32>
    %70 = arith.subf %68, %69 : vector<8x64xf32>
    %71 = arith.cmpf ogt, %70, %8 : vector<8x64xf32>
    %72 = arith.extui %71 : vector<8x64xi1> to vector<8x64xi32>
    %73 = arith.sitofp %72 : vector<8x64xi32> to vector<8x64xf32>
    %c32 = arith.constant 32 : index
    %c0_18 = arith.constant 0 : index
    %74 = vector.load %arg15[%c32, %c0_18] : memref<64x64xf32, #tpu.memory_space<vmem>>, vector<8x64xf32>
    tpu.vector_store %arg15[%c32, %c0_18], %73 {strides = array<i32>} : memref<64x64xf32, #tpu.memory_space<vmem>>, vector<8x64xf32>,
    %75 = vector.extract_strided_slice %5 {offsets = [40, 0], sizes = [8, 64], strides = [1, 1]} : vector<64x64xf32> to vector<8x64xf32>
    %76 = arith.cmpf ogt, %70, %8 : vector<8x64xf32>
    %77 = arith.extui %76 : vector<8x64xi1> to vector<8x64xi32>
    %78 = arith.sitofp %77 : vector<8x64xi32> to vector<8x64xf32>
    %cst_19 = arith.constant 0.899999976 : f32
    %79 = vector.broadcast %cst_19 : f32 to vector<8x64xf32>
    %80 = arith.mulf %79, %70 : vector<8x64xf32>
    %81 = arith.addf %80, %75 : vector<8x64xf32>
    %82 = arith.mulf %78, %8 : vector<8x64xf32>
    %83 = arith.subf %81, %82 : vector<8x64xf32>
    %84 = arith.cmpf ogt, %83, %8 : vector<8x64xf32>
    %85 = arith.extui %84 : vector<8x64xi1> to vector<8x64xi32>
    %86 = arith.sitofp %85 : vector<8x64xi32> to vector<8x64xf32>
    %c40 = arith.constant 40 : index
    %c0_20 = arith.constant 0 : index
    %87 = vector.load %arg15[%c40, %c0_20] : memref<64x64xf32, #tpu.memory_space<vmem>>, vector<8x64xf32>
    tpu.vector_store %arg15[%c40, %c0_20], %86 {strides = array<i32>} : memref<64x64xf32, #tpu.memory_space<vmem>>, vector<8x64xf32>,
    %88 = vector.extract_strided_slice %5 {offsets = [48, 0], sizes = [8, 64], strides = [1, 1]} : vector<64x64xf32> to vector<8x64xf32>
    %89 = arith.cmpf ogt, %83, %8 : vector<8x64xf32>
    %90 = arith.extui %89 : vector<8x64xi1> to vector<8x64xi32>
    %91 = arith.sitofp %90 : vector<8x64xi32> to vector<8x64xf32>
    %cst_21 = arith.constant 0.899999976 : f32
    %92 = vector.broadcast %cst_21 : f32 to vector<8x64xf32>
    %93 = arith.mulf %92, %83 : vector<8x64xf32>
    %94 = arith.addf %93, %88 : vector<8x64xf32>
    %95 = arith.mulf %91, %8 : vector<8x64xf32>
    %96 = arith.subf %94, %95 : vector<8x64xf32>
    %97 = arith.cmpf ogt, %96, %8 : vector<8x64xf32>
    %98 = arith.extui %97 : vector<8x64xi1> to vector<8x64xi32>
    %99 = arith.sitofp %98 : vector<8x64xi32> to vector<8x64xf32>
    %c48 = arith.constant 48 : index
    %c0_22 = arith.constant 0 : index
    %100 = vector.load %arg15[%c48, %c0_22] : memref<64x64xf32, #tpu.memory_space<vmem>>, vector<8x64xf32>
    tpu.vector_store %arg15[%c48, %c0_22], %99 {strides = array<i32>} : memref<64x64xf32, #tpu.memory_space<vmem>>, vector<8x64xf32>,
    %101 = vector.extract_strided_slice %5 {offsets = [56, 0], sizes = [8, 64], strides = [1, 1]} : vector<64x64xf32> to vector<8x64xf32>
    %102 = arith.cmpf ogt, %96, %8 : vector<8x64xf32>
    %103 = arith.extui %102 : vector<8x64xi1> to vector<8x64xi32>
    %104 = arith.sitofp %103 : vector<8x64xi32> to vector<8x64xf32>
    %cst_23 = arith.constant 0.899999976 : f32
    %105 = vector.broadcast %cst_23 : f32 to vector<8x64xf32>
    %106 = arith.mulf %105, %96 : vector<8x64xf32>
    %107 = arith.addf %106, %101 : vector<8x64xf32>
    %108 = arith.mulf %104, %8 : vector<8x64xf32>
    %109 = arith.subf %107, %108 : vector<8x64xf32>
    %110 = arith.cmpf ogt, %109, %8 : vector<8x64xf32>
    %111 = arith.extui %110 : vector<8x64xi1> to vector<8x64xi32>
    %112 = arith.sitofp %111 : vector<8x64xi32> to vector<8x64xf32>
    %c56 = arith.constant 56 : index
    %c0_24 = arith.constant 0 : index
    %113 = vector.load %arg15[%c56, %c0_24] : memref<64x64xf32, #tpu.memory_space<vmem>>, vector<8x64xf32>
    tpu.vector_store %arg15[%c56, %c0_24], %112 {strides = array<i32>} : memref<64x64xf32, #tpu.memory_space<vmem>>, vector<8x64xf32>,
    %c0_25 = arith.constant 0 : index
    %c0_26 = arith.constant 0 : index
    %114 = vector.load %arg15[%c0_25, %c0_26] : memref<64x64xf32, #tpu.memory_space<vmem>>, vector<64x64xf32>
    %c0_27 = arith.constant 0 : index
    %c0_28 = arith.constant 0 : index
    %115 = vector.load %arg6[%c0_27, %c0_28] : memref<64x128xf32, #tpu.memory_space<vmem>>, vector<64x128xf32>
    %cst_29 = arith.constant dense<0.000000e+00> : vector<64x128xf32>
    %116 = tpu.matmul %114, %115, %cst_29 {dimension_numbers = #tpu.dot_dimension_numbers<[1], [0], [0], [1], [0, 0, 1, 1], [], []>} : vector<64x64xf32>, vector<64x128xf32>, vector<64x128xf32> -> vector<64x128xf32>
    %c0_30 = arith.constant 0 : index
    %c0_31 = arith.constant 0 : index
    %117 = vector.load %arg16[%c0_30, %c0_31] : memref<64x128xf32, #tpu.memory_space<vmem>>, vector<64x128xf32>
    tpu.vector_store %arg16[%c0_30, %c0_31], %116 {strides = array<i32>} : memref<64x128xf32, #tpu.memory_space<vmem>>, vector<64x128xf32>,
    %c0_32 = arith.constant 0 : index
    %c0_33 = arith.constant 0 : index
    %118 = vector.load %arg4[%c0_32, %c0_33] : memref<1x32xf32, #tpu.memory_space<vmem>>, vector<1x32xf32>
    %119 = vector.shape_cast %118 : vector<1x32xf32> to vector<1x32xf32>
    %120 = vector.broadcast %119 : vector<1x32xf32> to vector<8x32xf32>
    %c0_34 = arith.constant 0 : index
    %c0_35 = arith.constant 0 : index
    %121 = vector.load %arg5[%c0_34, %c0_35] : memref<1x32xf32, #tpu.memory_space<vmem>>, vector<1x32xf32>
    %122 = vector.shape_cast %121 : vector<1x32xf32> to vector<1x32xf32>
    %123 = vector.broadcast %122 : vector<1x32xf32> to vector<8x32xf32>
    %c0_36 = arith.constant 0 : index
    %c0_37 = arith.constant 0 : index
    %124 = vector.load %arg8[%c0_36, %c0_37] : memref<1x128xf32, #tpu.memory_space<vmem>>, vector<1x128xf32>
    %125 = vector.shape_cast %124 : vector<1x128xf32> to vector<1x128xf32>
    %126 = vector.broadcast %125 : vector<1x128xf32> to vector<8x128xf32>
    %c0_38 = arith.constant 0 : index
    %c0_39 = arith.constant 0 : index
    %127 = vector.load %arg11[%c0_38, %c0_39] : memref<1x128xf32, #tpu.memory_space<vmem>>, vector<1x128xf32>
    %128 = vector.shape_cast %127 : vector<1x128xf32> to vector<1x128xf32>
    %129 = vector.broadcast %128 : vector<1x128xf32> to vector<8x128xf32>
    %cst_40 = arith.constant 0.000000e+00 : f32
    %130 = vector.broadcast %cst_40 : f32 to vector<8x32xf32>
    %cst_41 = arith.constant 0.000000e+00 : f32
    %131 = vector.broadcast %cst_41 : f32 to vector<8x32xf32>
    %cst_42 = arith.constant 0.000000e+00 : f32
    %132 = vector.broadcast %cst_42 : f32 to vector<8x32xf32>
    %cst_43 = arith.constant 0.000000e+00 : f32
    %133 = vector.broadcast %cst_43 : f32 to vector<8x32xf32>
    %cst_44 = arith.constant 0.000000e+00 : f32
    %134 = vector.broadcast %cst_44 : f32 to vector<8x32xf32>
    %c0_45 = arith.constant 0 : index
    %c0_46 = arith.constant 0 : index
    %135 = vector.load %arg16[%c0_45, %c0_46] : memref<64x128xf32, #tpu.memory_space<vmem>>, vector<8x128xf32>
    %136 = arith.cmpf ogt, %131, %120 : vector<8x32xf32>
    %137 = arith.extui %136 : vector<8x32xi1> to vector<8x32xi32>
    %138 = arith.sitofp %137 : vector<8x32xi32> to vector<8x32xf32>
    %c0_47 = arith.constant 0 : index
    %c0_48 = arith.constant 0 : index
    %139 = vector.load %arg7[%c0_47, %c0_48] : memref<32x128xf32, #tpu.memory_space<vmem>>, vector<32x128xf32>
    %cst_49 = arith.constant dense<0.000000e+00> : vector<8x128xf32>
    %140 = tpu.matmul %131, %139, %cst_49 {dimension_numbers = #tpu.dot_dimension_numbers<[1], [0], [0], [1], [0, 0, 1, 1], [], []>} : vector<8x32xf32>, vector<32x128xf32>, vector<8x128xf32> -> vector<8x128xf32>
    %141 = arith.addf %135, %140 : vector<8x128xf32>
    %142 = arith.addf %141, %126 : vector<8x128xf32>
    %143 = arith.negf %142 : vector<8x128xf32>
    %144 = math.exp %143 : vector<8x128xf32>
    %cst_50 = arith.constant 1.000000e+00 : f32
    %145 = vector.broadcast %cst_50 : f32 to vector<8x128xf32>
    %146 = arith.addf %145, %144 : vector<8x128xf32>
    %147 = arith.divf %145, %146 : vector<8x128xf32>
    %148 = math.tanh %142 : vector<8x128xf32>
    %149 = vector.extract_strided_slice %147 {offsets = [0, 0], sizes = [8, 32], strides = [1, 1]} : vector<8x128xf32> to vector<8x32xf32>
    %150 = vector.extract_strided_slice %147 {offsets = [0, 32], sizes = [8, 32], strides = [1, 1]} : vector<8x128xf32> to vector<8x32xf32>
    %151 = vector.extract_strided_slice %148 {offsets = [0, 64], sizes = [8, 32], strides = [1, 1]} : vector<8x128xf32> to vector<8x32xf32>
    %152 = vector.extract_strided_slice %147 {offsets = [0, 96], sizes = [8, 32], strides = [1, 1]} : vector<8x128xf32> to vector<8x32xf32>
    %153 = arith.mulf %150, %130 : vector<8x32xf32>
    %154 = arith.mulf %149, %151 : vector<8x32xf32>
    %155 = arith.addf %153, %154 : vector<8x32xf32>
    %156 = math.tanh %155 : vector<8x32xf32>
    %157 = arith.mulf %152, %156 : vector<8x32xf32>
    %158 = arith.mulf %138, %120 : vector<8x32xf32>
    %159 = arith.subf %157, %158 : vector<8x32xf32>
    %160 = arith.cmpf ogt, %159, %120 : vector<8x32xf32>
    %161 = arith.extui %160 : vector<8x32xi1> to vector<8x32xi32>
    %162 = arith.sitofp %161 : vector<8x32xi32> to vector<8x32xf32>
    %163 = arith.cmpf ogt, %133, %123 : vector<8x32xf32>
    %164 = arith.extui %163 : vector<8x32xi1> to vector<8x32xi32>
    %165 = arith.sitofp %164 : vector<8x32xi32> to vector<8x32xf32>
    %c0_51 = arith.constant 0 : index
    %c0_52 = arith.constant 0 : index
    %166 = vector.load %arg9[%c0_51, %c0_52] : memref<32x128xf32, #tpu.memory_space<vmem>>, vector<32x128xf32>
    %cst_53 = arith.constant dense<0.000000e+00> : vector<8x128xf32>
    %167 = tpu.matmul %162, %166, %cst_53 {dimension_numbers = #tpu.dot_dimension_numbers<[1], [0], [0], [1], [0, 0, 1, 1], [], []>} : vector<8x32xf32>, vector<32x128xf32>, vector<8x128xf32> -> vector<8x128xf32>
    %c0_54 = arith.constant 0 : index
    %c0_55 = arith.constant 0 : index
    %168 = vector.load %arg10[%c0_54, %c0_55] : memref<32x128xf32, #tpu.memory_space<vmem>>, vector<32x128xf32>
    %cst_56 = arith.constant dense<0.000000e+00> : vector<8x128xf32>
    %169 = tpu.matmul %133, %168, %cst_56 {dimension_numbers = #tpu.dot_dimension_numbers<[1], [0], [0], [1], [0, 0, 1, 1], [], []>} : vector<8x32xf32>, vector<32x128xf32>, vector<8x128xf32> -> vector<8x128xf32>
    %170 = arith.addf %167, %169 : vector<8x128xf32>
    %171 = arith.addf %170, %129 : vector<8x128xf32>
    %172 = arith.negf %171 : vector<8x128xf32>
    %173 = math.exp %172 : vector<8x128xf32>
    %cst_57 = arith.constant 1.000000e+00 : f32
    %174 = vector.broadcast %cst_57 : f32 to vector<8x128xf32>
    %175 = arith.addf %174, %173 : vector<8x128xf32>
    %176 = arith.divf %174, %175 : vector<8x128xf32>
    %177 = math.tanh %171 : vector<8x128xf32>
    %178 = vector.extract_strided_slice %176 {offsets = [0, 0], sizes = [8, 32], strides = [1, 1]} : vector<8x128xf32> to vector<8x32xf32>
    %179 = vector.extract_strided_slice %176 {offsets = [0, 32], sizes = [8, 32], strides = [1, 1]} : vector<8x128xf32> to vector<8x32xf32>
    %180 = vector.extract_strided_slice %177 {offsets = [0, 64], sizes = [8, 32], strides = [1, 1]} : vector<8x128xf32> to vector<8x32xf32>
    %181 = vector.extract_strided_slice %176 {offsets = [0, 96], sizes = [8, 32], strides = [1, 1]} : vector<8x128xf32> to vector<8x32xf32>
    %182 = arith.mulf %179, %132 : vector<8x32xf32>
    %183 = arith.mulf %178, %180 : vector<8x32xf32>
    %184 = arith.addf %182, %183 : vector<8x32xf32>
    %185 = math.tanh %184 : vector<8x32xf32>
    %186 = arith.mulf %181, %185 : vector<8x32xf32>
    %187 = arith.mulf %165, %123 : vector<8x32xf32>
    %188 = arith.subf %186, %187 : vector<8x32xf32>
    %189 = arith.addf %134, %188 : vector<8x32xf32>
    %c8_58 = arith.constant 8 : index
    %c0_59 = arith.constant 0 : index
    %190 = vector.load %arg16[%c8_58, %c0_59] : memref<64x128xf32, #tpu.memory_space<vmem>>, vector<8x128xf32>
    %191 = arith.cmpf ogt, %159, %120 : vector<8x32xf32>
    %192 = arith.extui %191 : vector<8x32xi1> to vector<8x32xi32>
    %193 = arith.sitofp %192 : vector<8x32xi32> to vector<8x32xf32>
    %c0_60 = arith.constant 0 : index
    %c0_61 = arith.constant 0 : index
    %194 = vector.load %arg7[%c0_60, %c0_61] : memref<32x128xf32, #tpu.memory_space<vmem>>, vector<32x128xf32>
    %cst_62 = arith.constant dense<0.000000e+00> : vector<8x128xf32>
    %195 = tpu.matmul %159, %194, %cst_62 {dimension_numbers = #tpu.dot_dimension_numbers<[1], [0], [0], [1], [0, 0, 1, 1], [], []>} : vector<8x32xf32>, vector<32x128xf32>, vector<8x128xf32> -> vector<8x128xf32>
    %196 = arith.addf %190, %195 : vector<8x128xf32>
    %197 = arith.addf %196, %126 : vector<8x128xf32>
    %198 = arith.negf %197 : vector<8x128xf32>
    %199 = math.exp %198 : vector<8x128xf32>
    %cst_63 = arith.constant 1.000000e+00 : f32
    %200 = vector.broadcast %cst_63 : f32 to vector<8x128xf32>
    %201 = arith.addf %200, %199 : vector<8x128xf32>
    %202 = arith.divf %200, %201 : vector<8x128xf32>
    %203 = math.tanh %197 : vector<8x128xf32>
    %204 = vector.extract_strided_slice %202 {offsets = [0, 0], sizes = [8, 32], strides = [1, 1]} : vector<8x128xf32> to vector<8x32xf32>
    %205 = vector.extract_strided_slice %202 {offsets = [0, 32], sizes = [8, 32], strides = [1, 1]} : vector<8x128xf32> to vector<8x32xf32>
    %206 = vector.extract_strided_slice %203 {offsets = [0, 64], sizes = [8, 32], strides = [1, 1]} : vector<8x128xf32> to vector<8x32xf32>
    %207 = vector.extract_strided_slice %202 {offsets = [0, 96], sizes = [8, 32], strides = [1, 1]} : vector<8x128xf32> to vector<8x32xf32>
    %208 = arith.mulf %205, %155 : vector<8x32xf32>
    %209 = arith.mulf %204, %206 : vector<8x32xf32>
    %210 = arith.addf %208, %209 : vector<8x32xf32>
    %211 = math.tanh %210 : vector<8x32xf32>
    %212 = arith.mulf %207, %211 : vector<8x32xf32>
    %213 = arith.mulf %193, %120 : vector<8x32xf32>
    %214 = arith.subf %212, %213 : vector<8x32xf32>
    %215 = arith.cmpf ogt, %214, %120 : vector<8x32xf32>
    %216 = arith.extui %215 : vector<8x32xi1> to vector<8x32xi32>
    %217 = arith.sitofp %216 : vector<8x32xi32> to vector<8x32xf32>
    %218 = arith.cmpf ogt, %188, %123 : vector<8x32xf32>
    %219 = arith.extui %218 : vector<8x32xi1> to vector<8x32xi32>
    %220 = arith.sitofp %219 : vector<8x32xi32> to vector<8x32xf32>
    %c0_64 = arith.constant 0 : index
    %c0_65 = arith.constant 0 : index
    %221 = vector.load %arg9[%c0_64, %c0_65] : memref<32x128xf32, #tpu.memory_space<vmem>>, vector<32x128xf32>
    %cst_66 = arith.constant dense<0.000000e+00> : vector<8x128xf32>
    %222 = tpu.matmul %217, %221, %cst_66 {dimension_numbers = #tpu.dot_dimension_numbers<[1], [0], [0], [1], [0, 0, 1, 1], [], []>} : vector<8x32xf32>, vector<32x128xf32>, vector<8x128xf32> -> vector<8x128xf32>
    %c0_67 = arith.constant 0 : index
    %c0_68 = arith.constant 0 : index
    %223 = vector.load %arg10[%c0_67, %c0_68] : memref<32x128xf32, #tpu.memory_space<vmem>>, vector<32x128xf32>
    %cst_69 = arith.constant dense<0.000000e+00> : vector<8x128xf32>
    %224 = tpu.matmul %188, %223, %cst_69 {dimension_numbers = #tpu.dot_dimension_numbers<[1], [0], [0], [1], [0, 0, 1, 1], [], []>} : vector<8x32xf32>, vector<32x128xf32>, vector<8x128xf32> -> vector<8x128xf32>
    %225 = arith.addf %222, %224 : vector<8x128xf32>
    %226 = arith.addf %225, %129 : vector<8x128xf32>
    %227 = arith.negf %226 : vector<8x128xf32>
    %228 = math.exp %227 : vector<8x128xf32>
    %cst_70 = arith.constant 1.000000e+00 : f32
    %229 = vector.broadcast %cst_70 : f32 to vector<8x128xf32>
    %230 = arith.addf %229, %228 : vector<8x128xf32>
    %231 = arith.divf %229, %230 : vector<8x128xf32>
    %232 = math.tanh %226 : vector<8x128xf32>
    %233 = vector.extract_strided_slice %231 {offsets = [0, 0], sizes = [8, 32], strides = [1, 1]} : vector<8x128xf32> to vector<8x32xf32>
    %234 = vector.extract_strided_slice %231 {offsets = [0, 32], sizes = [8, 32], strides = [1, 1]} : vector<8x128xf32> to vector<8x32xf32>
    %235 = vector.extract_strided_slice %232 {offsets = [0, 64], sizes = [8, 32], strides = [1, 1]} : vector<8x128xf32> to vector<8x32xf32>
    %236 = vector.extract_strided_slice %231 {offsets = [0, 96], sizes = [8, 32], strides = [1, 1]} : vector<8x128xf32> to vector<8x32xf32>
    %237 = arith.mulf %234, %184 : vector<8x32xf32>
    %238 = arith.mulf %233, %235 : vector<8x32xf32>
    %239 = arith.addf %237, %238 : vector<8x32xf32>
    %240 = math.tanh %239 : vector<8x32xf32>
    %241 = arith.mulf %236, %240 : vector<8x32xf32>
    %242 = arith.mulf %220, %123 : vector<8x32xf32>
    %243 = arith.subf %241, %242 : vector<8x32xf32>
    %244 = arith.addf %189, %243 : vector<8x32xf32>
    %c16_71 = arith.constant 16 : index
    %c0_72 = arith.constant 0 : index
    %245 = vector.load %arg16[%c16_71, %c0_72] : memref<64x128xf32, #tpu.memory_space<vmem>>, vector<8x128xf32>
    %246 = arith.cmpf ogt, %214, %120 : vector<8x32xf32>
    %247 = arith.extui %246 : vector<8x32xi1> to vector<8x32xi32>
    %248 = arith.sitofp %247 : vector<8x32xi32> to vector<8x32xf32>
    %c0_73 = arith.constant 0 : index
    %c0_74 = arith.constant 0 : index
    %249 = vector.load %arg7[%c0_73, %c0_74] : memref<32x128xf32, #tpu.memory_space<vmem>>, vector<32x128xf32>
    %cst_75 = arith.constant dense<0.000000e+00> : vector<8x128xf32>
    %250 = tpu.matmul %214, %249, %cst_75 {dimension_numbers = #tpu.dot_dimension_numbers<[1], [0], [0], [1], [0, 0, 1, 1], [], []>} : vector<8x32xf32>, vector<32x128xf32>, vector<8x128xf32> -> vector<8x128xf32>
    %251 = arith.addf %245, %250 : vector<8x128xf32>
    %252 = arith.addf %251, %126 : vector<8x128xf32>
    %253 = arith.negf %252 : vector<8x128xf32>
    %254 = math.exp %253 : vector<8x128xf32>
    %cst_76 = arith.constant 1.000000e+00 : f32
    %255 = vector.broadcast %cst_76 : f32 to vector<8x128xf32>
    %256 = arith.addf %255, %254 : vector<8x128xf32>
    %257 = arith.divf %255, %256 : vector<8x128xf32>
    %258 = math.tanh %252 : vector<8x128xf32>
    %259 = vector.extract_strided_slice %257 {offsets = [0, 0], sizes = [8, 32], strides = [1, 1]} : vector<8x128xf32> to vector<8x32xf32>
    %260 = vector.extract_strided_slice %257 {offsets = [0, 32], sizes = [8, 32], strides = [1, 1]} : vector<8x128xf32> to vector<8x32xf32>
    %261 = vector.extract_strided_slice %258 {offsets = [0, 64], sizes = [8, 32], strides = [1, 1]} : vector<8x128xf32> to vector<8x32xf32>
    %262 = vector.extract_strided_slice %257 {offsets = [0, 96], sizes = [8, 32], strides = [1, 1]} : vector<8x128xf32> to vector<8x32xf32>
    %263 = arith.mulf %260, %210 : vector<8x32xf32>
    %264 = arith.mulf %259, %261 : vector<8x32xf32>
    %265 = arith.addf %263, %264 : vector<8x32xf32>
    %266 = math.tanh %265 : vector<8x32xf32>
    %267 = arith.mulf %262, %266 : vector<8x32xf32>
    %268 = arith.mulf %248, %120 : vector<8x32xf32>
    %269 = arith.subf %267, %268 : vector<8x32xf32>
    %270 = arith.cmpf ogt, %269, %120 : vector<8x32xf32>
    %271 = arith.extui %270 : vector<8x32xi1> to vector<8x32xi32>
    %272 = arith.sitofp %271 : vector<8x32xi32> to vector<8x32xf32>
    %273 = arith.cmpf ogt, %243, %123 : vector<8x32xf32>
    %274 = arith.extui %273 : vector<8x32xi1> to vector<8x32xi32>
    %275 = arith.sitofp %274 : vector<8x32xi32> to vector<8x32xf32>
    %c0_77 = arith.constant 0 : index
    %c0_78 = arith.constant 0 : index
    %276 = vector.load %arg9[%c0_77, %c0_78] : memref<32x128xf32, #tpu.memory_space<vmem>>, vector<32x128xf32>
    %cst_79 = arith.constant dense<0.000000e+00> : vector<8x128xf32>
    %277 = tpu.matmul %272, %276, %cst_79 {dimension_numbers = #tpu.dot_dimension_numbers<[1], [0], [0], [1], [0, 0, 1, 1], [], []>} : vector<8x32xf32>, vector<32x128xf32>, vector<8x128xf32> -> vector<8x128xf32>
    %c0_80 = arith.constant 0 : index
    %c0_81 = arith.constant 0 : index
    %278 = vector.load %arg10[%c0_80, %c0_81] : memref<32x128xf32, #tpu.memory_space<vmem>>, vector<32x128xf32>
    %cst_82 = arith.constant dense<0.000000e+00> : vector<8x128xf32>
    %279 = tpu.matmul %243, %278, %cst_82 {dimension_numbers = #tpu.dot_dimension_numbers<[1], [0], [0], [1], [0, 0, 1, 1], [], []>} : vector<8x32xf32>, vector<32x128xf32>, vector<8x128xf32> -> vector<8x128xf32>
    %280 = arith.addf %277, %279 : vector<8x128xf32>
    %281 = arith.addf %280, %129 : vector<8x128xf32>
    %282 = arith.negf %281 : vector<8x128xf32>
    %283 = math.exp %282 : vector<8x128xf32>
    %cst_83 = arith.constant 1.000000e+00 : f32
    %284 = vector.broadcast %cst_83 : f32 to vector<8x128xf32>
    %285 = arith.addf %284, %283 : vector<8x128xf32>
    %286 = arith.divf %284, %285 : vector<8x128xf32>
    %287 = math.tanh %281 : vector<8x128xf32>
    %288 = vector.extract_strided_slice %286 {offsets = [0, 0], sizes = [8, 32], strides = [1, 1]} : vector<8x128xf32> to vector<8x32xf32>
    %289 = vector.extract_strided_slice %286 {offsets = [0, 32], sizes = [8, 32], strides = [1, 1]} : vector<8x128xf32> to vector<8x32xf32>
    %290 = vector.extract_strided_slice %287 {offsets = [0, 64], sizes = [8, 32], strides = [1, 1]} : vector<8x128xf32> to vector<8x32xf32>
    %291 = vector.extract_strided_slice %286 {offsets = [0, 96], sizes = [8, 32], strides = [1, 1]} : vector<8x128xf32> to vector<8x32xf32>
    %292 = arith.mulf %289, %239 : vector<8x32xf32>
    %293 = arith.mulf %288, %290 : vector<8x32xf32>
    %294 = arith.addf %292, %293 : vector<8x32xf32>
    %295 = math.tanh %294 : vector<8x32xf32>
    %296 = arith.mulf %291, %295 : vector<8x32xf32>
    %297 = arith.mulf %275, %123 : vector<8x32xf32>
    %298 = arith.subf %296, %297 : vector<8x32xf32>
    %299 = arith.addf %244, %298 : vector<8x32xf32>
    %c24_84 = arith.constant 24 : index
    %c0_85 = arith.constant 0 : index
    %300 = vector.load %arg16[%c24_84, %c0_85] : memref<64x128xf32, #tpu.memory_space<vmem>>, vector<8x128xf32>
    %301 = arith.cmpf ogt, %269, %120 : vector<8x32xf32>
    %302 = arith.extui %301 : vector<8x32xi1> to vector<8x32xi32>
    %303 = arith.sitofp %302 : vector<8x32xi32> to vector<8x32xf32>
    %c0_86 = arith.constant 0 : index
    %c0_87 = arith.constant 0 : index
    %304 = vector.load %arg7[%c0_86, %c0_87] : memref<32x128xf32, #tpu.memory_space<vmem>>, vector<32x128xf32>
    %cst_88 = arith.constant dense<0.000000e+00> : vector<8x128xf32>
    %305 = tpu.matmul %269, %304, %cst_88 {dimension_numbers = #tpu.dot_dimension_numbers<[1], [0], [0], [1], [0, 0, 1, 1], [], []>} : vector<8x32xf32>, vector<32x128xf32>, vector<8x128xf32> -> vector<8x128xf32>
    %306 = arith.addf %300, %305 : vector<8x128xf32>
    %307 = arith.addf %306, %126 : vector<8x128xf32>
    %308 = arith.negf %307 : vector<8x128xf32>
    %309 = math.exp %308 : vector<8x128xf32>
    %cst_89 = arith.constant 1.000000e+00 : f32
    %310 = vector.broadcast %cst_89 : f32 to vector<8x128xf32>
    %311 = arith.addf %310, %309 : vector<8x128xf32>
    %312 = arith.divf %310, %311 : vector<8x128xf32>
    %313 = math.tanh %307 : vector<8x128xf32>
    %314 = vector.extract_strided_slice %312 {offsets = [0, 0], sizes = [8, 32], strides = [1, 1]} : vector<8x128xf32> to vector<8x32xf32>
    %315 = vector.extract_strided_slice %312 {offsets = [0, 32], sizes = [8, 32], strides = [1, 1]} : vector<8x128xf32> to vector<8x32xf32>
    %316 = vector.extract_strided_slice %313 {offsets = [0, 64], sizes = [8, 32], strides = [1, 1]} : vector<8x128xf32> to vector<8x32xf32>
    %317 = vector.extract_strided_slice %312 {offsets = [0, 96], sizes = [8, 32], strides = [1, 1]} : vector<8x128xf32> to vector<8x32xf32>
    %318 = arith.mulf %315, %265 : vector<8x32xf32>
    %319 = arith.mulf %314, %316 : vector<8x32xf32>
    %320 = arith.addf %318, %319 : vector<8x32xf32>
    %321 = math.tanh %320 : vector<8x32xf32>
    %322 = arith.mulf %317, %321 : vector<8x32xf32>
    %323 = arith.mulf %303, %120 : vector<8x32xf32>
    %324 = arith.subf %322, %323 : vector<8x32xf32>
    %325 = arith.cmpf ogt, %324, %120 : vector<8x32xf32>
    %326 = arith.extui %325 : vector<8x32xi1> to vector<8x32xi32>
    %327 = arith.sitofp %326 : vector<8x32xi32> to vector<8x32xf32>
    %328 = arith.cmpf ogt, %298, %123 : vector<8x32xf32>
    %329 = arith.extui %328 : vector<8x32xi1> to vector<8x32xi32>
    %330 = arith.sitofp %329 : vector<8x32xi32> to vector<8x32xf32>
    %c0_90 = arith.constant 0 : index
    %c0_91 = arith.constant 0 : index
    %331 = vector.load %arg9[%c0_90, %c0_91] : memref<32x128xf32, #tpu.memory_space<vmem>>, vector<32x128xf32>
    %cst_92 = arith.constant dense<0.000000e+00> : vector<8x128xf32>
    %332 = tpu.matmul %327, %331, %cst_92 {dimension_numbers = #tpu.dot_dimension_numbers<[1], [0], [0], [1], [0, 0, 1, 1], [], []>} : vector<8x32xf32>, vector<32x128xf32>, vector<8x128xf32> -> vector<8x128xf32>
    %c0_93 = arith.constant 0 : index
    %c0_94 = arith.constant 0 : index
    %333 = vector.load %arg10[%c0_93, %c0_94] : memref<32x128xf32, #tpu.memory_space<vmem>>, vector<32x128xf32>
    %cst_95 = arith.constant dense<0.000000e+00> : vector<8x128xf32>
    %334 = tpu.matmul %298, %333, %cst_95 {dimension_numbers = #tpu.dot_dimension_numbers<[1], [0], [0], [1], [0, 0, 1, 1], [], []>} : vector<8x32xf32>, vector<32x128xf32>, vector<8x128xf32> -> vector<8x128xf32>
    %335 = arith.addf %332, %334 : vector<8x128xf32>
    %336 = arith.addf %335, %129 : vector<8x128xf32>
    %337 = arith.negf %336 : vector<8x128xf32>
    %338 = math.exp %337 : vector<8x128xf32>
    %cst_96 = arith.constant 1.000000e+00 : f32
    %339 = vector.broadcast %cst_96 : f32 to vector<8x128xf32>
    %340 = arith.addf %339, %338 : vector<8x128xf32>
    %341 = arith.divf %339, %340 : vector<8x128xf32>
    %342 = math.tanh %336 : vector<8x128xf32>
    %343 = vector.extract_strided_slice %341 {offsets = [0, 0], sizes = [8, 32], strides = [1, 1]} : vector<8x128xf32> to vector<8x32xf32>
    %344 = vector.extract_strided_slice %341 {offsets = [0, 32], sizes = [8, 32], strides = [1, 1]} : vector<8x128xf32> to vector<8x32xf32>
    %345 = vector.extract_strided_slice %342 {offsets = [0, 64], sizes = [8, 32], strides = [1, 1]} : vector<8x128xf32> to vector<8x32xf32>
    %346 = vector.extract_strided_slice %341 {offsets = [0, 96], sizes = [8, 32], strides = [1, 1]} : vector<8x128xf32> to vector<8x32xf32>
    %347 = arith.mulf %344, %294 : vector<8x32xf32>
    %348 = arith.mulf %343, %345 : vector<8x32xf32>
    %349 = arith.addf %347, %348 : vector<8x32xf32>
    %350 = math.tanh %349 : vector<8x32xf32>
    %351 = arith.mulf %346, %350 : vector<8x32xf32>
    %352 = arith.mulf %330, %123 : vector<8x32xf32>
    %353 = arith.subf %351, %352 : vector<8x32xf32>
    %354 = arith.addf %299, %353 : vector<8x32xf32>
    %c32_97 = arith.constant 32 : index
    %c0_98 = arith.constant 0 : index
    %355 = vector.load %arg16[%c32_97, %c0_98] : memref<64x128xf32, #tpu.memory_space<vmem>>, vector<8x128xf32>
    %356 = arith.cmpf ogt, %324, %120 : vector<8x32xf32>
    %357 = arith.extui %356 : vector<8x32xi1> to vector<8x32xi32>
    %358 = arith.sitofp %357 : vector<8x32xi32> to vector<8x32xf32>
    %c0_99 = arith.constant 0 : index
    %c0_100 = arith.constant 0 : index
    %359 = vector.load %arg7[%c0_99, %c0_100] : memref<32x128xf32, #tpu.memory_space<vmem>>, vector<32x128xf32>
    %cst_101 = arith.constant dense<0.000000e+00> : vector<8x128xf32>
    %360 = tpu.matmul %324, %359, %cst_101 {dimension_numbers = #tpu.dot_dimension_numbers<[1], [0], [0], [1], [0, 0, 1, 1], [], []>} : vector<8x32xf32>, vector<32x128xf32>, vector<8x128xf32> -> vector<8x128xf32>
    %361 = arith.addf %355, %360 : vector<8x128xf32>
    %362 = arith.addf %361, %126 : vector<8x128xf32>
    %363 = arith.negf %362 : vector<8x128xf32>
    %364 = math.exp %363 : vector<8x128xf32>
    %cst_102 = arith.constant 1.000000e+00 : f32
    %365 = vector.broadcast %cst_102 : f32 to vector<8x128xf32>
    %366 = arith.addf %365, %364 : vector<8x128xf32>
    %367 = arith.divf %365, %366 : vector<8x128xf32>
    %368 = math.tanh %362 : vector<8x128xf32>
    %369 = vector.extract_strided_slice %367 {offsets = [0, 0], sizes = [8, 32], strides = [1, 1]} : vector<8x128xf32> to vector<8x32xf32>
    %370 = vector.extract_strided_slice %367 {offsets = [0, 32], sizes = [8, 32], strides = [1, 1]} : vector<8x128xf32> to vector<8x32xf32>
    %371 = vector.extract_strided_slice %368 {offsets = [0, 64], sizes = [8, 32], strides = [1, 1]} : vector<8x128xf32> to vector<8x32xf32>
    %372 = vector.extract_strided_slice %367 {offsets = [0, 96], sizes = [8, 32], strides = [1, 1]} : vector<8x128xf32> to vector<8x32xf32>
    %373 = arith.mulf %370, %320 : vector<8x32xf32>
    %374 = arith.mulf %369, %371 : vector<8x32xf32>
    %375 = arith.addf %373, %374 : vector<8x32xf32>
    %376 = math.tanh %375 : vector<8x32xf32>
    %377 = arith.mulf %372, %376 : vector<8x32xf32>
    %378 = arith.mulf %358, %120 : vector<8x32xf32>
    %379 = arith.subf %377, %378 : vector<8x32xf32>
    %380 = arith.cmpf ogt, %379, %120 : vector<8x32xf32>
    %381 = arith.extui %380 : vector<8x32xi1> to vector<8x32xi32>
    %382 = arith.sitofp %381 : vector<8x32xi32> to vector<8x32xf32>
    %383 = arith.cmpf ogt, %353, %123 : vector<8x32xf32>
    %384 = arith.extui %383 : vector<8x32xi1> to vector<8x32xi32>
    %385 = arith.sitofp %384 : vector<8x32xi32> to vector<8x32xf32>
    %c0_103 = arith.constant 0 : index
    %c0_104 = arith.constant 0 : index
    %386 = vector.load %arg9[%c0_103, %c0_104] : memref<32x128xf32, #tpu.memory_space<vmem>>, vector<32x128xf32>
    %cst_105 = arith.constant dense<0.000000e+00> : vector<8x128xf32>
    %387 = tpu.matmul %382, %386, %cst_105 {dimension_numbers = #tpu.dot_dimension_numbers<[1], [0], [0], [1], [0, 0, 1, 1], [], []>} : vector<8x32xf32>, vector<32x128xf32>, vector<8x128xf32> -> vector<8x128xf32>
    %c0_106 = arith.constant 0 : index
    %c0_107 = arith.constant 0 : index
    %388 = vector.load %arg10[%c0_106, %c0_107] : memref<32x128xf32, #tpu.memory_space<vmem>>, vector<32x128xf32>
    %cst_108 = arith.constant dense<0.000000e+00> : vector<8x128xf32>
    %389 = tpu.matmul %353, %388, %cst_108 {dimension_numbers = #tpu.dot_dimension_numbers<[1], [0], [0], [1], [0, 0, 1, 1], [], []>} : vector<8x32xf32>, vector<32x128xf32>, vector<8x128xf32> -> vector<8x128xf32>
    %390 = arith.addf %387, %389 : vector<8x128xf32>
    %391 = arith.addf %390, %129 : vector<8x128xf32>
    %392 = arith.negf %391 : vector<8x128xf32>
    %393 = math.exp %392 : vector<8x128xf32>
    %cst_109 = arith.constant 1.000000e+00 : f32
    %394 = vector.broadcast %cst_109 : f32 to vector<8x128xf32>
    %395 = arith.addf %394, %393 : vector<8x128xf32>
    %396 = arith.divf %394, %395 : vector<8x128xf32>
    %397 = math.tanh %391 : vector<8x128xf32>
    %398 = vector.extract_strided_slice %396 {offsets = [0, 0], sizes = [8, 32], strides = [1, 1]} : vector<8x128xf32> to vector<8x32xf32>
    %399 = vector.extract_strided_slice %396 {offsets = [0, 32], sizes = [8, 32], strides = [1, 1]} : vector<8x128xf32> to vector<8x32xf32>
    %400 = vector.extract_strided_slice %397 {offsets = [0, 64], sizes = [8, 32], strides = [1, 1]} : vector<8x128xf32> to vector<8x32xf32>
    %401 = vector.extract_strided_slice %396 {offsets = [0, 96], sizes = [8, 32], strides = [1, 1]} : vector<8x128xf32> to vector<8x32xf32>
    %402 = arith.mulf %399, %349 : vector<8x32xf32>
    %403 = arith.mulf %398, %400 : vector<8x32xf32>
    %404 = arith.addf %402, %403 : vector<8x32xf32>
    %405 = math.tanh %404 : vector<8x32xf32>
    %406 = arith.mulf %401, %405 : vector<8x32xf32>
    %407 = arith.mulf %385, %123 : vector<8x32xf32>
    %408 = arith.subf %406, %407 : vector<8x32xf32>
    %409 = arith.addf %354, %408 : vector<8x32xf32>
    %c40_110 = arith.constant 40 : index
    %c0_111 = arith.constant 0 : index
    %410 = vector.load %arg16[%c40_110, %c0_111] : memref<64x128xf32, #tpu.memory_space<vmem>>, vector<8x128xf32>
    %411 = arith.cmpf ogt, %379, %120 : vector<8x32xf32>
    %412 = arith.extui %411 : vector<8x32xi1> to vector<8x32xi32>
    %413 = arith.sitofp %412 : vector<8x32xi32> to vector<8x32xf32>
    %c0_112 = arith.constant 0 : index
    %c0_113 = arith.constant 0 : index
    %414 = vector.load %arg7[%c0_112, %c0_113] : memref<32x128xf32, #tpu.memory_space<vmem>>, vector<32x128xf32>
    %cst_114 = arith.constant dense<0.000000e+00> : vector<8x128xf32>
    %415 = tpu.matmul %379, %414, %cst_114 {dimension_numbers = #tpu.dot_dimension_numbers<[1], [0], [0], [1], [0, 0, 1, 1], [], []>} : vector<8x32xf32>, vector<32x128xf32>, vector<8x128xf32> -> vector<8x128xf32>
    %416 = arith.addf %410, %415 : vector<8x128xf32>
    %417 = arith.addf %416, %126 : vector<8x128xf32>
    %418 = arith.negf %417 : vector<8x128xf32>
    %419 = math.exp %418 : vector<8x128xf32>
    %cst_115 = arith.constant 1.000000e+00 : f32
    %420 = vector.broadcast %cst_115 : f32 to vector<8x128xf32>
    %421 = arith.addf %420, %419 : vector<8x128xf32>
    %422 = arith.divf %420, %421 : vector<8x128xf32>
    %423 = math.tanh %417 : vector<8x128xf32>
    %424 = vector.extract_strided_slice %422 {offsets = [0, 0], sizes = [8, 32], strides = [1, 1]} : vector<8x128xf32> to vector<8x32xf32>
    %425 = vector.extract_strided_slice %422 {offsets = [0, 32], sizes = [8, 32], strides = [1, 1]} : vector<8x128xf32> to vector<8x32xf32>
    %426 = vector.extract_strided_slice %423 {offsets = [0, 64], sizes = [8, 32], strides = [1, 1]} : vector<8x128xf32> to vector<8x32xf32>
    %427 = vector.extract_strided_slice %422 {offsets = [0, 96], sizes = [8, 32], strides = [1, 1]} : vector<8x128xf32> to vector<8x32xf32>
    %428 = arith.mulf %425, %375 : vector<8x32xf32>
    %429 = arith.mulf %424, %426 : vector<8x32xf32>
    %430 = arith.addf %428, %429 : vector<8x32xf32>
    %431 = math.tanh %430 : vector<8x32xf32>
    %432 = arith.mulf %427, %431 : vector<8x32xf32>
    %433 = arith.mulf %413, %120 : vector<8x32xf32>
    %434 = arith.subf %432, %433 : vector<8x32xf32>
    %435 = arith.cmpf ogt, %434, %120 : vector<8x32xf32>
    %436 = arith.extui %435 : vector<8x32xi1> to vector<8x32xi32>
    %437 = arith.sitofp %436 : vector<8x32xi32> to vector<8x32xf32>
    %438 = arith.cmpf ogt, %408, %123 : vector<8x32xf32>
    %439 = arith.extui %438 : vector<8x32xi1> to vector<8x32xi32>
    %440 = arith.sitofp %439 : vector<8x32xi32> to vector<8x32xf32>
    %c0_116 = arith.constant 0 : index
    %c0_117 = arith.constant 0 : index
    %441 = vector.load %arg9[%c0_116, %c0_117] : memref<32x128xf32, #tpu.memory_space<vmem>>, vector<32x128xf32>
    %cst_118 = arith.constant dense<0.000000e+00> : vector<8x128xf32>
    %442 = tpu.matmul %437, %441, %cst_118 {dimension_numbers = #tpu.dot_dimension_numbers<[1], [0], [0], [1], [0, 0, 1, 1], [], []>} : vector<8x32xf32>, vector<32x128xf32>, vector<8x128xf32> -> vector<8x128xf32>
    %c0_119 = arith.constant 0 : index
    %c0_120 = arith.constant 0 : index
    %443 = vector.load %arg10[%c0_119, %c0_120] : memref<32x128xf32, #tpu.memory_space<vmem>>, vector<32x128xf32>
    %cst_121 = arith.constant dense<0.000000e+00> : vector<8x128xf32>
    %444 = tpu.matmul %408, %443, %cst_121 {dimension_numbers = #tpu.dot_dimension_numbers<[1], [0], [0], [1], [0, 0, 1, 1], [], []>} : vector<8x32xf32>, vector<32x128xf32>, vector<8x128xf32> -> vector<8x128xf32>
    %445 = arith.addf %442, %444 : vector<8x128xf32>
    %446 = arith.addf %445, %129 : vector<8x128xf32>
    %447 = arith.negf %446 : vector<8x128xf32>
    %448 = math.exp %447 : vector<8x128xf32>
    %cst_122 = arith.constant 1.000000e+00 : f32
    %449 = vector.broadcast %cst_122 : f32 to vector<8x128xf32>
    %450 = arith.addf %449, %448 : vector<8x128xf32>
    %451 = arith.divf %449, %450 : vector<8x128xf32>
    %452 = math.tanh %446 : vector<8x128xf32>
    %453 = vector.extract_strided_slice %451 {offsets = [0, 0], sizes = [8, 32], strides = [1, 1]} : vector<8x128xf32> to vector<8x32xf32>
    %454 = vector.extract_strided_slice %451 {offsets = [0, 32], sizes = [8, 32], strides = [1, 1]} : vector<8x128xf32> to vector<8x32xf32>
    %455 = vector.extract_strided_slice %452 {offsets = [0, 64], sizes = [8, 32], strides = [1, 1]} : vector<8x128xf32> to vector<8x32xf32>
    %456 = vector.extract_strided_slice %451 {offsets = [0, 96], sizes = [8, 32], strides = [1, 1]} : vector<8x128xf32> to vector<8x32xf32>
    %457 = arith.mulf %454, %404 : vector<8x32xf32>
    %458 = arith.mulf %453, %455 : vector<8x32xf32>
    %459 = arith.addf %457, %458 : vector<8x32xf32>
    %460 = math.tanh %459 : vector<8x32xf32>
    %461 = arith.mulf %456, %460 : vector<8x32xf32>
    %462 = arith.mulf %440, %123 : vector<8x32xf32>
    %463 = arith.subf %461, %462 : vector<8x32xf32>
    %464 = arith.addf %409, %463 : vector<8x32xf32>
    %c48_123 = arith.constant 48 : index
    %c0_124 = arith.constant 0 : index
    %465 = vector.load %arg16[%c48_123, %c0_124] : memref<64x128xf32, #tpu.memory_space<vmem>>, vector<8x128xf32>
    %466 = arith.cmpf ogt, %434, %120 : vector<8x32xf32>
    %467 = arith.extui %466 : vector<8x32xi1> to vector<8x32xi32>
    %468 = arith.sitofp %467 : vector<8x32xi32> to vector<8x32xf32>
    %c0_125 = arith.constant 0 : index
    %c0_126 = arith.constant 0 : index
    %469 = vector.load %arg7[%c0_125, %c0_126] : memref<32x128xf32, #tpu.memory_space<vmem>>, vector<32x128xf32>
    %cst_127 = arith.constant dense<0.000000e+00> : vector<8x128xf32>
    %470 = tpu.matmul %434, %469, %cst_127 {dimension_numbers = #tpu.dot_dimension_numbers<[1], [0], [0], [1], [0, 0, 1, 1], [], []>} : vector<8x32xf32>, vector<32x128xf32>, vector<8x128xf32> -> vector<8x128xf32>
    %471 = arith.addf %465, %470 : vector<8x128xf32>
    %472 = arith.addf %471, %126 : vector<8x128xf32>
    %473 = arith.negf %472 : vector<8x128xf32>
    %474 = math.exp %473 : vector<8x128xf32>
    %cst_128 = arith.constant 1.000000e+00 : f32
    %475 = vector.broadcast %cst_128 : f32 to vector<8x128xf32>
    %476 = arith.addf %475, %474 : vector<8x128xf32>
    %477 = arith.divf %475, %476 : vector<8x128xf32>
    %478 = math.tanh %472 : vector<8x128xf32>
    %479 = vector.extract_strided_slice %477 {offsets = [0, 0], sizes = [8, 32], strides = [1, 1]} : vector<8x128xf32> to vector<8x32xf32>
    %480 = vector.extract_strided_slice %477 {offsets = [0, 32], sizes = [8, 32], strides = [1, 1]} : vector<8x128xf32> to vector<8x32xf32>
    %481 = vector.extract_strided_slice %478 {offsets = [0, 64], sizes = [8, 32], strides = [1, 1]} : vector<8x128xf32> to vector<8x32xf32>
    %482 = vector.extract_strided_slice %477 {offsets = [0, 96], sizes = [8, 32], strides = [1, 1]} : vector<8x128xf32> to vector<8x32xf32>
    %483 = arith.mulf %480, %430 : vector<8x32xf32>
    %484 = arith.mulf %479, %481 : vector<8x32xf32>
    %485 = arith.addf %483, %484 : vector<8x32xf32>
    %486 = math.tanh %485 : vector<8x32xf32>
    %487 = arith.mulf %482, %486 : vector<8x32xf32>
    %488 = arith.mulf %468, %120 : vector<8x32xf32>
    %489 = arith.subf %487, %488 : vector<8x32xf32>
    %490 = arith.cmpf ogt, %489, %120 : vector<8x32xf32>
    %491 = arith.extui %490 : vector<8x32xi1> to vector<8x32xi32>
    %492 = arith.sitofp %491 : vector<8x32xi32> to vector<8x32xf32>
    %493 = arith.cmpf ogt, %463, %123 : vector<8x32xf32>
    %494 = arith.extui %493 : vector<8x32xi1> to vector<8x32xi32>
    %495 = arith.sitofp %494 : vector<8x32xi32> to vector<8x32xf32>
    %c0_129 = arith.constant 0 : index
    %c0_130 = arith.constant 0 : index
    %496 = vector.load %arg9[%c0_129, %c0_130] : memref<32x128xf32, #tpu.memory_space<vmem>>, vector<32x128xf32>
    %cst_131 = arith.constant dense<0.000000e+00> : vector<8x128xf32>
    %497 = tpu.matmul %492, %496, %cst_131 {dimension_numbers = #tpu.dot_dimension_numbers<[1], [0], [0], [1], [0, 0, 1, 1], [], []>} : vector<8x32xf32>, vector<32x128xf32>, vector<8x128xf32> -> vector<8x128xf32>
    %c0_132 = arith.constant 0 : index
    %c0_133 = arith.constant 0 : index
    %498 = vector.load %arg10[%c0_132, %c0_133] : memref<32x128xf32, #tpu.memory_space<vmem>>, vector<32x128xf32>
    %cst_134 = arith.constant dense<0.000000e+00> : vector<8x128xf32>
    %499 = tpu.matmul %463, %498, %cst_134 {dimension_numbers = #tpu.dot_dimension_numbers<[1], [0], [0], [1], [0, 0, 1, 1], [], []>} : vector<8x32xf32>, vector<32x128xf32>, vector<8x128xf32> -> vector<8x128xf32>
    %500 = arith.addf %497, %499 : vector<8x128xf32>
    %501 = arith.addf %500, %129 : vector<8x128xf32>
    %502 = arith.negf %501 : vector<8x128xf32>
    %503 = math.exp %502 : vector<8x128xf32>
    %cst_135 = arith.constant 1.000000e+00 : f32
    %504 = vector.broadcast %cst_135 : f32 to vector<8x128xf32>
    %505 = arith.addf %504, %503 : vector<8x128xf32>
    %506 = arith.divf %504, %505 : vector<8x128xf32>
    %507 = math.tanh %501 : vector<8x128xf32>
    %508 = vector.extract_strided_slice %506 {offsets = [0, 0], sizes = [8, 32], strides = [1, 1]} : vector<8x128xf32> to vector<8x32xf32>
    %509 = vector.extract_strided_slice %506 {offsets = [0, 32], sizes = [8, 32], strides = [1, 1]} : vector<8x128xf32> to vector<8x32xf32>
    %510 = vector.extract_strided_slice %507 {offsets = [0, 64], sizes = [8, 32], strides = [1, 1]} : vector<8x128xf32> to vector<8x32xf32>
    %511 = vector.extract_strided_slice %506 {offsets = [0, 96], sizes = [8, 32], strides = [1, 1]} : vector<8x128xf32> to vector<8x32xf32>
    %512 = arith.mulf %509, %459 : vector<8x32xf32>
    %513 = arith.mulf %508, %510 : vector<8x32xf32>
    %514 = arith.addf %512, %513 : vector<8x32xf32>
    %515 = math.tanh %514 : vector<8x32xf32>
    %516 = arith.mulf %511, %515 : vector<8x32xf32>
    %517 = arith.mulf %495, %123 : vector<8x32xf32>
    %518 = arith.subf %516, %517 : vector<8x32xf32>
    %519 = arith.addf %464, %518 : vector<8x32xf32>
    %c56_136 = arith.constant 56 : index
    %c0_137 = arith.constant 0 : index
    %520 = vector.load %arg16[%c56_136, %c0_137] : memref<64x128xf32, #tpu.memory_space<vmem>>, vector<8x128xf32>
    %521 = arith.cmpf ogt, %489, %120 : vector<8x32xf32>
    %522 = arith.extui %521 : vector<8x32xi1> to vector<8x32xi32>
    %523 = arith.sitofp %522 : vector<8x32xi32> to vector<8x32xf32>
    %c0_138 = arith.constant 0 : index
    %c0_139 = arith.constant 0 : index
    %524 = vector.load %arg7[%c0_138, %c0_139] : memref<32x128xf32, #tpu.memory_space<vmem>>, vector<32x128xf32>
    %cst_140 = arith.constant dense<0.000000e+00> : vector<8x128xf32>
    %525 = tpu.matmul %489, %524, %cst_140 {dimension_numbers = #tpu.dot_dimension_numbers<[1], [0], [0], [1], [0, 0, 1, 1], [], []>} : vector<8x32xf32>, vector<32x128xf32>, vector<8x128xf32> -> vector<8x128xf32>
    %526 = arith.addf %520, %525 : vector<8x128xf32>
    %527 = arith.addf %526, %126 : vector<8x128xf32>
    %528 = arith.negf %527 : vector<8x128xf32>
    %529 = math.exp %528 : vector<8x128xf32>
    %cst_141 = arith.constant 1.000000e+00 : f32
    %530 = vector.broadcast %cst_141 : f32 to vector<8x128xf32>
    %531 = arith.addf %530, %529 : vector<8x128xf32>
    %532 = arith.divf %530, %531 : vector<8x128xf32>
    %533 = math.tanh %527 : vector<8x128xf32>
    %534 = vector.extract_strided_slice %532 {offsets = [0, 0], sizes = [8, 32], strides = [1, 1]} : vector<8x128xf32> to vector<8x32xf32>
    %535 = vector.extract_strided_slice %532 {offsets = [0, 32], sizes = [8, 32], strides = [1, 1]} : vector<8x128xf32> to vector<8x32xf32>
    %536 = vector.extract_strided_slice %533 {offsets = [0, 64], sizes = [8, 32], strides = [1, 1]} : vector<8x128xf32> to vector<8x32xf32>
    %537 = vector.extract_strided_slice %532 {offsets = [0, 96], sizes = [8, 32], strides = [1, 1]} : vector<8x128xf32> to vector<8x32xf32>
    %538 = arith.mulf %535, %485 : vector<8x32xf32>
    %539 = arith.mulf %534, %536 : vector<8x32xf32>
    %540 = arith.addf %538, %539 : vector<8x32xf32>
    %541 = math.tanh %540 : vector<8x32xf32>
    %542 = arith.mulf %537, %541 : vector<8x32xf32>
    %543 = arith.mulf %523, %120 : vector<8x32xf32>
    %544 = arith.subf %542, %543 : vector<8x32xf32>
    %545 = arith.cmpf ogt, %544, %120 : vector<8x32xf32>
    %546 = arith.extui %545 : vector<8x32xi1> to vector<8x32xi32>
    %547 = arith.sitofp %546 : vector<8x32xi32> to vector<8x32xf32>
    %548 = arith.cmpf ogt, %518, %123 : vector<8x32xf32>
    %549 = arith.extui %548 : vector<8x32xi1> to vector<8x32xi32>
    %550 = arith.sitofp %549 : vector<8x32xi32> to vector<8x32xf32>
    %c0_142 = arith.constant 0 : index
    %c0_143 = arith.constant 0 : index
    %551 = vector.load %arg9[%c0_142, %c0_143] : memref<32x128xf32, #tpu.memory_space<vmem>>, vector<32x128xf32>
    %cst_144 = arith.constant dense<0.000000e+00> : vector<8x128xf32>
    %552 = tpu.matmul %547, %551, %cst_144 {dimension_numbers = #tpu.dot_dimension_numbers<[1], [0], [0], [1], [0, 0, 1, 1], [], []>} : vector<8x32xf32>, vector<32x128xf32>, vector<8x128xf32> -> vector<8x128xf32>
    %c0_145 = arith.constant 0 : index
    %c0_146 = arith.constant 0 : index
    %553 = vector.load %arg10[%c0_145, %c0_146] : memref<32x128xf32, #tpu.memory_space<vmem>>, vector<32x128xf32>
    %cst_147 = arith.constant dense<0.000000e+00> : vector<8x128xf32>
    %554 = tpu.matmul %518, %553, %cst_147 {dimension_numbers = #tpu.dot_dimension_numbers<[1], [0], [0], [1], [0, 0, 1, 1], [], []>} : vector<8x32xf32>, vector<32x128xf32>, vector<8x128xf32> -> vector<8x128xf32>
    %555 = arith.addf %552, %554 : vector<8x128xf32>
    %556 = arith.addf %555, %129 : vector<8x128xf32>
    %557 = arith.negf %556 : vector<8x128xf32>
    %558 = math.exp %557 : vector<8x128xf32>
    %cst_148 = arith.constant 1.000000e+00 : f32
    %559 = vector.broadcast %cst_148 : f32 to vector<8x128xf32>
    %560 = arith.addf %559, %558 : vector<8x128xf32>
    %561 = arith.divf %559, %560 : vector<8x128xf32>
    %562 = math.tanh %556 : vector<8x128xf32>
    %563 = vector.extract_strided_slice %561 {offsets = [0, 0], sizes = [8, 32], strides = [1, 1]} : vector<8x128xf32> to vector<8x32xf32>
    %564 = vector.extract_strided_slice %561 {offsets = [0, 32], sizes = [8, 32], strides = [1, 1]} : vector<8x128xf32> to vector<8x32xf32>
    %565 = vector.extract_strided_slice %562 {offsets = [0, 64], sizes = [8, 32], strides = [1, 1]} : vector<8x128xf32> to vector<8x32xf32>
    %566 = vector.extract_strided_slice %561 {offsets = [0, 96], sizes = [8, 32], strides = [1, 1]} : vector<8x128xf32> to vector<8x32xf32>
    %567 = arith.mulf %564, %514 : vector<8x32xf32>
    %568 = arith.mulf %563, %565 : vector<8x32xf32>
    %569 = arith.addf %567, %568 : vector<8x32xf32>
    %570 = math.tanh %569 : vector<8x32xf32>
    %571 = arith.mulf %566, %570 : vector<8x32xf32>
    %572 = arith.mulf %550, %123 : vector<8x32xf32>
    %573 = arith.subf %571, %572 : vector<8x32xf32>
    %574 = arith.addf %519, %573 : vector<8x32xf32>
    %cst_149 = arith.constant 1.250000e-01 : f32
    %575 = vector.broadcast %cst_149 : f32 to vector<8x32xf32>
    %576 = arith.mulf %574, %575 : vector<8x32xf32>
    %c0_150 = arith.constant 0 : index
    %c0_151 = arith.constant 0 : index
    %577 = vector.load %arg12[%c0_150, %c0_151] : memref<32x8xf32, #tpu.memory_space<vmem>>, vector<32x8xf32>
    %cst_152 = arith.constant dense<0.000000e+00> : vector<8x8xf32>
    %578 = tpu.matmul %576, %577, %cst_152 {dimension_numbers = #tpu.dot_dimension_numbers<[1], [0], [0], [1], [0, 0, 1, 1], [], []>} : vector<8x32xf32>, vector<32x8xf32>, vector<8x8xf32> -> vector<8x8xf32>
    %c0_153 = arith.constant 0 : index
    %c0_154 = arith.constant 0 : index
    %579 = vector.load %arg13[%c0_153, %c0_154] : memref<1x8xf32, #tpu.memory_space<vmem>>, vector<1x8xf32>
    %580 = vector.broadcast %579 : vector<1x8xf32> to vector<8x8xf32>
    %581 = arith.addf %578, %580 : vector<8x8xf32>
    %c0_155 = arith.constant 0 : index
    %c0_156 = arith.constant 0 : index
    %582 = vector.load %arg14[%c0_155, %c0_156] : memref<8x8xf32, #tpu.memory_space<vmem>>, vector<8x8xf32>
    tpu.vector_store %arg14[%c0_155, %c0_156], %581 {strides = array<i32>} : memref<8x8xf32, #tpu.memory_space<vmem>>, vector<8x8xf32>,
    return
  }
}

</mosaic_0001>

<llo_original>
// kernel: tpu_custom_call.1
$region0: #{tpu_custom_call.1}
  #allocation0 [shape = 'u32[]', space=smem, size = 0x4, offset = 0x4, fixed_abs, tag = 'smem constant byte address 0x4 - core index']
  #allocation1 [shape = 'u32[144,128]{1,0:T(1,128)}', space=vmem, size = 0x12000, scoped, tag = 'internal scratch']
  #allocation2 [shape = 'f32[64,64]{1,0:T(8,128)}', space=vmem, size = 0x8000, scoped, tag = 'scratch operand']
  #allocation3 [shape = 'f32[64,128]{1,0:T(8,128)}', space=vmem, size = 0x8000, scoped, tag = 'scratch operand']
  %s0 = inlined_call_operand.vmem [shape: f32[64,128], index: 0, kind: input, shape index: {}]
  %s1 = inlined_call_operand.vmem [shape: f32[128,64], index: 1, kind: input, shape index: {}]
  %s2 = inlined_call_operand.vmem [shape: f32[1,64], index: 2, kind: input, shape index: {}]
  %s3 = inlined_call_operand.vmem [shape: f32[1,64], index: 3, kind: input, shape index: {}]
  %s4 = inlined_call_operand.vmem [shape: f32[1,32], index: 4, kind: input, shape index: {}]
  %s5 = inlined_call_operand.vmem [shape: f32[1,32], index: 5, kind: input, shape index: {}]
  %s6 = inlined_call_operand.vmem [shape: f32[64,128], index: 6, kind: input, shape index: {}]
  %s7 = inlined_call_operand.vmem [shape: f32[32,128], index: 7, kind: input, shape index: {}]
  %s8 = inlined_call_operand.vmem [shape: f32[1,128], index: 8, kind: input, shape index: {}]
  %s9 = inlined_call_operand.vmem [shape: f32[32,128], index: 9, kind: input, shape index: {}]
  %s10 = inlined_call_operand.vmem [shape: f32[32,128], index: 10, kind: input, shape index: {}]
  %s11 = inlined_call_operand.vmem [shape: f32[1,128], index: 11, kind: input, shape index: {}]
  %s12 = inlined_call_operand.vmem [shape: f32[32,8], index: 12, kind: input, shape index: {}]
  %s13 = inlined_call_operand.vmem [shape: f32[1,8], index: 13, kind: input, shape index: {}]
  %s14 = inlined_call_operand.hbm [shape: f32[8,8], index: 14, kind: output, shape index: {}]
  %s15 = sld [smem:[#allocation0]]
  $region66: #{tpu_custom_call.1} parent=0
    _
  %s17 = ssub.s32 1, %s15
  %s18 = scalar_select 0, %s17, %s15
  $region1: #{tpu_custom_call.1} parent=0
    #allocation4 [shape = 'u8[4096]{0}', space=vmem, size = 0x1000, scoped, tag = 'output window, operand 0, single buffered']
    #allocation5 [shape = 's32[1]{0}', space=sflag, size = 0x4, scoped, tag = 'scoped memory for tpu_custom_call.1']
    %19 = vsyncpa [#allocation5], 0
    // Predicated region
    $region2: #{tpu_custom_call.1} parent=1 // pred_check
      _
    $region3: #{tpu_custom_call.1} parent=1 // pred_check_branch
      %21 = sbr.rel (0) target = $region5
    $region4: #{tpu_custom_call.1} parent=1 // pred_region
      _
    $region5: #{tpu_custom_call.1} parent=1 // pred_fallthru
      _
    // Predicated region
    $region6: #{tpu_custom_call.1} parent=1 // pred_check
      _
    $region7: #{tpu_custom_call.1} parent=1 // pred_check_branch
      %23 = sbr.rel (0) target = $region9
    $region8: #{tpu_custom_call.1} parent=1 // pred_region
      _
    $region9: #{tpu_custom_call.1} parent=1 // pred_fallthru
      _
    // Predicated region
    $region10: #{tpu_custom_call.1} parent=1 // pred_check
      _
    $region11: #{tpu_custom_call.1} parent=1 // pred_check_branch
      %25 = sbr.rel (0) target = $region13
    $region12: #{tpu_custom_call.1} parent=1 // pred_region
      _
    $region13: #{tpu_custom_call.1} parent=1 // pred_fallthru
      _
    // Predicated region
    $region14: #{tpu_custom_call.1} parent=1 // pred_check
      _
    $region15: #{tpu_custom_call.1} parent=1 // pred_check_branch
      %27 = sbr.rel (0) target = $region17
    $region16: #{tpu_custom_call.1} parent=1 // pred_region
      _
    $region17: #{tpu_custom_call.1} parent=1 // pred_fallthru
      _
    // Predicated region
    $region18: #{tpu_custom_call.1} parent=1 // pred_check
      _
    $region19: #{tpu_custom_call.1} parent=1 // pred_check_branch
      %29 = sbr.rel (0) target = $region21
    $region20: #{tpu_custom_call.1} parent=1 // pred_region
      _
    $region21: #{tpu_custom_call.1} parent=1 // pred_fallthru
      _
    // Predicated region
    $region22: #{tpu_custom_call.1} parent=1 // pred_check
      _
    $region23: #{tpu_custom_call.1} parent=1 // pred_check_branch
      %31 = sbr.rel (0) target = $region25
    $region24: #{tpu_custom_call.1} parent=1 // pred_region
      _
    $region25: #{tpu_custom_call.1} parent=1 // pred_fallthru
      _
    // Predicated region
    $region26: #{tpu_custom_call.1} parent=1 // pred_check
      _
    $region27: #{tpu_custom_call.1} parent=1 // pred_check_branch
      %33 = sbr.rel (0) target = $region29
    $region28: #{tpu_custom_call.1} parent=1 // pred_region
      _
    $region29: #{tpu_custom_call.1} parent=1 // pred_fallthru
      _
    // Predicated region
    $region30: #{tpu_custom_call.1} parent=1 // pred_check
      _
    $region31: #{tpu_custom_call.1} parent=1 // pred_check_branch
      %35 = sbr.rel (0) target = $region33
    $region32: #{tpu_custom_call.1} parent=1 // pred_region
      _
    $region33: #{tpu_custom_call.1} parent=1 // pred_fallthru
      _
    // Predicated region
    $region34: #{tpu_custom_call.1} parent=1 // pred_check
      _
    $region35: #{tpu_custom_call.1} parent=1 // pred_check_branch
      %37 = sbr.rel (0) target = $region37
    $region36: #{tpu_custom_call.1} parent=1 // pred_region
      _
    $region37: #{tpu_custom_call.1} parent=1 // pred_fallthru
      _
    // Predicated region
    $region38: #{tpu_custom_call.1} parent=1 // pred_check
      _
    $region39: #{tpu_custom_call.1} parent=1 // pred_check_branch
      %39 = sbr.rel (0) target = $region41
    $region40: #{tpu_custom_call.1} parent=1 // pred_region
      _
    $region41: #{tpu_custom_call.1} parent=1 // pred_fallthru
      _
    // Predicated region
    $region42: #{tpu_custom_call.1} parent=1 // pred_check
      _
    $region43: #{tpu_custom_call.1} parent=1 // pred_check_branch
      %41 = sbr.rel (0) target = $region45
    $region44: #{tpu_custom_call.1} parent=1 // pred_region
      _
    $region45: #{tpu_custom_call.1} parent=1 // pred_fallthru
      _
    // Predicated region
    $region46: #{tpu_custom_call.1} parent=1 // pred_check
      _
    $region47: #{tpu_custom_call.1} parent=1 // pred_check_branch
      %43 = sbr.rel (0) target = $region49
    $region48: #{tpu_custom_call.1} parent=1 // pred_region
      _
    $region49: #{tpu_custom_call.1} parent=1 // pred_fallthru
      _
    // Predicated region
    $region50: #{tpu_custom_call.1} parent=1 // pred_check
      _
    $region51: #{tpu_custom_call.1} parent=1 // pred_check_branch
      %45 = sbr.rel (0) target = $region53
    $region52: #{tpu_custom_call.1} parent=1 // pred_region
      _
    $region53: #{tpu_custom_call.1} parent=1 // pred_fallthru
      _
    // Predicated region
    $region54: #{tpu_custom_call.1} parent=1 // pred_check
      _
    $region55: #{tpu_custom_call.1} parent=1 // pred_check_branch
      %47 = sbr.rel (0) target = $region57
    $region56: #{tpu_custom_call.1} parent=1 // pred_region
      _
    $region57: #{tpu_custom_call.1} parent=1 // pred_fallthru
      _
    %v48 = vld [vmem:[%s0] sm:$0xff]
    %v49 = vld [vmem:[%s0 + $0x8] sm:$0xff]
    %v50 = vld [vmem:[%s0 + $0x10] sm:$0xff]
    %v51 = vld [vmem:[%s0 + $0x18] sm:$0xff]
    %v52 = vld [vmem:[%s0 + $0x20] sm:$0xff]
    %v53 = vld [vmem:[%s0 + $0x28] sm:$0xff]
    %v54 = vld [vmem:[%s0 + $0x30] sm:$0xff]
    %v55 = vld [vmem:[%s0 + $0x38] sm:$0xff]
    %v56 = vld [vmem:[%s1] sm:$0xff]
    %v57 = vld [vmem:[%s1 + $0x8] sm:$0xff]
    %v58 = vld [vmem:[%s1 + $0x10] sm:$0xff]
    %v59 = vld [vmem:[%s1 + $0x18] sm:$0xff]
    %v60 = vld [vmem:[%s1 + $0x20] sm:$0xff]
    %v61 = vld [vmem:[%s1 + $0x28] sm:$0xff]
    %v62 = vld [vmem:[%s1 + $0x30] sm:$0xff]
    %v63 = vld [vmem:[%s1 + $0x38] sm:$0xff]
    %v64 = vld [vmem:[%s1 + $0x40] sm:$0xff]
    %v65 = vld [vmem:[%s1 + $0x48] sm:$0xff]
    %v66 = vld [vmem:[%s1 + $0x50] sm:$0xff]
    %v67 = vld [vmem:[%s1 + $0x58] sm:$0xff]
    %v68 = vld [vmem:[%s1 + $0x60] sm:$0xff]
    %v69 = vld [vmem:[%s1 + $0x68] sm:$0xff]
    %v70 = vld [vmem:[%s1 + $0x70] sm:$0xff]
    %v71 = vld [vmem:[%s1 + $0x78] sm:$0xff]
    %v72 = vld [vmem:[%s2] sm:$0x1]
    %v74 = vlaneseq
    %v75 = vshrl.u32 %v74, 7
    %v76 = vsub.s32 0, %v75
    %v77 = vrot.slane %v72, %v76
    %79 = vmatprep.subr.mxu0 0.0
    %80 = vmatpush1.msra.mxu0 %v56
    %81 = vmatprep.subr.mxu0 0.0
    %82 = vmatpush1.msra.mxu0 %v57
    %83 = vmatprep.subr.mxu0 0.0
    %84 = vmatpush1.msra.mxu0 %v58
    %85 = vmatprep.subr.mxu0 0.0
    %86 = vmatpush1.msra.mxu0 %v59
    %87 = vmatprep.subr.mxu0 0.0
    %88 = vmatpush1.msra.mxu0 %v60
    %89 = vmatprep.subr.mxu0 0.0
    %90 = vmatpush1.msra.mxu0 %v61
    %91 = vmatprep.subr.mxu0 0.0
    %92 = vmatpush1.msra.mxu0 %v62
    %93 = vmatprep.subr.mxu0 0.0
    %94 = vmatpush1.msra.mxu0 %v63
    %95 = vmatprep.subr.mxu0 0.0
    %96 = vmatpush1.msra.mxu0 %v64
    %97 = vmatprep.subr.mxu0 0.0
    %98 = vmatpush1.msra.mxu0 %v65
    %99 = vmatprep.subr.mxu0 0.0
    %100 = vmatpush1.msra.mxu0 %v66
    %101 = vmatprep.subr.mxu0 0.0
    %102 = vmatpush1.msra.mxu0 %v67
    %103 = vmatprep.subr.mxu0 0.0
    %104 = vmatpush1.msra.mxu0 %v68
    %105 = vmatprep.subr.mxu0 0.0
    %106 = vmatpush1.msra.mxu0 %v69
    %107 = vmatprep.subr.mxu0 0.0
    %108 = vmatpush1.msra.mxu0 %v70
    %109 = vmatprep.subr.mxu0 0.0
    %110 = vmatpush1.msra.mxu0 %v71
    %111 = vmatprep.subr.mxu0 0.0
    %112 = vmatpush1.msra.mxu0 0.0
    %113 = vmatprep.subr.mxu0 0.0
    %114 = vmatpush1.msra.mxu0 0.0
    %115 = vmatprep.subr.mxu0 0.0
    %116 = vmatpush1.msra.mxu0 0.0
    %117 = vmatprep.subr.mxu0 0.0
    %118 = vmatpush1.msra.mxu0 0.0
    %119 = vmatprep.subr.mxu0 0.0
    %120 = vmatpush1.msra.mxu0 0.0
    %121 = vmatprep.subr.mxu0 0.0
    %122 = vmatpush1.msra.mxu0 0.0
    %123 = vmatprep.subr.mxu0 0.0
    %124 = vmatpush1.msra.mxu0 0.0
    %125 = vmatprep.subr.mxu0 0.0
    %126 = vmatpush1.msra.mxu0 0.0
    %127 = vmatprep.subr.mxu0 0.0
    %128 = vmatpush1.msra.mxu0 0.0
    %129 = vmatprep.subr.mxu0 0.0
    %130 = vmatpush1.msra.mxu0 0.0
    %131 = vmatprep.subr.mxu0 0.0
    %132 = vmatpush1.msra.mxu0 0.0
    %133 = vmatprep.subr.mxu0 0.0
    %134 = vmatpush1.msra.mxu0 0.0
    %135 = vmatprep.subr.mxu0 0.0
    %136 = vmatpush1.msra.mxu0 0.0
    %137 = vmatprep.subr.mxu0 0.0
    %138 = vmatpush1.msra.mxu0 0.0
    %139 = vmatprep.subr.mxu0 0.0
    %140 = vmatpush1.msra.mxu0 0.0
    %141 = vmatprep.subr.mxu0 0.0
    %142 = vmatpush1.msra.mxu0 0.0
    %143 = vmatprep.mubr.f32.mxu0 0.0
    %144 = vmatmul.mubr.f32.gmra.mrb[0].mxu0 %v48
    %v145 = vpop.f32.mrb[0].mxu0
    %v146 = vadd.f32 %v77, %v145
    %v147 = vpop.f32.mrb[0].mxu0
    %148 = vmatprep.mubr.f32.mxu0 0.0
    %149 = vmatmul.mubr.f32.gmra.mrb[0].mxu0 %v49
    %v150 = vpop.f32.mrb[0].mxu0
    %v151 = vadd.f32 %v77, %v150
    %v152 = vpop.f32.mrb[0].mxu0
    %153 = vmatprep.mubr.f32.mxu0 0.0
    %154 = vmatmul.mubr.f32.gmra.mrb[0].mxu0 %v50
    %v155 = vpop.f32.mrb[0].mxu0
    %v156 = vadd.f32 %v77, %v155
    %v157 = vpop.f32.mrb[0].mxu0
    %158 = vmatprep.mubr.f32.mxu0 0.0
    %159 = vmatmul.mubr.f32.gmra.mrb[0].mxu0 %v51
    %v160 = vpop.f32.mrb[0].mxu0
    %v161 = vadd.f32 %v77, %v160
    %v162 = vpop.f32.mrb[0].mxu0
    %163 = vmatprep.mubr.f32.mxu0 0.0
    %164 = vmatmul.mubr.f32.gmra.mrb[0].mxu0 %v52
    %v165 = vpop.f32.mrb[0].mxu0
    %v166 = vadd.f32 %v77, %v165
    %v167 = vpop.f32.mrb[0].mxu0
    %168 = vmatprep.mubr.f32.mxu0 0.0
    %169 = vmatmul.mubr.f32.gmra.mrb[0].mxu0 %v53
    %v170 = vpop.f32.mrb[0].mxu0
    %v171 = vadd.f32 %v77, %v170
    %v172 = vpop.f32.mrb[0].mxu0
    %173 = vmatprep.mubr.f32.mxu0 0.0
    %174 = vmatmul.mubr.f32.gmra.mrb[0].mxu0 %v54
    %v175 = vpop.f32.mrb[0].mxu0
    %v176 = vadd.f32 %v77, %v175
    %v177 = vpop.f32.mrb[0].mxu0
    %178 = vmatprep.mubr.f32.mxu0 0.0
    %179 = vmatmul.mubr.f32.gmra.mrb[0].mxu0 %v55
    %v180 = vpop.f32.mrb[0].mxu0
    %v181 = vadd.f32 %v77, %v180
    %v182 = vpop.f32.mrb[0].mxu0
    %183 = vdwg.mxu0
    %v184 = vld [vmem:[%s3] sm:$0x1]
    %v186 = vlaneseq
    %v187 = vshrl.u32 %v186, 7
    %v188 = vsub.s32 0, %v187
    %v189 = vrot.slane %v184, %v188
    %vm191 = vcmp.gt.f32.partialorder 0.0, %v189
    %v192 = vsel %vm191, 1, 0
    %v193 = vcvt.s32.f32 %v192
    %v194 = vadd.f32 %v146, 0.0
    %v195 = vmul.f32 %v193, %v189
    %v196 = vsub.f32 %v194, %v195
    %vm197 = vcmp.gt.f32.partialorder %v196, %v189
    %v198 = vsel %vm197, 1, 0
    %v199 = vcvt.s32.f32 %v198
    %vm200 = vcmask 523264
    %201 = vst.msk [vmem:[#allocation2] sm:$0xff] %vm200, %v199
    %v202 = vmul.f32 %v196, 0.9
    %v203 = vadd.f32 %v202, %v151
    %v204 = vmul.f32 %v199, %v189
    %v205 = vsub.f32 %v203, %v204
    %vm206 = vcmp.gt.f32.partialorder %v205, %v189
    %v207 = vsel %vm206, 1, 0
    %v208 = vcvt.s32.f32 %v207
    %209 = vst.msk [vmem:[#allocation2 + $0x8] sm:$0xff] %vm200, %v208
    %v210 = vmul.f32 %v205, 0.9
    %v211 = vadd.f32 %v210, %v156
    %v212 = vmul.f32 %v208, %v189
    %v213 = vsub.f32 %v211, %v212
    %vm214 = vcmp.gt.f32.partialorder %v213, %v189
    %v215 = vsel %vm214, 1, 0
    %v216 = vcvt.s32.f32 %v215
    %217 = vst.msk [vmem:[#allocation2 + $0x10] sm:$0xff] %vm200, %v216
    %v218 = vmul.f32 %v213, 0.9
    %v219 = vadd.f32 %v218, %v161
    %v220 = vmul.f32 %v216, %v189
    %v221 = vsub.f32 %v219, %v220
    %vm222 = vcmp.gt.f32.partialorder %v221, %v189
    %v223 = vsel %vm222, 1, 0
    %v224 = vcvt.s32.f32 %v223
    %225 = vst.msk [vmem:[#allocation2 + $0x18] sm:$0xff] %vm200, %v224
    %v226 = vmul.f32 %v221, 0.9
    %v227 = vadd.f32 %v226, %v166
    %v228 = vmul.f32 %v224, %v189
    %v229 = vsub.f32 %v227, %v228
    %vm230 = vcmp.gt.f32.partialorder %v229, %v189
    %v231 = vsel %vm230, 1, 0
    %v232 = vcvt.s32.f32 %v231
    %233 = vst.msk [vmem:[#allocation2 + $0x20] sm:$0xff] %vm200, %v232
    %v234 = vmul.f32 %v229, 0.9
    %v235 = vadd.f32 %v234, %v171
    %v236 = vmul.f32 %v232, %v189
    %v237 = vsub.f32 %v235, %v236
    %vm238 = vcmp.gt.f32.partialorder %v237, %v189
    %v239 = vsel %vm238, 1, 0
    %v240 = vcvt.s32.f32 %v239
    %241 = vst.msk [vmem:[#allocation2 + $0x28] sm:$0xff] %vm200, %v240
    %v242 = vmul.f32 %v237, 0.9
    %v243 = vadd.f32 %v242, %v176
    %v244 = vmul.f32 %v240, %v189
    %v245 = vsub.f32 %v243, %v244
    %vm246 = vcmp.gt.f32.partialorder %v245, %v189
    %v247 = vsel %vm246, 1, 0
    %v248 = vcvt.s32.f32 %v247
    %249 = vst.msk [vmem:[#allocation2 + $0x30] sm:$0xff] %vm200, %v248
    %v250 = vmul.f32 %v245, 0.9
    %v251 = vadd.f32 %v250, %v181
    %v252 = vmul.f32 %v248, %v189
    %v253 = vsub.f32 %v251, %v252
    %vm254 = vcmp.gt.f32.partialorder %v253, %v189
    %v255 = vsel %vm254, 1, 0
    %v256 = vcvt.s32.f32 %v255
    %257 = vst.msk [vmem:[#allocation2 + $0x38] sm:$0xff] %vm200, %v256
    %v258 = vld [vmem:[#allocation2] sm:$0xff]
    %v259 = vld [vmem:[#allocation2 + $0x8] sm:$0xff]
    %v260 = vld [vmem:[#allocation2 + $0x10] sm:$0xff]
    %v261 = vld [vmem:[#allocation2 + $0x18] sm:$0xff]
    %v262 = vld [vmem:[#allocation2 + $0x20] sm:$0xff]
    %v263 = vld [vmem:[#allocation2 + $0x28] sm:$0xff]
    %v264 = vld [vmem:[#allocation2 + $0x30] sm:$0xff]
    %v265 = vld [vmem:[#allocation2 + $0x38] sm:$0xff]
    %v266 = vld [vmem:[%s6] sm:$0xff]
    %v267 = vld [vmem:[%s6 + $0x8] sm:$0xff]
    %v268 = vld [vmem:[%s6 + $0x10] sm:$0xff]
    %v269 = vld [vmem:[%s6 + $0x18] sm:$0xff]
    %v270 = vld [vmem:[%s6 + $0x20] sm:$0xff]
    %v271 = vld [vmem:[%s6 + $0x28] sm:$0xff]
    %v272 = vld [vmem:[%s6 + $0x30] sm:$0xff]
    %v273 = vld [vmem:[%s6 + $0x38] sm:$0xff]
    %v275 = vsel %vm200, %v258, 0
    %v278 = vsel %vm200, %v259, 0
    %v281 = vsel %vm200, %v260, 0
    %v284 = vsel %vm200, %v261, 0
    %v287 = vsel %vm200, %v262, 0
    %v290 = vsel %vm200, %v263, 0
    %v293 = vsel %vm200, %v264, 0
    %v296 = vsel %vm200, %v265, 0
    %298 = vmatprep.subr.mxu0 0.0
    %299 = vmatpush1.msra.mxu0 %v266
    %300 = vmatprep.subr.mxu0 0.0
    %301 = vmatpush1.msra.mxu0 %v267
    %302 = vmatprep.subr.mxu0 0.0
    %303 = vmatpush1.msra.mxu0 %v268
    %304 = vmatprep.subr.mxu0 0.0
    %305 = vmatpush1.msra.mxu0 %v269
    %306 = vmatprep.subr.mxu0 0.0
    %307 = vmatpush1.msra.mxu0 %v270
    %308 = vmatprep.subr.mxu0 0.0
    %309 = vmatpush1.msra.mxu0 %v271
    %310 = vmatprep.subr.mxu0 0.0
    %311 = vmatpush1.msra.mxu0 %v272
    %312 = vmatprep.subr.mxu0 0.0
    %313 = vmatpush1.msra.mxu0 %v273
    %314 = vmatprep.subr.mxu0 0.0
    %315 = vmatpush1.msra.mxu0 0.0
    %316 = vmatprep.subr.mxu0 0.0
    %317 = vmatpush1.msra.mxu0 0.0
    %318 = vmatprep.subr.mxu0 0.0
    %319 = vmatpush1.msra.mxu0 0.0
    %320 = vmatprep.subr.mxu0 0.0
    %321 = vmatpush1.msra.mxu0 0.0
    %322 = vmatprep.subr.mxu0 0.0
    %323 = vmatpush1.msra.mxu0 0.0
    %324 = vmatprep.subr.mxu0 0.0
    %325 = vmatpush1.msra.mxu0 0.0
    %326 = vmatprep.subr.mxu0 0.0
    %327 = vmatpush1.msra.mxu0 0.0
    %328 = vmatprep.subr.mxu0 0.0
    %329 = vmatpush1.msra.mxu0 0.0
    %330 = vmatprep.subr.mxu0 0.0
    %331 = vmatpush1.msra.mxu0 0.0
    %332 = vmatprep.subr.mxu0 0.0
    %333 = vmatpush1.msra.mxu0 0.0
    %334 = vmatprep.subr.mxu0 0.0
    %335 = vmatpush1.msra.mxu0 0.0
    %336 = vmatprep.subr.mxu0 0.0
    %337 = vmatpush1.msra.mxu0 0.0
    %338 = vmatprep.subr.mxu0 0.0
    %339 = vmatpush1.msra.mxu0 0.0
    %340 = vmatprep.subr.mxu0 0.0
    %341 = vmatpush1.msra.mxu0 0.0
    %342 = vmatprep.subr.mxu0 0.0
    %343 = vmatpush1.msra.mxu0 0.0
    %344 = vmatprep.subr.mxu0 0.0
    %345 = vmatpush1.msra.mxu0 0.0
    %346 = vmatprep.subr.mxu0 0.0
    %347 = vmatpush1.msra.mxu0 0.0
    %348 = vmatprep.subr.mxu0 0.0
    %349 = vmatpush1.msra.mxu0 0.0
    %350 = vmatprep.subr.mxu0 0.0
    %351 = vmatpush1.msra.mxu0 0.0
    %352 = vmatprep.subr.mxu0 0.0
    %353 = vmatpush1.msra.mxu0 0.0
    %354 = vmatprep.subr.mxu0 0.0
    %355 = vmatpush1.msra.mxu0 0.0
    %356 = vmatprep.subr.mxu0 0.0
    %357 = vmatpush1.msra.mxu0 0.0
    %358 = vmatprep.subr.mxu0 0.0
    %359 = vmatpush1.msra.mxu0 0.0
    %360 = vmatprep.subr.mxu0 0.0
    %361 = vmatpush1.msra.mxu0 0.0
    %362 = vmatprep.mubr.f32.mxu0 0.0
    %363 = vmatmul.mubr.f32.gmra.mrb[0].mxu0 %v275
    %v364 = vpop.f32.mrb[0].mxu0
    %v365 = vadd.f32 0.0, %v364
    %v366 = vpop.f32.mrb[0].mxu0
    %367 = vmatprep.mubr.f32.mxu0 0.0
    %368 = vmatmul.mubr.f32.gmra.mrb[0].mxu0 %v278
    %v369 = vpop.f32.mrb[0].mxu0
    %v370 = vadd.f32 0.0, %v369
    %v371 = vpop.f32.mrb[0].mxu0
    %372 = vmatprep.mubr.f32.mxu0 0.0
    %373 = vmatmul.mubr.f32.gmra.mrb[0].mxu0 %v281
    %v374 = vpop.f32.mrb[0].mxu0
    %v375 = vadd.f32 0.0, %v374
    %v376 = vpop.f32.mrb[0].mxu0
    %377 = vmatprep.mubr.f32.mxu0 0.0
    %378 = vmatmul.mubr.f32.gmra.mrb[0].mxu0 %v284
    %v379 = vpop.f32.mrb[0].mxu0
    %v380 = vadd.f32 0.0, %v379
    %v381 = vpop.f32.mrb[0].mxu0
    %382 = vmatprep.mubr.f32.mxu0 0.0
    %383 = vmatmul.mubr.f32.gmra.mrb[0].mxu0 %v287
    %v384 = vpop.f32.mrb[0].mxu0
    %v385 = vadd.f32 0.0, %v384
    %v386 = vpop.f32.mrb[0].mxu0
    %387 = vmatprep.mubr.f32.mxu0 0.0
    %388 = vmatmul.mubr.f32.gmra.mrb[0].mxu0 %v290
    %v389 = vpop.f32.mrb[0].mxu0
    %v390 = vadd.f32 0.0, %v389
    %v391 = vpop.f32.mrb[0].mxu0
    %392 = vmatprep.mubr.f32.mxu0 0.0
    %393 = vmatmul.mubr.f32.gmra.mrb[0].mxu0 %v293
    %v394 = vpop.f32.mrb[0].mxu0
    %v395 = vadd.f32 0.0, %v394
    %v396 = vpop.f32.mrb[0].mxu0
    %397 = vmatprep.mubr.f32.mxu0 0.0
    %398 = vmatmul.mubr.f32.gmra.mrb[0].mxu0 %v296
    %v399 = vpop.f32.mrb[0].mxu0
    %v400 = vadd.f32 0.0, %v399
    %v401 = vpop.f32.mrb[0].mxu0
    %402 = vdwg.mxu0
    %403 = vst [vmem:[#allocation3] sm:$0xff] %v365
    %404 = vst [vmem:[#allocation3 + $0x8] sm:$0xff] %v370
    %405 = vst [vmem:[#allocation3 + $0x10] sm:$0xff] %v375
    %406 = vst [vmem:[#allocation3 + $0x18] sm:$0xff] %v380
    %407 = vst [vmem:[#allocation3 + $0x20] sm:$0xff] %v385
    %408 = vst [vmem:[#allocation3 + $0x28] sm:$0xff] %v390
    %409 = vst [vmem:[#allocation3 + $0x30] sm:$0xff] %v395
    %410 = vst [vmem:[#allocation3 + $0x38] sm:$0xff] %v400
    %v411 = vld [vmem:[%s4] sm:$0x1]
    %v413 = vlaneseq
    %v414 = vshrl.u32 %v413, 7
    %v415 = vsub.s32 0, %v414
    %v416 = vrot.slane %v411, %v415
    %v418 = vld [vmem:[%s5] sm:$0x1]
    %v420 = vlaneseq
    %v421 = vshrl.u32 %v420, 7
    %v422 = vsub.s32 0, %v421
    %v423 = vrot.slane %v418, %v422
    %v425 = vld [vmem:[%s8] sm:$0x1]
    %v427 = vlaneseq
    %v428 = vshrl.u32 %v427, 7
    %v429 = vsub.s32 0, %v428
    %v430 = vrot.slane %v425, %v429
    %v432 = vld [vmem:[%s11] sm:$0x1]
    %v434 = vlaneseq
    %v435 = vshrl.u32 %v434, 7
    %v436 = vsub.s32 0, %v435
    %v437 = vrot.slane %v432, %v436
    %v439 = vld [vmem:[#allocation3] sm:$0xff]
    %vm440 = vcmp.gt.f32.partialorder 0.0, %v416
    %v441 = vsel %vm440, 1, 0
    %v442 = vcvt.s32.f32 %v441
    %v443 = vld [vmem:[%s7] sm:$0xff]
    %v444 = vld [vmem:[%s7 + $0x8] sm:$0xff]
    %v445 = vld [vmem:[%s7 + $0x10] sm:$0xff]
    %v446 = vld [vmem:[%s7 + $0x18] sm:$0xff]
    %vm447 = vcmask 261120
    %v449 = vsel %vm447, 0.0, 0
    %451 = vmatprep.subr.mxu0 0.0
    %452 = vmatpush1.msra.mxu0 %v443
    %453 = vmatprep.subr.mxu0 0.0
    %454 = vmatpush1.msra.mxu0 %v444
    %455 = vmatprep.subr.mxu0 0.0
    %456 = vmatpush1.msra.mxu0 %v445
    %457 = vmatprep.subr.mxu0 0.0
    %458 = vmatpush1.msra.mxu0 %v446
    %459 = vmatprep.subr.mxu0 0.0
    %460 = vmatpush1.msra.mxu0 0.0
    %461 = vmatprep.subr.mxu0 0.0
    %462 = vmatpush1.msra.mxu0 0.0
    %463 = vmatprep.subr.mxu0 0.0
    %464 = vmatpush1.msra.mxu0 0.0
    %465 = vmatprep.subr.mxu0 0.0
    %466 = vmatpush1.msra.mxu0 0.0
    %467 = vmatprep.subr.mxu0 0.0
    %468 = vmatpush1.msra.mxu0 0.0
    %469 = vmatprep.subr.mxu0 0.0
    %470 = vmatpush1.msra.mxu0 0.0
    %471 = vmatprep.subr.mxu0 0.0
    %472 = vmatpush1.msra.mxu0 0.0
    %473 = vmatprep.subr.mxu0 0.0
    %474 = vmatpush1.msra.mxu0 0.0
    %475 = vmatprep.subr.mxu0 0.0
    %476 = vmatpush1.msra.mxu0 0.0
    %477 = vmatprep.subr.mxu0 0.0
    %478 = vmatpush1.msra.mxu0 0.0
    %479 = vmatprep.subr.mxu0 0.0
    %480 = vmatpush1.msra.mxu0 0.0
    %481 = vmatprep.subr.mxu0 0.0
    %482 = vmatpush1.msra.mxu0 0.0
    %483 = vmatprep.subr.mxu0 0.0
    %484 = vmatpush1.msra.mxu0 0.0
    %485 = vmatprep.subr.mxu0 0.0
    %486 = vmatpush1.msra.mxu0 0.0
    %487 = vmatprep.subr.mxu0 0.0
    %488 = vmatpush1.msra.mxu0 0.0
    %489 = vmatprep.subr.mxu0 0.0
    %490 = vmatpush1.msra.mxu0 0.0
    %491 = vmatprep.subr.mxu0 0.0
    %492 = vmatpush1.msra.mxu0 0.0
    %493 = vmatprep.subr.mxu0 0.0
    %494 = vmatpush1.msra.mxu0 0.0
    %495 = vmatprep.subr.mxu0 0.0
    %496 = vmatpush1.msra.mxu0 0.0
    %497 = vmatprep.subr.mxu0 0.0
    %498 = vmatpush1.msra.mxu0 0.0
    %499 = vmatprep.subr.mxu0 0.0
    %500 = vmatpush1.msra.mxu0 0.0
    %501 = vmatprep.subr.mxu0 0.0
    %502 = vmatpush1.msra.mxu0 0.0
    %503 = vmatprep.subr.mxu0 0.0
    %504 = vmatpush1.msra.mxu0 0.0
    %505 = vmatprep.subr.mxu0 0.0
    %506 = vmatpush1.msra.mxu0 0.0
    %507 = vmatprep.subr.mxu0 0.0
    %508 = vmatpush1.msra.mxu0 0.0
    %509 = vmatprep.subr.mxu0 0.0
    %510 = vmatpush1.msra.mxu0 0.0
    %511 = vmatprep.subr.mxu0 0.0
    %512 = vmatpush1.msra.mxu0 0.0
    %513 = vmatprep.subr.mxu0 0.0
    %514 = vmatpush1.msra.mxu0 0.0
    %515 = vmatprep.mubr.f32.mxu0 0.0
    %516 = vmatmul.mubr.f32.gmra.mrb[0].mxu0 %v449
    %v517 = vpop.f32.mrb[0].mxu0
    %v518 = vadd.f32 0.0, %v517
    %v519 = vpop.f32.mrb[0].mxu0
    %520 = vdwg.mxu0
    %v521 = vadd.f32 %v439, %v518
    %v522 = vadd.f32 %v521, %v430
    %v523 = vxor.u32 %v522, 2147483648
    %v524 = vmul.f32 %v523, 1.442695
    %v525 = vpow.pop %v524
    %v526 = vadd.f32 %v525, 1.0
    %v527 = vrcp.pop %v526
    %v528 = vmul.f32 1.0, %v527
    %v529 = vtanh.pop %v522
    %v530 = vmul.f32 %v528, 0.0
    %532 = vrot.lane.b32.xlu0 %v529, 64
    %v533 = vpop.permute.xlu0 %532
    %v535 = vmul.f32 %v528, %v533
    %537 = vrot.lane.b32.xlu0 %v535, 32
    %v538 = vpop.permute.xlu0 %537
    %v540 = vadd.f32 %v530, %v538
    %v541 = vtanh.pop %v540
    %543 = vrot.lane.b32.xlu0 %v541, 64
    %v544 = vpop.permute.xlu0 %543
    %v546 = vmul.f32 %v528, %v544
    %v547 = vmul.f32 %v442, %v416
    %549 = vrot.lane.b32.xlu0 %v547, 96
    %v550 = vpop.permute.xlu0 %549
    %v552 = vsub.f32 %v546, %v550
    %553 = vrot.lane.b32.xlu0 %v416, 96
    %v554 = vpop.permute.xlu0 %553
    %vm556 = vcmp.gt.f32.partialorder %v552, %v554
    %v557 = vsel %vm556, 1, 0
    %v558 = vcvt.s32.f32 %v557
    %vm559 = vcmp.gt.f32.partialorder 0.0, %v423
    %v560 = vsel %vm559, 1, 0
    %v561 = vcvt.s32.f32 %v560
    %v562 = vld [vmem:[%s9] sm:$0xff]
    %v563 = vld [vmem:[%s9 + $0x8] sm:$0xff]
    %v564 = vld [vmem:[%s9 + $0x10] sm:$0xff]
    %v565 = vld [vmem:[%s9 + $0x18] sm:$0xff]
    %v566 = vld [vmem:[%s10] sm:$0xff]
    %v567 = vld [vmem:[%s10 + $0x8] sm:$0xff]
    %v568 = vld [vmem:[%s10 + $0x10] sm:$0xff]
    %v569 = vld [vmem:[%s10 + $0x18] sm:$0xff]
    %570 = vmatprep.subr.mxu0 0.0
    %571 = vmatpush1.msra.mxu0 %v566
    %572 = vmatprep.subr.mxu0 0.0
    %573 = vmatpush1.msra.mxu0 %v567
    %574 = vmatprep.subr.mxu0 0.0
    %575 = vmatpush1.msra.mxu0 %v568
    %576 = vmatprep.subr.mxu0 0.0
    %577 = vmatpush1.msra.mxu0 %v569
    %578 = vmatprep.subr.mxu0 0.0
    %579 = vmatpush1.msra.mxu0 0.0
    %580 = vmatprep.subr.mxu0 0.0
    %581 = vmatpush1.msra.mxu0 0.0
    %582 = vmatprep.subr.mxu0 0.0
    %583 = vmatpush1.msra.mxu0 0.0
    %584 = vmatprep.subr.mxu0 0.0
    %585 = vmatpush1.msra.mxu0 0.0
    %586 = vmatprep.subr.mxu0 0.0
    %587 = vmatpush1.msra.mxu0 0.0
    %588 = vmatprep.subr.mxu0 0.0
    %589 = vmatpush1.msra.mxu0 0.0
    %590 = vmatprep.subr.mxu0 0.0
    %591 = vmatpush1.msra.mxu0 0.0
    %592 = vmatprep.subr.mxu0 0.0
    %593 = vmatpush1.msra.mxu0 0.0
    %594 = vmatprep.subr.mxu0 0.0
    %595 = vmatpush1.msra.mxu0 0.0
    %596 = vmatprep.subr.mxu0 0.0
    %597 = vmatpush1.msra.mxu0 0.0
    %598 = vmatprep.subr.mxu0 0.0
    %599 = vmatpush1.msra.mxu0 0.0
    %600 = vmatprep.subr.mxu0 0.0
    %601 = vmatpush1.msra.mxu0 0.0
    %602 = vmatprep.subr.mxu0 0.0
    %603 = vmatpush1.msra.mxu0 0.0
    %604 = vmatprep.subr.mxu0 0.0
    %605 = vmatpush1.msra.mxu0 0.0
    %606 = vmatprep.subr.mxu0 0.0
    %607 = vmatpush1.msra.mxu0 0.0
    %608 = vmatprep.subr.mxu0 0.0
    %609 = vmatpush1.msra.mxu0 0.0
    %610 = vmatprep.subr.mxu0 0.0
    %611 = vmatpush1.msra.mxu0 0.0
    %612 = vmatprep.subr.mxu0 0.0
    %613 = vmatpush1.msra.mxu0 0.0
    %614 = vmatprep.subr.mxu0 0.0
    %615 = vmatpush1.msra.mxu0 0.0
    %616 = vmatprep.subr.mxu0 0.0
    %617 = vmatpush1.msra.mxu0 0.0
    %618 = vmatprep.subr.mxu0 0.0
    %619 = vmatpush1.msra.mxu0 0.0
    %620 = vmatprep.subr.mxu0 0.0
    %621 = vmatpush1.msra.mxu0 0.0
    %622 = vmatprep.subr.mxu0 0.0
    %623 = vmatpush1.msra.mxu0 0.0
    %624 = vmatprep.subr.mxu0 0.0
    %625 = vmatpush1.msra.mxu0 0.0
    %626 = vmatprep.subr.mxu0 0.0
    %627 = vmatpush1.msra.mxu0 0.0
    %628 = vmatprep.subr.mxu0 0.0
    %629 = vmatpush1.msra.mxu0 0.0
    %630 = vmatprep.subr.mxu0 0.0
    %631 = vmatpush1.msra.mxu0 0.0
    %632 = vmatprep.subr.mxu0 0.0
    %633 = vmatpush1.msra.mxu0 0.0
    %634 = vmatprep.mubr.f32.mxu0 0.0
    %635 = vmatmul.mubr.f32.gmra.mrb[0].mxu0 %v449
    %v636 = vpop.f32.mrb[0].mxu0
    %v637 = vadd.f32 0.0, %v636
    %v638 = vpop.f32.mrb[0].mxu0
    %639 = vdwg.mxu0
    %641 = vrot.lane.b32.xlu0 %v558, 32
    %v642 = vpop.permute.xlu0 %641
    %v643 = vsel %vm447, %v642, 0
    %645 = vmatprep.subr.mxu0 0.0
    %646 = vmatpush1.msra.mxu0 %v562
    %647 = vmatprep.subr.mxu0 0.0
    %648 = vmatpush1.msra.mxu0 %v563
    %649 = vmatprep.subr.mxu0 0.0
    %650 = vmatpush1.msra.mxu0 %v564
    %651 = vmatprep.subr.mxu0 0.0
    %652 = vmatpush1.msra.mxu0 %v565
    %653 = vmatprep.subr.mxu0 0.0
    %654 = vmatpush1.msra.mxu0 0.0
    %655 = vmatprep.subr.mxu0 0.0
    %656 = vmatpush1.msra.mxu0 0.0
    %657 = vmatprep.subr.mxu0 0.0
    %658 = vmatpush1.msra.mxu0 0.0
    %659 = vmatprep.subr.mxu0 0.0
    %660 = vmatpush1.msra.mxu0 0.0
    %661 = vmatprep.subr.mxu0 0.0
    %662 = vmatpush1.msra.mxu0 0.0
    %663 = vmatprep.subr.mxu0 0.0
    %664 = vmatpush1.msra.mxu0 0.0
    %665 = vmatprep.subr.mxu0 0.0
    %666 = vmatpush1.msra.mxu0 0.0
    %667 = vmatprep.subr.mxu0 0.0
    %668 = vmatpush1.msra.mxu0 0.0
    %669 = vmatprep.subr.mxu0 0.0
    %670 = vmatpush1.msra.mxu0 0.0
    %671 = vmatprep.subr.mxu0 0.0
    %672 = vmatpush1.msra.mxu0 0.0
    %673 = vmatprep.subr.mxu0 0.0
    %674 = vmatpush1.msra.mxu0 0.0
    %675 = vmatprep.subr.mxu0 0.0
    %676 = vmatpush1.msra.mxu0 0.0
    %677 = vmatprep.subr.mxu0 0.0
    %678 = vmatpush1.msra.mxu0 0.0
    %679 = vmatprep.subr.mxu0 0.0
    %680 = vmatpush1.msra.mxu0 0.0
    %681 = vmatprep.subr.mxu0 0.0
    %682 = vmatpush1.msra.mxu0 0.0
    %683 = vmatprep.subr.mxu0 0.0
    %684 = vmatpush1.msra.mxu0 0.0
    %685 = vmatprep.subr.mxu0 0.0
    %686 = vmatpush1.msra.mxu0 0.0
    %687 = vmatprep.subr.mxu0 0.0
    %688 = vmatpush1.msra.mxu0 0.0
    %689 = vmatprep.subr.mxu0 0.0
    %690 = vmatpush1.msra.mxu0 0.0
    %691 = vmatprep.subr.mxu0 0.0
    %692 = vmatpush1.msra.mxu0 0.0
    %693 = vmatprep.subr.mxu0 0.0
    %694 = vmatpush1.msra.mxu0 0.0
    %695 = vmatprep.subr.mxu0 0.0
    %696 = vmatpush1.msra.mxu0 0.0
    %697 = vmatprep.subr.mxu0 0.0
    %698 = vmatpush1.msra.mxu0 0.0
    %699 = vmatprep.subr.mxu0 0.0
    %700 = vmatpush1.msra.mxu0 0.0
    %701 = vmatprep.subr.mxu0 0.0
    %702 = vmatpush1.msra.mxu0 0.0
    %703 = vmatprep.subr.mxu0 0.0
    %704 = vmatpush1.msra.mxu0 0.0
    %705 = vmatprep.subr.mxu0 0.0
    %706 = vmatpush1.msra.mxu0 0.0
    %707 = vmatprep.subr.mxu0 0.0
    %708 = vmatpush1.msra.mxu0 0.0
    %709 = vmatprep.mubr.f32.mxu0 0.0
    %710 = vmatmul.mubr.f32.gmra.mrb[0].mxu0 %v643
    %v711 = vpop.f32.mrb[0].mxu0
    %v712 = vadd.f32 %v637, %v711
    %v713 = vpop.f32.mrb[0].mxu0
    %714 = vdwg.mxu0
    %v715 = vadd.f32 %v712, %v437
    %v716 = vxor.u32 %v715, 2147483648
    %v717 = vmul.f32 %v716, 1.442695
    %v718 = vpow.pop %v717
    %v719 = vadd.f32 %v718, 1.0
    %v720 = vrcp.pop %v719
    %v721 = vmul.f32 1.0, %v720
    %v722 = vtanh.pop %v715
    %v723 = vmul.f32 %v721, 0.0
    %725 = vrot.lane.b32.xlu0 %v722, 64
    %v726 = vpop.permute.xlu0 %725
    %v728 = vmul.f32 %v721, %v726
    %730 = vrot.lane.b32.xlu0 %v728, 32
    %v731 = vpop.permute.xlu0 %730
    %v733 = vadd.f32 %v723, %v731
    %v734 = vtanh.pop %v733
    %736 = vrot.lane.b32.xlu0 %v734, 64
    %v737 = vpop.permute.xlu0 %736
    %v739 = vmul.f32 %v721, %v737
    %v740 = vmul.f32 %v561, %v423
    %742 = vrot.lane.b32.xlu0 %v740, 96
    %v743 = vpop.permute.xlu0 %742
    %v745 = vsub.f32 %v739, %v743
    %v746 = vadd.f32 %v745, 0.0
    %v747 = vld [vmem:[#allocation3 + $0x8] sm:$0xff]
    %749 = vrot.lane.b32.xlu0 %v552, 32
    %v750 = vpop.permute.xlu0 %749
    %v751 = vsel %vm447, %v750, 0
    %753 = vmatprep.subr.mxu0 0.0
    %754 = vmatpush1.msra.mxu0 %v443
    %755 = vmatprep.subr.mxu0 0.0
    %756 = vmatpush1.msra.mxu0 %v444
    %757 = vmatprep.subr.mxu0 0.0
    %758 = vmatpush1.msra.mxu0 %v445
    %759 = vmatprep.subr.mxu0 0.0
    %760 = vmatpush1.msra.mxu0 %v446
    %761 = vmatprep.subr.mxu0 0.0
    %762 = vmatpush1.msra.mxu0 0.0
    %763 = vmatprep.subr.mxu0 0.0
    %764 = vmatpush1.msra.mxu0 0.0
    %765 = vmatprep.subr.mxu0 0.0
    %766 = vmatpush1.msra.mxu0 0.0
    %767 = vmatprep.subr.mxu0 0.0
    %768 = vmatpush1.msra.mxu0 0.0
    %769 = vmatprep.subr.mxu0 0.0
    %770 = vmatpush1.msra.mxu0 0.0
    %771 = vmatprep.subr.mxu0 0.0
    %772 = vmatpush1.msra.mxu0 0.0
    %773 = vmatprep.subr.mxu0 0.0
    %774 = vmatpush1.msra.mxu0 0.0
    %775 = vmatprep.subr.mxu0 0.0
    %776 = vmatpush1.msra.mxu0 0.0
    %777 = vmatprep.subr.mxu0 0.0
    %778 = vmatpush1.msra.mxu0 0.0
    %779 = vmatprep.subr.mxu0 0.0
    %780 = vmatpush1.msra.mxu0 0.0
    %781 = vmatprep.subr.mxu0 0.0
    %782 = vmatpush1.msra.mxu0 0.0
    %783 = vmatprep.subr.mxu0 0.0
    %784 = vmatpush1.msra.mxu0 0.0
    %785 = vmatprep.subr.mxu0 0.0
    %786 = vmatpush1.msra.mxu0 0.0
    %787 = vmatprep.subr.mxu0 0.0
    %788 = vmatpush1.msra.mxu0 0.0
    %789 = vmatprep.subr.mxu0 0.0
    %790 = vmatpush1.msra.mxu0 0.0
    %791 = vmatprep.subr.mxu0 0.0
    %792 = vmatpush1.msra.mxu0 0.0
    %793 = vmatprep.subr.mxu0 0.0
    %794 = vmatpush1.msra.mxu0 0.0
    %795 = vmatprep.subr.mxu0 0.0
    %796 = vmatpush1.msra.mxu0 0.0
    %797 = vmatprep.subr.mxu0 0.0
    %798 = vmatpush1.msra.mxu0 0.0
    %799 = vmatprep.subr.mxu0 0.0
    %800 = vmatpush1.msra.mxu0 0.0
    %801 = vmatprep.subr.mxu0 0.0
    %802 = vmatpush1.msra.mxu0 0.0
    %803 = vmatprep.subr.mxu0 0.0
    %804 = vmatpush1.msra.mxu0 0.0
    %805 = vmatprep.subr.mxu0 0.0
    %806 = vmatpush1.msra.mxu0 0.0
    %807 = vmatprep.subr.mxu0 0.0
    %808 = vmatpush1.msra.mxu0 0.0
    %809 = vmatprep.subr.mxu0 0.0
    %810 = vmatpush1.msra.mxu0 0.0
    %811 = vmatprep.subr.mxu0 0.0
    %812 = vmatpush1.msra.mxu0 0.0
    %813 = vmatprep.subr.mxu0 0.0
    %814 = vmatpush1.msra.mxu0 0.0
    %815 = vmatprep.subr.mxu0 0.0
    %816 = vmatpush1.msra.mxu0 0.0
    %817 = vmatprep.mubr.f32.mxu0 0.0
    %818 = vmatmul.mubr.f32.gmra.mrb[0].mxu0 %v751
    %v819 = vpop.f32.mrb[0].mxu0
    %v820 = vadd.f32 0.0, %v819
    %v821 = vpop.f32.mrb[0].mxu0
    %822 = vdwg.mxu0
    %v823 = vadd.f32 %v747, %v820
    %v824 = vadd.f32 %v823, %v430
    %v825 = vxor.u32 %v824, 2147483648
    %v826 = vmul.f32 %v825, 1.442695
    %v827 = vpow.pop %v826
    %v828 = vadd.f32 %v827, 1.0
    %v829 = vrcp.pop %v828
    %v830 = vmul.f32 1.0, %v829
    %v831 = vtanh.pop %v824
    %v832 = vmul.f32 %v830, %v540
    %834 = vrot.lane.b32.xlu0 %v831, 64
    %v835 = vpop.permute.xlu0 %834
    %v837 = vmul.f32 %v830, %v835
    %839 = vrot.lane.b32.xlu0 %v837, 32
    %v840 = vpop.permute.xlu0 %839
    %v842 = vadd.f32 %v832, %v840
    %v843 = vtanh.pop %v842
    %845 = vrot.lane.b32.xlu0 %v843, 64
    %v846 = vpop.permute.xlu0 %845
    %v848 = vmul.f32 %v830, %v846
    %v849 = vmul.f32 %v558, %v554
    %v850 = vsub.f32 %v848, %v849
    %vm851 = vcmp.gt.f32.partialorder %v850, %v554
    %v852 = vsel %vm851, 1, 0
    %v853 = vcvt.s32.f32 %v852
    %854 = vrot.lane.b32.xlu0 %v423, 96
    %v855 = vpop.permute.xlu0 %854
    %vm857 = vcmp.gt.f32.partialorder %v745, %v855
    %v858 = vsel %vm857, 1, 0
    %v859 = vcvt.s32.f32 %v858
    %861 = vrot.lane.b32.xlu0 %v745, 32
    %v862 = vpop.permute.xlu0 %861
    %v863 = vsel %vm447, %v862, 0
    %865 = vmatprep.subr.mxu0 0.0
    %866 = vmatpush1.msra.mxu0 %v566
    %867 = vmatprep.subr.mxu0 0.0
    %868 = vmatpush1.msra.mxu0 %v567
    %869 = vmatprep.subr.mxu0 0.0
    %870 = vmatpush1.msra.mxu0 %v568
    %871 = vmatprep.subr.mxu0 0.0
    %872 = vmatpush1.msra.mxu0 %v569
    %873 = vmatprep.subr.mxu0 0.0
    %874 = vmatpush1.msra.mxu0 0.0
    %875 = vmatprep.subr.mxu0 0.0
    %876 = vmatpush1.msra.mxu0 0.0
    %877 = vmatprep.subr.mxu0 0.0
    %878 = vmatpush1.msra.mxu0 0.0
    %879 = vmatprep.subr.mxu0 0.0
    %880 = vmatpush1.msra.mxu0 0.0
    %881 = vmatprep.subr.mxu0 0.0
    %882 = vmatpush1.msra.mxu0 0.0
    %883 = vmatprep.subr.mxu0 0.0
    %884 = vmatpush1.msra.mxu0 0.0
    %885 = vmatprep.subr.mxu0 0.0
    %886 = vmatpush1.msra.mxu0 0.0
    %887 = vmatprep.subr.mxu0 0.0
    %888 = vmatpush1.msra.mxu0 0.0
    %889 = vmatprep.subr.mxu0 0.0
    %890 = vmatpush1.msra.mxu0 0.0
    %891 = vmatprep.subr.mxu0 0.0
    %892 = vmatpush1.msra.mxu0 0.0
    %893 = vmatprep.subr.mxu0 0.0
    %894 = vmatpush1.msra.mxu0 0.0
    %895 = vmatprep.subr.mxu0 0.0
    %896 = vmatpush1.msra.mxu0 0.0
    %897 = vmatprep.subr.mxu0 0.0
    %898 = vmatpush1.msra.mxu0 0.0
    %899 = vmatprep.subr.mxu0 0.0
    %900 = vmatpush1.msra.mxu0 0.0
    %901 = vmatprep.subr.mxu0 0.0
    %902 = vmatpush1.msra.mxu0 0.0
    %903 = vmatprep.subr.mxu0 0.0
    %904 = vmatpush1.msra.mxu0 0.0
    %905 = vmatprep.subr.mxu0 0.0
    %906 = vmatpush1.msra.mxu0 0.0
    %907 = vmatprep.subr.mxu0 0.0
    %908 = vmatpush1.msra.mxu0 0.0
    %909 = vmatprep.subr.mxu0 0.0
    %910 = vmatpush1.msra.mxu0 0.0
    %911 = vmatprep.subr.mxu0 0.0
    %912 = vmatpush1.msra.mxu0 0.0
    %913 = vmatprep.subr.mxu0 0.0
    %914 = vmatpush1.msra.mxu0 0.0
    %915 = vmatprep.subr.mxu0 0.0
    %916 = vmatpush1.msra.mxu0 0.0
    %917 = vmatprep.subr.mxu0 0.0
    %918 = vmatpush1.msra.mxu0 0.0
    %919 = vmatprep.subr.mxu0 0.0
    %920 = vmatpush1.msra.mxu0 0.0
    %921 = vmatprep.subr.mxu0 0.0
    %922 = vmatpush1.msra.mxu0 0.0
    %923 = vmatprep.subr.mxu0 0.0
    %924 = vmatpush1.msra.mxu0 0.0
    %925 = vmatprep.subr.mxu0 0.0
    %926 = vmatpush1.msra.mxu0 0.0
    %927 = vmatprep.subr.mxu0 0.0
    %928 = vmatpush1.msra.mxu0 0.0
    %929 = vmatprep.mubr.f32.mxu0 0.0
    %930 = vmatmul.mubr.f32.gmra.mrb[0].mxu0 %v863
    %v931 = vpop.f32.mrb[0].mxu0
    %v932 = vadd.f32 0.0, %v931
    %v933 = vpop.f32.mrb[0].mxu0
    %934 = vdwg.mxu0
    %936 = vrot.lane.b32.xlu0 %v853, 32
    %v937 = vpop.permute.xlu0 %936
    %v938 = vsel %vm447, %v937, 0
    %940 = vmatprep.subr.mxu0 0.0
    %941 = vmatpush1.msra.mxu0 %v562
    %942 = vmatprep.subr.mxu0 0.0
    %943 = vmatpush1.msra.mxu0 %v563
    %944 = vmatprep.subr.mxu0 0.0
    %945 = vmatpush1.msra.mxu0 %v564
    %946 = vmatprep.subr.mxu0 0.0
    %947 = vmatpush1.msra.mxu0 %v565
    %948 = vmatprep.subr.mxu0 0.0
    %949 = vmatpush1.msra.mxu0 0.0
    %950 = vmatprep.subr.mxu0 0.0
    %951 = vmatpush1.msra.mxu0 0.0
    %952 = vmatprep.subr.mxu0 0.0
    %953 = vmatpush1.msra.mxu0 0.0
    %954 = vmatprep.subr.mxu0 0.0
    %955 = vmatpush1.msra.mxu0 0.0
    %956 = vmatprep.subr.mxu0 0.0
    %957 = vmatpush1.msra.mxu0 0.0
    %958 = vmatprep.subr.mxu0 0.0
    %959 = vmatpush1.msra.mxu0 0.0
    %960 = vmatprep.subr.mxu0 0.0
    %961 = vmatpush1.msra.mxu0 0.0
    %962 = vmatprep.subr.mxu0 0.0
    %963 = vmatpush1.msra.mxu0 0.0
    %964 = vmatprep.subr.mxu0 0.0
    %965 = vmatpush1.msra.mxu0 0.0
    %966 = vmatprep.subr.mxu0 0.0
    %967 = vmatpush1.msra.mxu0 0.0
    %968 = vmatprep.subr.mxu0 0.0
    %969 = vmatpush1.msra.mxu0 0.0
    %970 = vmatprep.subr.mxu0 0.0
    %971 = vmatpush1.msra.mxu0 0.0
    %972 = vmatprep.subr.mxu0 0.0
    %973 = vmatpush1.msra.mxu0 0.0
    %974 = vmatprep.subr.mxu0 0.0
    %975 = vmatpush1.msra.mxu0 0.0
    %976 = vmatprep.subr.mxu0 0.0
    %977 = vmatpush1.msra.mxu0 0.0
    %978 = vmatprep.subr.mxu0 0.0
    %979 = vmatpush1.msra.mxu0 0.0
    %980 = vmatprep.subr.mxu0 0.0
    %981 = vmatpush1.msra.mxu0 0.0
    %982 = vmatprep.subr.mxu0 0.0
    %983 = vmatpush1.msra.mxu0 0.0
    %984 = vmatprep.subr.mxu0 0.0
    %985 = vmatpush1.msra.mxu0 0.0
    %986 = vmatprep.subr.mxu0 0.0
    %987 = vmatpush1.msra.mxu0 0.0
    %988 = vmatprep.subr.mxu0 0.0
    %989 = vmatpush1.msra.mxu0 0.0
    %990 = vmatprep.subr.mxu0 0.0
    %991 = vmatpush1.msra.mxu0 0.0
    %992 = vmatprep.subr.mxu0 0.0
    %993 = vmatpush1.msra.mxu0 0.0
    %994 = vmatprep.subr.mxu0 0.0
    %995 = vmatpush1.msra.mxu0 0.0
    %996 = vmatprep.subr.mxu0 0.0
    %997 = vmatpush1.msra.mxu0 0.0
    %998 = vmatprep.subr.mxu0 0.0
    %999 = vmatpush1.msra.mxu0 0.0
    %1000 = vmatprep.subr.mxu0 0.0
    %1001 = vmatpush1.msra.mxu0 0.0
    %1002 = vmatprep.subr.mxu0 0.0
    %1003 = vmatpush1.msra.mxu0 0.0
    %1004 = vmatprep.mubr.f32.mxu0 0.0
    %1005 = vmatmul.mubr.f32.gmra.mrb[0].mxu0 %v938
    %v1006 = vpop.f32.mrb[0].mxu0
    %v1007 = vadd.f32 %v932, %v1006
    %v1008 = vpop.f32.mrb[0].mxu0
    %1009 = vdwg.mxu0
    %v1010 = vadd.f32 %v1007, %v437
    %v1011 = vxor.u32 %v1010, 2147483648
    %v1012 = vmul.f32 %v1011, 1.442695
    %v1013 = vpow.pop %v1012
    %v1014 = vadd.f32 %v1013, 1.0
    %v1015 = vrcp.pop %v1014
    %v1016 = vmul.f32 1.0, %v1015
    %v1017 = vtanh.pop %v1010
    %v1018 = vmul.f32 %v1016, %v733
    %1020 = vrot.lane.b32.xlu0 %v1017, 64
    %v1021 = vpop.permute.xlu0 %1020
    %v1023 = vmul.f32 %v1016, %v1021
    %1025 = vrot.lane.b32.xlu0 %v1023, 32
    %v1026 = vpop.permute.xlu0 %1025
    %v1028 = vadd.f32 %v1018, %v1026
    %v1029 = vtanh.pop %v1028
    %1031 = vrot.lane.b32.xlu0 %v1029, 64
    %v1032 = vpop.permute.xlu0 %1031
    %v1034 = vmul.f32 %v1016, %v1032
    %v1035 = vmul.f32 %v859, %v855
    %v1036 = vsub.f32 %v1034, %v1035
    %v1037 = vadd.f32 %v746, %v1036
    %v1038 = vld [vmem:[#allocation3 + $0x10] sm:$0xff]
    %1040 = vrot.lane.b32.xlu0 %v850, 32
    %v1041 = vpop.permute.xlu0 %1040
    %v1042 = vsel %vm447, %v1041, 0
    %1044 = vmatprep.subr.mxu0 0.0
    %1045 = vmatpush1.msra.mxu0 %v443
    %1046 = vmatprep.subr.mxu0 0.0
    %1047 = vmatpush1.msra.mxu0 %v444
    %1048 = vmatprep.subr.mxu0 0.0
    %1049 = vmatpush1.msra.mxu0 %v445
    %1050 = vmatprep.subr.mxu0 0.0
    %1051 = vmatpush1.msra.mxu0 %v446
    %1052 = vmatprep.subr.mxu0 0.0
    %1053 = vmatpush1.msra.mxu0 0.0
    %1054 = vmatprep.subr.mxu0 0.0
    %1055 = vmatpush1.msra.mxu0 0.0
    %1056 = vmatprep.subr.mxu0 0.0
    %1057 = vmatpush1.msra.mxu0 0.0
    %1058 = vmatprep.subr.mxu0 0.0
    %1059 = vmatpush1.msra.mxu0 0.0
    %1060 = vmatprep.subr.mxu0 0.0
    %1061 = vmatpush1.msra.mxu0 0.0
    %1062 = vmatprep.subr.mxu0 0.0
    %1063 = vmatpush1.msra.mxu0 0.0
    %1064 = vmatprep.subr.mxu0 0.0
    %1065 = vmatpush1.msra.mxu0 0.0
    %1066 = vmatprep.subr.mxu0 0.0
    %1067 = vmatpush1.msra.mxu0 0.0
    %1068 = vmatprep.subr.mxu0 0.0
    %1069 = vmatpush1.msra.mxu0 0.0
    %1070 = vmatprep.subr.mxu0 0.0
    %1071 = vmatpush1.msra.mxu0 0.0
    %1072 = vmatprep.subr.mxu0 0.0
    %1073 = vmatpush1.msra.mxu0 0.0
    %1074 = vmatprep.subr.mxu0 0.0
    %1075 = vmatpush1.msra.mxu0 0.0
    %1076 = vmatprep.subr.mxu0 0.0
    %1077 = vmatpush1.msra.mxu0 0.0
    %1078 = vmatprep.subr.mxu0 0.0
    %1079 = vmatpush1.msra.mxu0 0.0
    %1080 = vmatprep.subr.mxu0 0.0
    %1081 = vmatpush1.msra.mxu0 0.0
    %1082 = vmatprep.subr.mxu0 0.0
    %1083 = vmatpush1.msra.mxu0 0.0
    %1084 = vmatprep.subr.mxu0 0.0
    %1085 = vmatpush1.msra.mxu0 0.0
    %1086 = vmatprep.subr.mxu0 0.0
    %1087 = vmatpush1.msra.mxu0 0.0
    %1088 = vmatprep.subr.mxu0 0.0
    %1089 = vmatpush1.msra.mxu0 0.0
    %1090 = vmatprep.subr.mxu0 0.0
    %1091 = vmatpush1.msra.mxu0 0.0
    %1092 = vmatprep.subr.mxu0 0.0
    %1093 = vmatpush1.msra.mxu0 0.0
    %1094 = vmatprep.subr.mxu0 0.0
    %1095 = vmatpush1.msra.mxu0 0.0
    %1096 = vmatprep.subr.mxu0 0.0
    %1097 = vmatpush1.msra.mxu0 0.0
    %1098 = vmatprep.subr.mxu0 0.0
    %1099 = vmatpush1.msra.mxu0 0.0
    %1100 = vmatprep.subr.mxu0 0.0
    %1101 = vmatpush1.msra.mxu0 0.0
    %1102 = vmatprep.subr.mxu0 0.0
    %1103 = vmatpush1.msra.mxu0 0.0
    %1104 = vmatprep.subr.mxu0 0.0
    %1105 = vmatpush1.msra.mxu0 0.0
    %1106 = vmatprep.subr.mxu0 0.0
    %1107 = vmatpush1.msra.mxu0 0.0
    %1108 = vmatprep.mubr.f32.mxu0 0.0
    %1109 = vmatmul.mubr.f32.gmra.mrb[0].mxu0 %v1042
    %v1110 = vpop.f32.mrb[0].mxu0
    %v1111 = vadd.f32 0.0, %v1110
    %v1112 = vpop.f32.mrb[0].mxu0
    %1113 = vdwg.mxu0
    %v1114 = vadd.f32 %v1038, %v1111
    %v1115 = vadd.f32 %v1114, %v430
    %v1116 = vxor.u32 %v1115, 2147483648
    %v1117 = vmul.f32 %v1116, 1.442695
    %v1118 = vpow.pop %v1117
    %v1119 = vadd.f32 %v1118, 1.0
    %v1120 = vrcp.pop %v1119
    %v1121 = vmul.f32 1.0, %v1120
    %v1122 = vtanh.pop %v1115
    %v1123 = vmul.f32 %v1121, %v842
    %1125 = vrot.lane.b32.xlu0 %v1122, 64
    %v1126 = vpop.permute.xlu0 %1125
    %v1128 = vmul.f32 %v1121, %v1126
    %1130 = vrot.lane.b32.xlu0 %v1128, 32
    %v1131 = vpop.permute.xlu0 %1130
    %v1133 = vadd.f32 %v1123, %v1131
    %v1134 = vtanh.pop %v1133
    %1136 = vrot.lane.b32.xlu0 %v1134, 64
    %v1137 = vpop.permute.xlu0 %1136
    %v1139 = vmul.f32 %v1121, %v1137
    %v1140 = vmul.f32 %v853, %v554
    %v1141 = vsub.f32 %v1139, %v1140
    %vm1142 = vcmp.gt.f32.partialorder %v1141, %v554
    %v1143 = vsel %vm1142, 1, 0
    %v1144 = vcvt.s32.f32 %v1143
    %vm1145 = vcmp.gt.f32.partialorder %v1036, %v855
    %v1146 = vsel %vm1145, 1, 0
    %v1147 = vcvt.s32.f32 %v1146
    %1149 = vrot.lane.b32.xlu0 %v1036, 32
    %v1150 = vpop.permute.xlu0 %1149
    %v1151 = vsel %vm447, %v1150, 0
    %1153 = vmatprep.subr.mxu0 0.0
    %1154 = vmatpush1.msra.mxu0 %v566
    %1155 = vmatprep.subr.mxu0 0.0
    %1156 = vmatpush1.msra.mxu0 %v567
    %1157 = vmatprep.subr.mxu0 0.0
    %1158 = vmatpush1.msra.mxu0 %v568
    %1159 = vmatprep.subr.mxu0 0.0
    %1160 = vmatpush1.msra.mxu0 %v569
    %1161 = vmatprep.subr.mxu0 0.0
    %1162 = vmatpush1.msra.mxu0 0.0
    %1163 = vmatprep.subr.mxu0 0.0
    %1164 = vmatpush1.msra.mxu0 0.0
    %1165 = vmatprep.subr.mxu0 0.0
    %1166 = vmatpush1.msra.mxu0 0.0
    %1167 = vmatprep.subr.mxu0 0.0
    %1168 = vmatpush1.msra.mxu0 0.0
    %1169 = vmatprep.subr.mxu0 0.0
    %1170 = vmatpush1.msra.mxu0 0.0
    %1171 = vmatprep.subr.mxu0 0.0
    %1172 = vmatpush1.msra.mxu0 0.0
    %1173 = vmatprep.subr.mxu0 0.0
    %1174 = vmatpush1.msra.mxu0 0.0
    %1175 = vmatprep.subr.mxu0 0.0
    %1176 = vmatpush1.msra.mxu0 0.0
    %1177 = vmatprep.subr.mxu0 0.0
    %1178 = vmatpush1.msra.mxu0 0.0
    %1179 = vmatprep.subr.mxu0 0.0
    %1180 = vmatpush1.msra.mxu0 0.0
    %1181 = vmatprep.subr.mxu0 0.0
    %1182 = vmatpush1.msra.mxu0 0.0
    %1183 = vmatprep.subr.mxu0 0.0
    %1184 = vmatpush1.msra.mxu0 0.0
    %1185 = vmatprep.subr.mxu0 0.0
    %1186 = vmatpush1.msra.mxu0 0.0
    %1187 = vmatprep.subr.mxu0 0.0
    %1188 = vmatpush1.msra.mxu0 0.0
    %1189 = vmatprep.subr.mxu0 0.0
    %1190 = vmatpush1.msra.mxu0 0.0
    %1191 = vmatprep.subr.mxu0 0.0
    %1192 = vmatpush1.msra.mxu0 0.0
    %1193 = vmatprep.subr.mxu0 0.0
    %1194 = vmatpush1.msra.mxu0 0.0
    %1195 = vmatprep.subr.mxu0 0.0
    %1196 = vmatpush1.msra.mxu0 0.0
    %1197 = vmatprep.subr.mxu0 0.0
    %1198 = vmatpush1.msra.mxu0 0.0
    %1199 = vmatprep.subr.mxu0 0.0
    %1200 = vmatpush1.msra.mxu0 0.0
    %1201 = vmatprep.subr.mxu0 0.0
    %1202 = vmatpush1.msra.mxu0 0.0
    %1203 = vmatprep.subr.mxu0 0.0
    %1204 = vmatpush1.msra.mxu0 0.0
    %1205 = vmatprep.subr.mxu0 0.0
    %1206 = vmatpush1.msra.mxu0 0.0
    %1207 = vmatprep.subr.mxu0 0.0
    %1208 = vmatpush1.msra.mxu0 0.0
    %1209 = vmatprep.subr.mxu0 0.0
    %1210 = vmatpush1.msra.mxu0 0.0
    %1211 = vmatprep.subr.mxu0 0.0
    %1212 = vmatpush1.msra.mxu0 0.0
    %1213 = vmatprep.subr.mxu0 0.0
    %1214 = vmatpush1.msra.mxu0 0.0
    %1215 = vmatprep.subr.mxu0 0.0
    %1216 = vmatpush1.msra.mxu0 0.0
    %1217 = vmatprep.mubr.f32.mxu0 0.0
    %1218 = vmatmul.mubr.f32.gmra.mrb[0].mxu0 %v1151
    %v1219 = vpop.f32.mrb[0].mxu0
    %v1220 = vadd.f32 0.0, %v1219
    %v1221 = vpop.f32.mrb[0].mxu0
    %1222 = vdwg.mxu0
    %1224 = vrot.lane.b32.xlu0 %v1144, 32
    %v1225 = vpop.permute.xlu0 %1224
    %v1226 = vsel %vm447, %v1225, 0
    %1228 = vmatprep.subr.mxu0 0.0
    %1229 = vmatpush1.msra.mxu0 %v562
    %1230 = vmatprep.subr.mxu0 0.0
    %1231 = vmatpush1.msra.mxu0 %v563
    %1232 = vmatprep.subr.mxu0 0.0
    %1233 = vmatpush1.msra.mxu0 %v564
    %1234 = vmatprep.subr.mxu0 0.0
    %1235 = vmatpush1.msra.mxu0 %v565
    %1236 = vmatprep.subr.mxu0 0.0
    %1237 = vmatpush1.msra.mxu0 0.0
    %1238 = vmatprep.subr.mxu0 0.0
    %1239 = vmatpush1.msra.mxu0 0.0
    %1240 = vmatprep.subr.mxu0 0.0
    %1241 = vmatpush1.msra.mxu0 0.0
    %1242 = vmatprep.subr.mxu0 0.0
    %1243 = vmatpush1.msra.mxu0 0.0
    %1244 = vmatprep.subr.mxu0 0.0
    %1245 = vmatpush1.msra.mxu0 0.0
    %1246 = vmatprep.subr.mxu0 0.0
    %1247 = vmatpush1.msra.mxu0 0.0
    %1248 = vmatprep.subr.mxu0 0.0
    %1249 = vmatpush1.msra.mxu0 0.0
    %1250 = vmatprep.subr.mxu0 0.0
    %1251 = vmatpush1.msra.mxu0 0.0
    %1252 = vmatprep.subr.mxu0 0.0
    %1253 = vmatpush1.msra.mxu0 0.0
    %1254 = vmatprep.subr.mxu0 0.0
    %1255 = vmatpush1.msra.mxu0 0.0
    %1256 = vmatprep.subr.mxu0 0.0
    %1257 = vmatpush1.msra.mxu0 0.0
    %1258 = vmatprep.subr.mxu0 0.0
    %1259 = vmatpush1.msra.mxu0 0.0
    %1260 = vmatprep.subr.mxu0 0.0
    %1261 = vmatpush1.msra.mxu0 0.0
    %1262 = vmatprep.subr.mxu0 0.0
    %1263 = vmatpush1.msra.mxu0 0.0
    %1264 = vmatprep.subr.mxu0 0.0
    %1265 = vmatpush1.msra.mxu0 0.0
    %1266 = vmatprep.subr.mxu0 0.0
    %1267 = vmatpush1.msra.mxu0 0.0
    %1268 = vmatprep.subr.mxu0 0.0
    %1269 = vmatpush1.msra.mxu0 0.0
    %1270 = vmatprep.subr.mxu0 0.0
    %1271 = vmatpush1.msra.mxu0 0.0
    %1272 = vmatprep.subr.mxu0 0.0
    %1273 = vmatpush1.msra.mxu0 0.0
    %1274 = vmatprep.subr.mxu0 0.0
    %1275 = vmatpush1.msra.mxu0 0.0
    %1276 = vmatprep.subr.mxu0 0.0
    %1277 = vmatpush1.msra.mxu0 0.0
    %1278 = vmatprep.subr.mxu0 0.0
    %1279 = vmatpush1.msra.mxu0 0.0
    %1280 = vmatprep.subr.mxu0 0.0
    %1281 = vmatpush1.msra.mxu0 0.0
    %1282 = vmatprep.subr.mxu0 0.0
    %1283 = vmatpush1.msra.mxu0 0.0
    %1284 = vmatprep.subr.mxu0 0.0
    %1285 = vmatpush1.msra.mxu0 0.0
    %1286 = vmatprep.subr.mxu0 0.0
    %1287 = vmatpush1.msra.mxu0 0.0
    %1288 = vmatprep.subr.mxu0 0.0
    %1289 = vmatpush1.msra.mxu0 0.0
    %1290 = vmatprep.subr.mxu0 0.0
    %1291 = vmatpush1.msra.mxu0 0.0
    %1292 = vmatprep.mubr.f32.mxu0 0.0
    %1293 = vmatmul.mubr.f32.gmra.mrb[0].mxu0 %v1226
    %v1294 = vpop.f32.mrb[0].mxu0
    %v1295 = vadd.f32 %v1220, %v1294
    %v1296 = vpop.f32.mrb[0].mxu0
    %1297 = vdwg.mxu0
    %v1298 = vadd.f32 %v1295, %v437
    %v1299 = vxor.u32 %v1298, 2147483648
    %v1300 = vmul.f32 %v1299, 1.442695
    %v1301 = vpow.pop %v1300
    %v1302 = vadd.f32 %v1301, 1.0
    %v1303 = vrcp.pop %v1302
    %v1304 = vmul.f32 1.0, %v1303
    %v1305 = vtanh.pop %v1298
    %v1306 = vmul.f32 %v1304, %v1028
    %1308 = vrot.lane.b32.xlu0 %v1305, 64
    %v1309 = vpop.permute.xlu0 %1308
    %v1311 = vmul.f32 %v1304, %v1309
    %1313 = vrot.lane.b32.xlu0 %v1311, 32
    %v1314 = vpop.permute.xlu0 %1313
    %v1316 = vadd.f32 %v1306, %v1314
    %v1317 = vtanh.pop %v1316
    %1319 = vrot.lane.b32.xlu0 %v1317, 64
    %v1320 = vpop.permute.xlu0 %1319
    %v1322 = vmul.f32 %v1304, %v1320
    %v1323 = vmul.f32 %v1147, %v855
    %v1324 = vsub.f32 %v1322, %v1323
    %v1325 = vadd.f32 %v1037, %v1324
    %v1326 = vld [vmem:[#allocation3 + $0x18] sm:$0xff]
    %1328 = vrot.lane.b32.xlu0 %v1141, 32
    %v1329 = vpop.permute.xlu0 %1328
    %v1330 = vsel %vm447, %v1329, 0
    %1332 = vmatprep.subr.mxu0 0.0
    %1333 = vmatpush1.msra.mxu0 %v443
    %1334 = vmatprep.subr.mxu0 0.0
    %1335 = vmatpush1.msra.mxu0 %v444
    %1336 = vmatprep.subr.mxu0 0.0
    %1337 = vmatpush1.msra.mxu0 %v445
    %1338 = vmatprep.subr.mxu0 0.0
    %1339 = vmatpush1.msra.mxu0 %v446
    %1340 = vmatprep.subr.mxu0 0.0
    %1341 = vmatpush1.msra.mxu0 0.0
    %1342 = vmatprep.subr.mxu0 0.0
    %1343 = vmatpush1.msra.mxu0 0.0
    %1344 = vmatprep.subr.mxu0 0.0
    %1345 = vmatpush1.msra.mxu0 0.0
    %1346 = vmatprep.subr.mxu0 0.0
    %1347 = vmatpush1.msra.mxu0 0.0
    %1348 = vmatprep.subr.mxu0 0.0
    %1349 = vmatpush1.msra.mxu0 0.0
    %1350 = vmatprep.subr.mxu0 0.0
    %1351 = vmatpush1.msra.mxu0 0.0
    %1352 = vmatprep.subr.mxu0 0.0
    %1353 = vmatpush1.msra.mxu0 0.0
    %1354 = vmatprep.subr.mxu0 0.0
    %1355 = vmatpush1.msra.mxu0 0.0
    %1356 = vmatprep.subr.mxu0 0.0
    %1357 = vmatpush1.msra.mxu0 0.0
    %1358 = vmatprep.subr.mxu0 0.0
    %1359 = vmatpush1.msra.mxu0 0.0
    %1360 = vmatprep.subr.mxu0 0.0
    %1361 = vmatpush1.msra.mxu0 0.0
    %1362 = vmatprep.subr.mxu0 0.0
    %1363 = vmatpush1.msra.mxu0 0.0
    %1364 = vmatprep.subr.mxu0 0.0
    %1365 = vmatpush1.msra.mxu0 0.0
    %1366 = vmatprep.subr.mxu0 0.0
    %1367 = vmatpush1.msra.mxu0 0.0
    %1368 = vmatprep.subr.mxu0 0.0
    %1369 = vmatpush1.msra.mxu0 0.0
    %1370 = vmatprep.subr.mxu0 0.0
    %1371 = vmatpush1.msra.mxu0 0.0
    %1372 = vmatprep.subr.mxu0 0.0
    %1373 = vmatpush1.msra.mxu0 0.0
    %1374 = vmatprep.subr.mxu0 0.0
    %1375 = vmatpush1.msra.mxu0 0.0
    %1376 = vmatprep.subr.mxu0 0.0
    %1377 = vmatpush1.msra.mxu0 0.0
    %1378 = vmatprep.subr.mxu0 0.0
    %1379 = vmatpush1.msra.mxu0 0.0
    %1380 = vmatprep.subr.mxu0 0.0
    %1381 = vmatpush1.msra.mxu0 0.0
    %1382 = vmatprep.subr.mxu0 0.0
    %1383 = vmatpush1.msra.mxu0 0.0
    %1384 = vmatprep.subr.mxu0 0.0
    %1385 = vmatpush1.msra.mxu0 0.0
    %1386 = vmatprep.subr.mxu0 0.0
    %1387 = vmatpush1.msra.mxu0 0.0
    %1388 = vmatprep.subr.mxu0 0.0
    %1389 = vmatpush1.msra.mxu0 0.0
    %1390 = vmatprep.subr.mxu0 0.0
    %1391 = vmatpush1.msra.mxu0 0.0
    %1392 = vmatprep.subr.mxu0 0.0
    %1393 = vmatpush1.msra.mxu0 0.0
    %1394 = vmatprep.subr.mxu0 0.0
    %1395 = vmatpush1.msra.mxu0 0.0
    %1396 = vmatprep.mubr.f32.mxu0 0.0
    %1397 = vmatmul.mubr.f32.gmra.mrb[0].mxu0 %v1330
    %v1398 = vpop.f32.mrb[0].mxu0
    %v1399 = vadd.f32 0.0, %v1398
    %v1400 = vpop.f32.mrb[0].mxu0
    %1401 = vdwg.mxu0
    %v1402 = vadd.f32 %v1326, %v1399
    %v1403 = vadd.f32 %v1402, %v430
    %v1404 = vxor.u32 %v1403, 2147483648
    %v1405 = vmul.f32 %v1404, 1.442695
    %v1406 = vpow.pop %v1405
    %v1407 = vadd.f32 %v1406, 1.0
    %v1408 = vrcp.pop %v1407
    %v1409 = vmul.f32 1.0, %v1408
    %v1410 = vtanh.pop %v1403
    %v1411 = vmul.f32 %v1409, %v1133
    %1413 = vrot.lane.b32.xlu0 %v1410, 64
    %v1414 = vpop.permute.xlu0 %1413
    %v1416 = vmul.f32 %v1409, %v1414
    %1418 = vrot.lane.b32.xlu0 %v1416, 32
    %v1419 = vpop.permute.xlu0 %1418
    %v1421 = vadd.f32 %v1411, %v1419
    %v1422 = vtanh.pop %v1421
    %1424 = vrot.lane.b32.xlu0 %v1422, 64
    %v1425 = vpop.permute.xlu0 %1424
    %v1427 = vmul.f32 %v1409, %v1425
    %v1428 = vmul.f32 %v1144, %v554
    %v1429 = vsub.f32 %v1427, %v1428
    %vm1430 = vcmp.gt.f32.partialorder %v1429, %v554
    %v1431 = vsel %vm1430, 1, 0
    %v1432 = vcvt.s32.f32 %v1431
    %vm1433 = vcmp.gt.f32.partialorder %v1324, %v855
    %v1434 = vsel %vm1433, 1, 0
    %v1435 = vcvt.s32.f32 %v1434
    %1437 = vrot.lane.b32.xlu0 %v1324, 32
    %v1438 = vpop.permute.xlu0 %1437
    %v1439 = vsel %vm447, %v1438, 0
    %1441 = vmatprep.subr.mxu0 0.0
    %1442 = vmatpush1.msra.mxu0 %v566
    %1443 = vmatprep.subr.mxu0 0.0
    %1444 = vmatpush1.msra.mxu0 %v567
    %1445 = vmatprep.subr.mxu0 0.0
    %1446 = vmatpush1.msra.mxu0 %v568
    %1447 = vmatprep.subr.mxu0 0.0
    %1448 = vmatpush1.msra.mxu0 %v569
    %1449 = vmatprep.subr.mxu0 0.0
    %1450 = vmatpush1.msra.mxu0 0.0
    %1451 = vmatprep.subr.mxu0 0.0
    %1452 = vmatpush1.msra.mxu0 0.0
    %1453 = vmatprep.subr.mxu0 0.0
    %1454 = vmatpush1.msra.mxu0 0.0
    %1455 = vmatprep.subr.mxu0 0.0
    %1456 = vmatpush1.msra.mxu0 0.0
    %1457 = vmatprep.subr.mxu0 0.0
    %1458 = vmatpush1.msra.mxu0 0.0
    %1459 = vmatprep.subr.mxu0 0.0
    %1460 = vmatpush1.msra.mxu0 0.0
    %1461 = vmatprep.subr.mxu0 0.0
    %1462 = vmatpush1.msra.mxu0 0.0
    %1463 = vmatprep.subr.mxu0 0.0
    %1464 = vmatpush1.msra.mxu0 0.0
    %1465 = vmatprep.subr.mxu0 0.0
    %1466 = vmatpush1.msra.mxu0 0.0
    %1467 = vmatprep.subr.mxu0 0.0
    %1468 = vmatpush1.msra.mxu0 0.0
    %1469 = vmatprep.subr.mxu0 0.0
    %1470 = vmatpush1.msra.mxu0 0.0
    %1471 = vmatprep.subr.mxu0 0.0
    %1472 = vmatpush1.msra.mxu0 0.0
    %1473 = vmatprep.subr.mxu0 0.0
    %1474 = vmatpush1.msra.mxu0 0.0
    %1475 = vmatprep.subr.mxu0 0.0
    %1476 = vmatpush1.msra.mxu0 0.0
    %1477 = vmatprep.subr.mxu0 0.0
    %1478 = vmatpush1.msra.mxu0 0.0
    %1479 = vmatprep.subr.mxu0 0.0
    %1480 = vmatpush1.msra.mxu0 0.0
    %1481 = vmatprep.subr.mxu0 0.0
    %1482 = vmatpush1.msra.mxu0 0.0
    %1483 = vmatprep.subr.mxu0 0.0
    %1484 = vmatpush1.msra.mxu0 0.0
    %1485 = vmatprep.subr.mxu0 0.0
    %1486 = vmatpush1.msra.mxu0 0.0
    %1487 = vmatprep.subr.mxu0 0.0
    %1488 = vmatpush1.msra.mxu0 0.0
    %1489 = vmatprep.subr.mxu0 0.0
    %1490 = vmatpush1.msra.mxu0 0.0
    %1491 = vmatprep.subr.mxu0 0.0
    %1492 = vmatpush1.msra.mxu0 0.0
    %1493 = vmatprep.subr.mxu0 0.0
    %1494 = vmatpush1.msra.mxu0 0.0
    %1495 = vmatprep.subr.mxu0 0.0
    %1496 = vmatpush1.msra.mxu0 0.0
    %1497 = vmatprep.subr.mxu0 0.0
    %1498 = vmatpush1.msra.mxu0 0.0
    %1499 = vmatprep.subr.mxu0 0.0
    %1500 = vmatpush1.msra.mxu0 0.0
    %1501 = vmatprep.subr.mxu0 0.0
    %1502 = vmatpush1.msra.mxu0 0.0
    %1503 = vmatprep.subr.mxu0 0.0
    %1504 = vmatpush1.msra.mxu0 0.0
    %1505 = vmatprep.mubr.f32.mxu0 0.0
    %1506 = vmatmul.mubr.f32.gmra.mrb[0].mxu0 %v1439
    %v1507 = vpop.f32.mrb[0].mxu0
    %v1508 = vadd.f32 0.0, %v1507
    %v1509 = vpop.f32.mrb[0].mxu0
    %1510 = vdwg.mxu0
    %1512 = vrot.lane.b32.xlu0 %v1432, 32
    %v1513 = vpop.permute.xlu0 %1512
    %v1514 = vsel %vm447, %v1513, 0
    %1516 = vmatprep.subr.mxu0 0.0
    %1517 = vmatpush1.msra.mxu0 %v562
    %1518 = vmatprep.subr.mxu0 0.0
    %1519 = vmatpush1.msra.mxu0 %v563
    %1520 = vmatprep.subr.mxu0 0.0
    %1521 = vmatpush1.msra.mxu0 %v564
    %1522 = vmatprep.subr.mxu0 0.0
    %1523 = vmatpush1.msra.mxu0 %v565
    %1524 = vmatprep.subr.mxu0 0.0
    %1525 = vmatpush1.msra.mxu0 0.0
    %1526 = vmatprep.subr.mxu0 0.0
    %1527 = vmatpush1.msra.mxu0 0.0
    %1528 = vmatprep.subr.mxu0 0.0
    %1529 = vmatpush1.msra.mxu0 0.0
    %1530 = vmatprep.subr.mxu0 0.0
    %1531 = vmatpush1.msra.mxu0 0.0
    %1532 = vmatprep.subr.mxu0 0.0
    %1533 = vmatpush1.msra.mxu0 0.0
    %1534 = vmatprep.subr.mxu0 0.0
    %1535 = vmatpush1.msra.mxu0 0.0
    %1536 = vmatprep.subr.mxu0 0.0
    %1537 = vmatpush1.msra.mxu0 0.0
    %1538 = vmatprep.subr.mxu0 0.0
    %1539 = vmatpush1.msra.mxu0 0.0
    %1540 = vmatprep.subr.mxu0 0.0
    %1541 = vmatpush1.msra.mxu0 0.0
    %1542 = vmatprep.subr.mxu0 0.0
    %1543 = vmatpush1.msra.mxu0 0.0
    %1544 = vmatprep.subr.mxu0 0.0
    %1545 = vmatpush1.msra.mxu0 0.0
    %1546 = vmatprep.subr.mxu0 0.0
    %1547 = vmatpush1.msra.mxu0 0.0
    %1548 = vmatprep.subr.mxu0 0.0
    %1549 = vmatpush1.msra.mxu0 0.0
    %1550 = vmatprep.subr.mxu0 0.0
    %1551 = vmatpush1.msra.mxu0 0.0
    %1552 = vmatprep.subr.mxu0 0.0
    %1553 = vmatpush1.msra.mxu0 0.0
    %1554 = vmatprep.subr.mxu0 0.0
    %1555 = vmatpush1.msra.mxu0 0.0
    %1556 = vmatprep.subr.mxu0 0.0
    %1557 = vmatpush1.msra.mxu0 0.0
    %1558 = vmatprep.subr.mxu0 0.0
    %1559 = vmatpush1.msra.mxu0 0.0
    %1560 = vmatprep.subr.mxu0 0.0
    %1561 = vmatpush1.msra.mxu0 0.0
    %1562 = vmatprep.subr.mxu0 0.0
    %1563 = vmatpush1.msra.mxu0 0.0
    %1564 = vmatprep.subr.mxu0 0.0
    %1565 = vmatpush1.msra.mxu0 0.0
    %1566 = vmatprep.subr.mxu0 0.0
    %1567 = vmatpush1.msra.mxu0 0.0
    %1568 = vmatprep.subr.mxu0 0.0
    %1569 = vmatpush1.msra.mxu0 0.0
    %1570 = vmatprep.subr.mxu0 0.0
    %1571 = vmatpush1.msra.mxu0 0.0
    %1572 = vmatprep.subr.mxu0 0.0
    %1573 = vmatpush1.msra.mxu0 0.0
    %1574 = vmatprep.subr.mxu0 0.0
    %1575 = vmatpush1.msra.mxu0 0.0
    %1576 = vmatprep.subr.mxu0 0.0
    %1577 = vmatpush1.msra.mxu0 0.0
    %1578 = vmatprep.subr.mxu0 0.0
    %1579 = vmatpush1.msra.mxu0 0.0
    %1580 = vmatprep.mubr.f32.mxu0 0.0
    %1581 = vmatmul.mubr.f32.gmra.mrb[0].mxu0 %v1514
    %v1582 = vpop.f32.mrb[0].mxu0
    %v1583 = vadd.f32 %v1508, %v1582
    %v1584 = vpop.f32.mrb[0].mxu0
    %1585 = vdwg.mxu0
    %v1586 = vadd.f32 %v1583, %v437
    %v1587 = vxor.u32 %v1586, 2147483648
    %v1588 = vmul.f32 %v1587, 1.442695
    %v1589 = vpow.pop %v1588
    %v1590 = vadd.f32 %v1589, 1.0
    %v1591 = vrcp.pop %v1590
    %v1592 = vmul.f32 1.0, %v1591
    %v1593 = vtanh.pop %v1586
    %v1594 = vmul.f32 %v1592, %v1316
    %1596 = vrot.lane.b32.xlu0 %v1593, 64
    %v1597 = vpop.permute.xlu0 %1596
    %v1599 = vmul.f32 %v1592, %v1597
    %1601 = vrot.lane.b32.xlu0 %v1599, 32
    %v1602 = vpop.permute.xlu0 %1601
    %v1604 = vadd.f32 %v1594, %v1602
    %v1605 = vtanh.pop %v1604
    %1607 = vrot.lane.b32.xlu0 %v1605, 64
    %v1608 = vpop.permute.xlu0 %1607
    %v1610 = vmul.f32 %v1592, %v1608
    %v1611 = vmul.f32 %v1435, %v855
    %v1612 = vsub.f32 %v1610, %v1611
    %v1613 = vadd.f32 %v1325, %v1612
    %v1614 = vld [vmem:[#allocation3 + $0x20] sm:$0xff]
    %1616 = vrot.lane.b32.xlu0 %v1429, 32
    %v1617 = vpop.permute.xlu0 %1616
    %v1618 = vsel %vm447, %v1617, 0
    %1620 = vmatprep.subr.mxu0 0.0
    %1621 = vmatpush1.msra.mxu0 %v443
    %1622 = vmatprep.subr.mxu0 0.0
    %1623 = vmatpush1.msra.mxu0 %v444
    %1624 = vmatprep.subr.mxu0 0.0
    %1625 = vmatpush1.msra.mxu0 %v445
    %1626 = vmatprep.subr.mxu0 0.0
    %1627 = vmatpush1.msra.mxu0 %v446
    %1628 = vmatprep.subr.mxu0 0.0
    %1629 = vmatpush1.msra.mxu0 0.0
    %1630 = vmatprep.subr.mxu0 0.0
    %1631 = vmatpush1.msra.mxu0 0.0
    %1632 = vmatprep.subr.mxu0 0.0
    %1633 = vmatpush1.msra.mxu0 0.0
    %1634 = vmatprep.subr.mxu0 0.0
    %1635 = vmatpush1.msra.mxu0 0.0
    %1636 = vmatprep.subr.mxu0 0.0
    %1637 = vmatpush1.msra.mxu0 0.0
    %1638 = vmatprep.subr.mxu0 0.0
    %1639 = vmatpush1.msra.mxu0 0.0
    %1640 = vmatprep.subr.mxu0 0.0
    %1641 = vmatpush1.msra.mxu0 0.0
    %1642 = vmatprep.subr.mxu0 0.0
    %1643 = vmatpush1.msra.mxu0 0.0
    %1644 = vmatprep.subr.mxu0 0.0
    %1645 = vmatpush1.msra.mxu0 0.0
    %1646 = vmatprep.subr.mxu0 0.0
    %1647 = vmatpush1.msra.mxu0 0.0
    %1648 = vmatprep.subr.mxu0 0.0
    %1649 = vmatpush1.msra.mxu0 0.0
    %1650 = vmatprep.subr.mxu0 0.0
    %1651 = vmatpush1.msra.mxu0 0.0
    %1652 = vmatprep.subr.mxu0 0.0
    %1653 = vmatpush1.msra.mxu0 0.0
    %1654 = vmatprep.subr.mxu0 0.0
    %1655 = vmatpush1.msra.mxu0 0.0
    %1656 = vmatprep.subr.mxu0 0.0
    %1657 = vmatpush1.msra.mxu0 0.0
    %1658 = vmatprep.subr.mxu0 0.0
    %1659 = vmatpush1.msra.mxu0 0.0
    %1660 = vmatprep.subr.mxu0 0.0
    %1661 = vmatpush1.msra.mxu0 0.0
    %1662 = vmatprep.subr.mxu0 0.0
    %1663 = vmatpush1.msra.mxu0 0.0
    %1664 = vmatprep.subr.mxu0 0.0
    %1665 = vmatpush1.msra.mxu0 0.0
    %1666 = vmatprep.subr.mxu0 0.0
    %1667 = vmatpush1.msra.mxu0 0.0
    %1668 = vmatprep.subr.mxu0 0.0
    %1669 = vmatpush1.msra.mxu0 0.0
    %1670 = vmatprep.subr.mxu0 0.0
    %1671 = vmatpush1.msra.mxu0 0.0
    %1672 = vmatprep.subr.mxu0 0.0
    %1673 = vmatpush1.msra.mxu0 0.0
    %1674 = vmatprep.subr.mxu0 0.0
    %1675 = vmatpush1.msra.mxu0 0.0
    %1676 = vmatprep.subr.mxu0 0.0
    %1677 = vmatpush1.msra.mxu0 0.0
    %1678 = vmatprep.subr.mxu0 0.0
    %1679 = vmatpush1.msra.mxu0 0.0
    %1680 = vmatprep.subr.mxu0 0.0
    %1681 = vmatpush1.msra.mxu0 0.0
    %1682 = vmatprep.subr.mxu0 0.0
    %1683 = vmatpush1.msra.mxu0 0.0
    %1684 = vmatprep.mubr.f32.mxu0 0.0
    %1685 = vmatmul.mubr.f32.gmra.mrb[0].mxu0 %v1618
    %v1686 = vpop.f32.mrb[0].mxu0
    %v1687 = vadd.f32 0.0, %v1686
    %v1688 = vpop.f32.mrb[0].mxu0
    %1689 = vdwg.mxu0
    %v1690 = vadd.f32 %v1614, %v1687
    %v1691 = vadd.f32 %v1690, %v430
    %v1692 = vxor.u32 %v1691, 2147483648
    %v1693 = vmul.f32 %v1692, 1.442695
    %v1694 = vpow.pop %v1693
    %v1695 = vadd.f32 %v1694, 1.0
    %v1696 = vrcp.pop %v1695
    %v1697 = vmul.f32 1.0, %v1696
    %v1698 = vtanh.pop %v1691
    %v1699 = vmul.f32 %v1697, %v1421
    %1701 = vrot.lane.b32.xlu0 %v1698, 64
    %v1702 = vpop.permute.xlu0 %1701
    %v1704 = vmul.f32 %v1697, %v1702
    %1706 = vrot.lane.b32.xlu0 %v1704, 32
    %v1707 = vpop.permute.xlu0 %1706
    %v1709 = vadd.f32 %v1699, %v1707
    %v1710 = vtanh.pop %v1709
    %1712 = vrot.lane.b32.xlu0 %v1710, 64
    %v1713 = vpop.permute.xlu0 %1712
    %v1715 = vmul.f32 %v1697, %v1713
    %v1716 = vmul.f32 %v1432, %v554
    %v1717 = vsub.f32 %v1715, %v1716
    %vm1718 = vcmp.gt.f32.partialorder %v1717, %v554
    %v1719 = vsel %vm1718, 1, 0
    %v1720 = vcvt.s32.f32 %v1719
    %vm1721 = vcmp.gt.f32.partialorder %v1612, %v855
    %v1722 = vsel %vm1721, 1, 0
    %v1723 = vcvt.s32.f32 %v1722
    %1725 = vrot.lane.b32.xlu0 %v1612, 32
    %v1726 = vpop.permute.xlu0 %1725
    %v1727 = vsel %vm447, %v1726, 0
    %1729 = vmatprep.subr.mxu0 0.0
    %1730 = vmatpush1.msra.mxu0 %v566
    %1731 = vmatprep.subr.mxu0 0.0
    %1732 = vmatpush1.msra.mxu0 %v567
    %1733 = vmatprep.subr.mxu0 0.0
    %1734 = vmatpush1.msra.mxu0 %v568
    %1735 = vmatprep.subr.mxu0 0.0
    %1736 = vmatpush1.msra.mxu0 %v569
    %1737 = vmatprep.subr.mxu0 0.0
    %1738 = vmatpush1.msra.mxu0 0.0
    %1739 = vmatprep.subr.mxu0 0.0
    %1740 = vmatpush1.msra.mxu0 0.0
    %1741 = vmatprep.subr.mxu0 0.0
    %1742 = vmatpush1.msra.mxu0 0.0
    %1743 = vmatprep.subr.mxu0 0.0
    %1744 = vmatpush1.msra.mxu0 0.0
    %1745 = vmatprep.subr.mxu0 0.0
    %1746 = vmatpush1.msra.mxu0 0.0
    %1747 = vmatprep.subr.mxu0 0.0
    %1748 = vmatpush1.msra.mxu0 0.0
    %1749 = vmatprep.subr.mxu0 0.0
    %1750 = vmatpush1.msra.mxu0 0.0
    %1751 = vmatprep.subr.mxu0 0.0
    %1752 = vmatpush1.msra.mxu0 0.0
    %1753 = vmatprep.subr.mxu0 0.0
    %1754 = vmatpush1.msra.mxu0 0.0
    %1755 = vmatprep.subr.mxu0 0.0
    %1756 = vmatpush1.msra.mxu0 0.0
    %1757 = vmatprep.subr.mxu0 0.0
    %1758 = vmatpush1.msra.mxu0 0.0
    %1759 = vmatprep.subr.mxu0 0.0
    %1760 = vmatpush1.msra.mxu0 0.0
    %1761 = vmatprep.subr.mxu0 0.0
    %1762 = vmatpush1.msra.mxu0 0.0
    %1763 = vmatprep.subr.mxu0 0.0
    %1764 = vmatpush1.msra.mxu0 0.0
    %1765 = vmatprep.subr.mxu0 0.0
    %1766 = vmatpush1.msra.mxu0 0.0
    %1767 = vmatprep.subr.mxu0 0.0
    %1768 = vmatpush1.msra.mxu0 0.0
    %1769 = vmatprep.subr.mxu0 0.0
    %1770 = vmatpush1.msra.mxu0 0.0
    %1771 = vmatprep.subr.mxu0 0.0
    %1772 = vmatpush1.msra.mxu0 0.0
    %1773 = vmatprep.subr.mxu0 0.0
    %1774 = vmatpush1.msra.mxu0 0.0
    %1775 = vmatprep.subr.mxu0 0.0
    %1776 = vmatpush1.msra.mxu0 0.0
    %1777 = vmatprep.subr.mxu0 0.0
    %1778 = vmatpush1.msra.mxu0 0.0
    %1779 = vmatprep.subr.mxu0 0.0
    %1780 = vmatpush1.msra.mxu0 0.0
    %1781 = vmatprep.subr.mxu0 0.0
    %1782 = vmatpush1.msra.mxu0 0.0
    %1783 = vmatprep.subr.mxu0 0.0
    %1784 = vmatpush1.msra.mxu0 0.0
    %1785 = vmatprep.subr.mxu0 0.0
    %1786 = vmatpush1.msra.mxu0 0.0
    %1787 = vmatprep.subr.mxu0 0.0
    %1788 = vmatpush1.msra.mxu0 0.0
    %1789 = vmatprep.subr.mxu0 0.0
    %1790 = vmatpush1.msra.mxu0 0.0
    %1791 = vmatprep.subr.mxu0 0.0
    %1792 = vmatpush1.msra.mxu0 0.0
    %1793 = vmatprep.mubr.f32.mxu0 0.0
    %1794 = vmatmul.mubr.f32.gmra.mrb[0].mxu0 %v1727
    %v1795 = vpop.f32.mrb[0].mxu0
    %v1796 = vadd.f32 0.0, %v1795
    %v1797 = vpop.f32.mrb[0].mxu0
    %1798 = vdwg.mxu0
    %1800 = vrot.lane.b32.xlu0 %v1720, 32
    %v1801 = vpop.permute.xlu0 %1800
    %v1802 = vsel %vm447, %v1801, 0
    %1804 = vmatprep.subr.mxu0 0.0
    %1805 = vmatpush1.msra.mxu0 %v562
    %1806 = vmatprep.subr.mxu0 0.0
    %1807 = vmatpush1.msra.mxu0 %v563
    %1808 = vmatprep.subr.mxu0 0.0
    %1809 = vmatpush1.msra.mxu0 %v564
    %1810 = vmatprep.subr.mxu0 0.0
    %1811 = vmatpush1.msra.mxu0 %v565
    %1812 = vmatprep.subr.mxu0 0.0
    %1813 = vmatpush1.msra.mxu0 0.0
    %1814 = vmatprep.subr.mxu0 0.0
    %1815 = vmatpush1.msra.mxu0 0.0
    %1816 = vmatprep.subr.mxu0 0.0
    %1817 = vmatpush1.msra.mxu0 0.0
    %1818 = vmatprep.subr.mxu0 0.0
    %1819 = vmatpush1.msra.mxu0 0.0
    %1820 = vmatprep.subr.mxu0 0.0
    %1821 = vmatpush1.msra.mxu0 0.0
    %1822 = vmatprep.subr.mxu0 0.0
    %1823 = vmatpush1.msra.mxu0 0.0
    %1824 = vmatprep.subr.mxu0 0.0
    %1825 = vmatpush1.msra.mxu0 0.0
    %1826 = vmatprep.subr.mxu0 0.0
    %1827 = vmatpush1.msra.mxu0 0.0
    %1828 = vmatprep.subr.mxu0 0.0
    %1829 = vmatpush1.msra.mxu0 0.0
    %1830 = vmatprep.subr.mxu0 0.0
    %1831 = vmatpush1.msra.mxu0 0.0
    %1832 = vmatprep.subr.mxu0 0.0
    %1833 = vmatpush1.msra.mxu0 0.0
    %1834 = vmatprep.subr.mxu0 0.0
    %1835 = vmatpush1.msra.mxu0 0.0
    %1836 = vmatprep.subr.mxu0 0.0
    %1837 = vmatpush1.msra.mxu0 0.0
    %1838 = vmatprep.subr.mxu0 0.0
    %1839 = vmatpush1.msra.mxu0 0.0
    %1840 = vmatprep.subr.mxu0 0.0
    %1841 = vmatpush1.msra.mxu0 0.0
    %1842 = vmatprep.subr.mxu0 0.0
    %1843 = vmatpush1.msra.mxu0 0.0
    %1844 = vmatprep.subr.mxu0 0.0
    %1845 = vmatpush1.msra.mxu0 0.0
    %1846 = vmatprep.subr.mxu0 0.0
    %1847 = vmatpush1.msra.mxu0 0.0
    %1848 = vmatprep.subr.mxu0 0.0
    %1849 = vmatpush1.msra.mxu0 0.0
    %1850 = vmatprep.subr.mxu0 0.0
    %1851 = vmatpush1.msra.mxu0 0.0
    %1852 = vmatprep.subr.mxu0 0.0
    %1853 = vmatpush1.msra.mxu0 0.0
    %1854 = vmatprep.subr.mxu0 0.0
    %1855 = vmatpush1.msra.mxu0 0.0
    %1856 = vmatprep.subr.mxu0 0.0
    %1857 = vmatpush1.msra.mxu0 0.0
    %1858 = vmatprep.subr.mxu0 0.0
    %1859 = vmatpush1.msra.mxu0 0.0
    %1860 = vmatprep.subr.mxu0 0.0
    %1861 = vmatpush1.msra.mxu0 0.0
    %1862 = vmatprep.subr.mxu0 0.0
    %1863 = vmatpush1.msra.mxu0 0.0
    %1864 = vmatprep.subr.mxu0 0.0
    %1865 = vmatpush1.msra.mxu0 0.0
    %1866 = vmatprep.subr.mxu0 0.0
    %1867 = vmatpush1.msra.mxu0 0.0
    %1868 = vmatprep.mubr.f32.mxu0 0.0
    %1869 = vmatmul.mubr.f32.gmra.mrb[0].mxu0 %v1802
    %v1870 = vpop.f32.mrb[0].mxu0
    %v1871 = vadd.f32 %v1796, %v1870
    %v1872 = vpop.f32.mrb[0].mxu0
    %1873 = vdwg.mxu0
    %v1874 = vadd.f32 %v1871, %v437
    %v1875 = vxor.u32 %v1874, 2147483648
    %v1876 = vmul.f32 %v1875, 1.442695
    %v1877 = vpow.pop %v1876
    %v1878 = vadd.f32 %v1877, 1.0
    %v1879 = vrcp.pop %v1878
    %v1880 = vmul.f32 1.0, %v1879
    %v1881 = vtanh.pop %v1874
    %v1882 = vmul.f32 %v1880, %v1604
    %1884 = vrot.lane.b32.xlu0 %v1881, 64
    %v1885 = vpop.permute.xlu0 %1884
    %v1887 = vmul.f32 %v1880, %v1885
    %1889 = vrot.lane.b32.xlu0 %v1887, 32
    %v1890 = vpop.permute.xlu0 %1889
    %v1892 = vadd.f32 %v1882, %v1890
    %v1893 = vtanh.pop %v1892
    %1895 = vrot.lane.b32.xlu0 %v1893, 64
    %v1896 = vpop.permute.xlu0 %1895
    %v1898 = vmul.f32 %v1880, %v1896
    %v1899 = vmul.f32 %v1723, %v855
    %v1900 = vsub.f32 %v1898, %v1899
    %v1901 = vadd.f32 %v1613, %v1900
    %v1902 = vld [vmem:[#allocation3 + $0x28] sm:$0xff]
    %1904 = vrot.lane.b32.xlu0 %v1717, 32
    %v1905 = vpop.permute.xlu0 %1904
    %v1906 = vsel %vm447, %v1905, 0
    %1908 = vmatprep.subr.mxu0 0.0
    %1909 = vmatpush1.msra.mxu0 %v443
    %1910 = vmatprep.subr.mxu0 0.0
    %1911 = vmatpush1.msra.mxu0 %v444
    %1912 = vmatprep.subr.mxu0 0.0
    %1913 = vmatpush1.msra.mxu0 %v445
    %1914 = vmatprep.subr.mxu0 0.0
    %1915 = vmatpush1.msra.mxu0 %v446
    %1916 = vmatprep.subr.mxu0 0.0
    %1917 = vmatpush1.msra.mxu0 0.0
    %1918 = vmatprep.subr.mxu0 0.0
    %1919 = vmatpush1.msra.mxu0 0.0
    %1920 = vmatprep.subr.mxu0 0.0
    %1921 = vmatpush1.msra.mxu0 0.0
    %1922 = vmatprep.subr.mxu0 0.0
    %1923 = vmatpush1.msra.mxu0 0.0
    %1924 = vmatprep.subr.mxu0 0.0
    %1925 = vmatpush1.msra.mxu0 0.0
    %1926 = vmatprep.subr.mxu0 0.0
    %1927 = vmatpush1.msra.mxu0 0.0
    %1928 = vmatprep.subr.mxu0 0.0
    %1929 = vmatpush1.msra.mxu0 0.0
    %1930 = vmatprep.subr.mxu0 0.0
    %1931 = vmatpush1.msra.mxu0 0.0
    %1932 = vmatprep.subr.mxu0 0.0
    %1933 = vmatpush1.msra.mxu0 0.0
    %1934 = vmatprep.subr.mxu0 0.0
    %1935 = vmatpush1.msra.mxu0 0.0
    %1936 = vmatprep.subr.mxu0 0.0
    %1937 = vmatpush1.msra.mxu0 0.0
    %1938 = vmatprep.subr.mxu0 0.0
    %1939 = vmatpush1.msra.mxu0 0.0
    %1940 = vmatprep.subr.mxu0 0.0
    %1941 = vmatpush1.msra.mxu0 0.0
    %1942 = vmatprep.subr.mxu0 0.0
    %1943 = vmatpush1.msra.mxu0 0.0
    %1944 = vmatprep.subr.mxu0 0.0
    %1945 = vmatpush1.msra.mxu0 0.0
    %1946 = vmatprep.subr.mxu0 0.0
    %1947 = vmatpush1.msra.mxu0 0.0
    %1948 = vmatprep.subr.mxu0 0.0
    %1949 = vmatpush1.msra.mxu0 0.0
    %1950 = vmatprep.subr.mxu0 0.0
    %1951 = vmatpush1.msra.mxu0 0.0
    %1952 = vmatprep.subr.mxu0 0.0
    %1953 = vmatpush1.msra.mxu0 0.0
    %1954 = vmatprep.subr.mxu0 0.0
    %1955 = vmatpush1.msra.mxu0 0.0
    %1956 = vmatprep.subr.mxu0 0.0
    %1957 = vmatpush1.msra.mxu0 0.0
    %1958 = vmatprep.subr.mxu0 0.0
    %1959 = vmatpush1.msra.mxu0 0.0
    %1960 = vmatprep.subr.mxu0 0.0
    %1961 = vmatpush1.msra.mxu0 0.0
    %1962 = vmatprep.subr.mxu0 0.0
    %1963 = vmatpush1.msra.mxu0 0.0
    %1964 = vmatprep.subr.mxu0 0.0
    %1965 = vmatpush1.msra.mxu0 0.0
    %1966 = vmatprep.subr.mxu0 0.0
    %1967 = vmatpush1.msra.mxu0 0.0
    %1968 = vmatprep.subr.mxu0 0.0
    %1969 = vmatpush1.msra.mxu0 0.0
    %1970 = vmatprep.subr.mxu0 0.0
    %1971 = vmatpush1.msra.mxu0 0.0
    %1972 = vmatprep.mubr.f32.mxu0 0.0
    %1973 = vmatmul.mubr.f32.gmra.mrb[0].mxu0 %v1906
    %v1974 = vpop.f32.mrb[0].mxu0
    %v1975 = vadd.f32 0.0, %v1974
    %v1976 = vpop.f32.mrb[0].mxu0
    %1977 = vdwg.mxu0
    %v1978 = vadd.f32 %v1902, %v1975
    %v1979 = vadd.f32 %v1978, %v430
    %v1980 = vxor.u32 %v1979, 2147483648
    %v1981 = vmul.f32 %v1980, 1.442695
    %v1982 = vpow.pop %v1981
    %v1983 = vadd.f32 %v1982, 1.0
    %v1984 = vrcp.pop %v1983
    %v1985 = vmul.f32 1.0, %v1984
    %v1986 = vtanh.pop %v1979
    %v1987 = vmul.f32 %v1985, %v1709
    %1989 = vrot.lane.b32.xlu0 %v1986, 64
    %v1990 = vpop.permute.xlu0 %1989
    %v1992 = vmul.f32 %v1985, %v1990
    %1994 = vrot.lane.b32.xlu0 %v1992, 32
    %v1995 = vpop.permute.xlu0 %1994
    %v1997 = vadd.f32 %v1987, %v1995
    %v1998 = vtanh.pop %v1997
    %2000 = vrot.lane.b32.xlu0 %v1998, 64
    %v2001 = vpop.permute.xlu0 %2000
    %v2003 = vmul.f32 %v1985, %v2001
    %v2004 = vmul.f32 %v1720, %v554
    %v2005 = vsub.f32 %v2003, %v2004
    %vm2006 = vcmp.gt.f32.partialorder %v2005, %v554
    %v2007 = vsel %vm2006, 1, 0
    %v2008 = vcvt.s32.f32 %v2007
    %vm2009 = vcmp.gt.f32.partialorder %v1900, %v855
    %v2010 = vsel %vm2009, 1, 0
    %v2011 = vcvt.s32.f32 %v2010
    %2013 = vrot.lane.b32.xlu0 %v1900, 32
    %v2014 = vpop.permute.xlu0 %2013
    %v2015 = vsel %vm447, %v2014, 0
    %2017 = vmatprep.subr.mxu0 0.0
    %2018 = vmatpush1.msra.mxu0 %v566
    %2019 = vmatprep.subr.mxu0 0.0
    %2020 = vmatpush1.msra.mxu0 %v567
    %2021 = vmatprep.subr.mxu0 0.0
    %2022 = vmatpush1.msra.mxu0 %v568
    %2023 = vmatprep.subr.mxu0 0.0
    %2024 = vmatpush1.msra.mxu0 %v569
    %2025 = vmatprep.subr.mxu0 0.0
    %2026 = vmatpush1.msra.mxu0 0.0
    %2027 = vmatprep.subr.mxu0 0.0
    %2028 = vmatpush1.msra.mxu0 0.0
    %2029 = vmatprep.subr.mxu0 0.0
    %2030 = vmatpush1.msra.mxu0 0.0
    %2031 = vmatprep.subr.mxu0 0.0
    %2032 = vmatpush1.msra.mxu0 0.0
    %2033 = vmatprep.subr.mxu0 0.0
    %2034 = vmatpush1.msra.mxu0 0.0
    %2035 = vmatprep.subr.mxu0 0.0
    %2036 = vmatpush1.msra.mxu0 0.0
    %2037 = vmatprep.subr.mxu0 0.0
    %2038 = vmatpush1.msra.mxu0 0.0
    %2039 = vmatprep.subr.mxu0 0.0
    %2040 = vmatpush1.msra.mxu0 0.0
    %2041 = vmatprep.subr.mxu0 0.0
    %2042 = vmatpush1.msra.mxu0 0.0
    %2043 = vmatprep.subr.mxu0 0.0
    %2044 = vmatpush1.msra.mxu0 0.0
    %2045 = vmatprep.subr.mxu0 0.0
    %2046 = vmatpush1.msra.mxu0 0.0
    %2047 = vmatprep.subr.mxu0 0.0
    %2048 = vmatpush1.msra.mxu0 0.0
    %2049 = vmatprep.subr.mxu0 0.0
    %2050 = vmatpush1.msra.mxu0 0.0
    %2051 = vmatprep.subr.mxu0 0.0
    %2052 = vmatpush1.msra.mxu0 0.0
    %2053 = vmatprep.subr.mxu0 0.0
    %2054 = vmatpush1.msra.mxu0 0.0
    %2055 = vmatprep.subr.mxu0 0.0
    %2056 = vmatpush1.msra.mxu0 0.0
    %2057 = vmatprep.subr.mxu0 0.0
    %2058 = vmatpush1.msra.mxu0 0.0
    %2059 = vmatprep.subr.mxu0 0.0
    %2060 = vmatpush1.msra.mxu0 0.0
    %2061 = vmatprep.subr.mxu0 0.0
    %2062 = vmatpush1.msra.mxu0 0.0
    %2063 = vmatprep.subr.mxu0 0.0
    %2064 = vmatpush1.msra.mxu0 0.0
    %2065 = vmatprep.subr.mxu0 0.0
    %2066 = vmatpush1.msra.mxu0 0.0
    %2067 = vmatprep.subr.mxu0 0.0
    %2068 = vmatpush1.msra.mxu0 0.0
    %2069 = vmatprep.subr.mxu0 0.0
    %2070 = vmatpush1.msra.mxu0 0.0
    %2071 = vmatprep.subr.mxu0 0.0
    %2072 = vmatpush1.msra.mxu0 0.0
    %2073 = vmatprep.subr.mxu0 0.0
    %2074 = vmatpush1.msra.mxu0 0.0
    %2075 = vmatprep.subr.mxu0 0.0
    %2076 = vmatpush1.msra.mxu0 0.0
    %2077 = vmatprep.subr.mxu0 0.0
    %2078 = vmatpush1.msra.mxu0 0.0
    %2079 = vmatprep.subr.mxu0 0.0
    %2080 = vmatpush1.msra.mxu0 0.0
    %2081 = vmatprep.mubr.f32.mxu0 0.0
    %2082 = vmatmul.mubr.f32.gmra.mrb[0].mxu0 %v2015
    %v2083 = vpop.f32.mrb[0].mxu0
    %v2084 = vadd.f32 0.0, %v2083
    %v2085 = vpop.f32.mrb[0].mxu0
    %2086 = vdwg.mxu0
    %2088 = vrot.lane.b32.xlu0 %v2008, 32
    %v2089 = vpop.permute.xlu0 %2088
    %v2090 = vsel %vm447, %v2089, 0
    %2092 = vmatprep.subr.mxu0 0.0
    %2093 = vmatpush1.msra.mxu0 %v562
    %2094 = vmatprep.subr.mxu0 0.0
    %2095 = vmatpush1.msra.mxu0 %v563
    %2096 = vmatprep.subr.mxu0 0.0
    %2097 = vmatpush1.msra.mxu0 %v564
    %2098 = vmatprep.subr.mxu0 0.0
    %2099 = vmatpush1.msra.mxu0 %v565
    %2100 = vmatprep.subr.mxu0 0.0
    %2101 = vmatpush1.msra.mxu0 0.0
    %2102 = vmatprep.subr.mxu0 0.0
    %2103 = vmatpush1.msra.mxu0 0.0
    %2104 = vmatprep.subr.mxu0 0.0
    %2105 = vmatpush1.msra.mxu0 0.0
    %2106 = vmatprep.subr.mxu0 0.0
    %2107 = vmatpush1.msra.mxu0 0.0
    %2108 = vmatprep.subr.mxu0 0.0
    %2109 = vmatpush1.msra.mxu0 0.0
    %2110 = vmatprep.subr.mxu0 0.0
    %2111 = vmatpush1.msra.mxu0 0.0
    %2112 = vmatprep.subr.mxu0 0.0
    %2113 = vmatpush1.msra.mxu0 0.0
    %2114 = vmatprep.subr.mxu0 0.0
    %2115 = vmatpush1.msra.mxu0 0.0
    %2116 = vmatprep.subr.mxu0 0.0
    %2117 = vmatpush1.msra.mxu0 0.0
    %2118 = vmatprep.subr.mxu0 0.0
    %2119 = vmatpush1.msra.mxu0 0.0
    %2120 = vmatprep.subr.mxu0 0.0
    %2121 = vmatpush1.msra.mxu0 0.0
    %2122 = vmatprep.subr.mxu0 0.0
    %2123 = vmatpush1.msra.mxu0 0.0
    %2124 = vmatprep.subr.mxu0 0.0
    %2125 = vmatpush1.msra.mxu0 0.0
    %2126 = vmatprep.subr.mxu0 0.0
    %2127 = vmatpush1.msra.mxu0 0.0
    %2128 = vmatprep.subr.mxu0 0.0
    %2129 = vmatpush1.msra.mxu0 0.0
    %2130 = vmatprep.subr.mxu0 0.0
    %2131 = vmatpush1.msra.mxu0 0.0
    %2132 = vmatprep.subr.mxu0 0.0
    %2133 = vmatpush1.msra.mxu0 0.0
    %2134 = vmatprep.subr.mxu0 0.0
    %2135 = vmatpush1.msra.mxu0 0.0
    %2136 = vmatprep.subr.mxu0 0.0
    %2137 = vmatpush1.msra.mxu0 0.0
    %2138 = vmatprep.subr.mxu0 0.0
    %2139 = vmatpush1.msra.mxu0 0.0
    %2140 = vmatprep.subr.mxu0 0.0
    %2141 = vmatpush1.msra.mxu0 0.0
    %2142 = vmatprep.subr.mxu0 0.0
    %2143 = vmatpush1.msra.mxu0 0.0
    %2144 = vmatprep.subr.mxu0 0.0
    %2145 = vmatpush1.msra.mxu0 0.0
    %2146 = vmatprep.subr.mxu0 0.0
    %2147 = vmatpush1.msra.mxu0 0.0
    %2148 = vmatprep.subr.mxu0 0.0
    %2149 = vmatpush1.msra.mxu0 0.0
    %2150 = vmatprep.subr.mxu0 0.0
    %2151 = vmatpush1.msra.mxu0 0.0
    %2152 = vmatprep.subr.mxu0 0.0
    %2153 = vmatpush1.msra.mxu0 0.0
    %2154 = vmatprep.subr.mxu0 0.0
    %2155 = vmatpush1.msra.mxu0 0.0
    %2156 = vmatprep.mubr.f32.mxu0 0.0
    %2157 = vmatmul.mubr.f32.gmra.mrb[0].mxu0 %v2090
    %v2158 = vpop.f32.mrb[0].mxu0
    %v2159 = vadd.f32 %v2084, %v2158
    %v2160 = vpop.f32.mrb[0].mxu0
    %2161 = vdwg.mxu0
    %v2162 = vadd.f32 %v2159, %v437
    %v2163 = vxor.u32 %v2162, 2147483648
    %v2164 = vmul.f32 %v2163, 1.442695
    %v2165 = vpow.pop %v2164
    %v2166 = vadd.f32 %v2165, 1.0
    %v2167 = vrcp.pop %v2166
    %v2168 = vmul.f32 1.0, %v2167
    %v2169 = vtanh.pop %v2162
    %v2170 = vmul.f32 %v2168, %v1892
    %2172 = vrot.lane.b32.xlu0 %v2169, 64
    %v2173 = vpop.permute.xlu0 %2172
    %v2175 = vmul.f32 %v2168, %v2173
    %2177 = vrot.lane.b32.xlu0 %v2175, 32
    %v2178 = vpop.permute.xlu0 %2177
    %v2180 = vadd.f32 %v2170, %v2178
    %v2181 = vtanh.pop %v2180
    %2183 = vrot.lane.b32.xlu0 %v2181, 64
    %v2184 = vpop.permute.xlu0 %2183
    %v2186 = vmul.f32 %v2168, %v2184
    %v2187 = vmul.f32 %v2011, %v855
    %v2188 = vsub.f32 %v2186, %v2187
    %v2189 = vadd.f32 %v1901, %v2188
    %v2190 = vld [vmem:[#allocation3 + $0x30] sm:$0xff]
    %2192 = vrot.lane.b32.xlu0 %v2005, 32
    %v2193 = vpop.permute.xlu0 %2192
    %v2194 = vsel %vm447, %v2193, 0
    %2196 = vmatprep.subr.mxu0 0.0
    %2197 = vmatpush1.msra.mxu0 %v443
    %2198 = vmatprep.subr.mxu0 0.0
    %2199 = vmatpush1.msra.mxu0 %v444
    %2200 = vmatprep.subr.mxu0 0.0
    %2201 = vmatpush1.msra.mxu0 %v445
    %2202 = vmatprep.subr.mxu0 0.0
    %2203 = vmatpush1.msra.mxu0 %v446
    %2204 = vmatprep.subr.mxu0 0.0
    %2205 = vmatpush1.msra.mxu0 0.0
    %2206 = vmatprep.subr.mxu0 0.0
    %2207 = vmatpush1.msra.mxu0 0.0
    %2208 = vmatprep.subr.mxu0 0.0
    %2209 = vmatpush1.msra.mxu0 0.0
    %2210 = vmatprep.subr.mxu0 0.0
    %2211 = vmatpush1.msra.mxu0 0.0
    %2212 = vmatprep.subr.mxu0 0.0
    %2213 = vmatpush1.msra.mxu0 0.0
    %2214 = vmatprep.subr.mxu0 0.0
    %2215 = vmatpush1.msra.mxu0 0.0
    %2216 = vmatprep.subr.mxu0 0.0
    %2217 = vmatpush1.msra.mxu0 0.0
    %2218 = vmatprep.subr.mxu0 0.0
    %2219 = vmatpush1.msra.mxu0 0.0
    %2220 = vmatprep.subr.mxu0 0.0
    %2221 = vmatpush1.msra.mxu0 0.0
    %2222 = vmatprep.subr.mxu0 0.0
    %2223 = vmatpush1.msra.mxu0 0.0
    %2224 = vmatprep.subr.mxu0 0.0
    %2225 = vmatpush1.msra.mxu0 0.0
    %2226 = vmatprep.subr.mxu0 0.0
    %2227 = vmatpush1.msra.mxu0 0.0
    %2228 = vmatprep.subr.mxu0 0.0
    %2229 = vmatpush1.msra.mxu0 0.0
    %2230 = vmatprep.subr.mxu0 0.0
    %2231 = vmatpush1.msra.mxu0 0.0
    %2232 = vmatprep.subr.mxu0 0.0
    %2233 = vmatpush1.msra.mxu0 0.0
    %2234 = vmatprep.subr.mxu0 0.0
    %2235 = vmatpush1.msra.mxu0 0.0
    %2236 = vmatprep.subr.mxu0 0.0
    %2237 = vmatpush1.msra.mxu0 0.0
    %2238 = vmatprep.subr.mxu0 0.0
    %2239 = vmatpush1.msra.mxu0 0.0
    %2240 = vmatprep.subr.mxu0 0.0
    %2241 = vmatpush1.msra.mxu0 0.0
    %2242 = vmatprep.subr.mxu0 0.0
    %2243 = vmatpush1.msra.mxu0 0.0
    %2244 = vmatprep.subr.mxu0 0.0
    %2245 = vmatpush1.msra.mxu0 0.0
    %2246 = vmatprep.subr.mxu0 0.0
    %2247 = vmatpush1.msra.mxu0 0.0
    %2248 = vmatprep.subr.mxu0 0.0
    %2249 = vmatpush1.msra.mxu0 0.0
    %2250 = vmatprep.subr.mxu0 0.0
    %2251 = vmatpush1.msra.mxu0 0.0
    %2252 = vmatprep.subr.mxu0 0.0
    %2253 = vmatpush1.msra.mxu0 0.0
    %2254 = vmatprep.subr.mxu0 0.0
    %2255 = vmatpush1.msra.mxu0 0.0
    %2256 = vmatprep.subr.mxu0 0.0
    %2257 = vmatpush1.msra.mxu0 0.0
    %2258 = vmatprep.subr.mxu0 0.0
    %2259 = vmatpush1.msra.mxu0 0.0
    %2260 = vmatprep.mubr.f32.mxu0 0.0
    %2261 = vmatmul.mubr.f32.gmra.mrb[0].mxu0 %v2194
    %v2262 = vpop.f32.mrb[0].mxu0
    %v2263 = vadd.f32 0.0, %v2262
    %v2264 = vpop.f32.mrb[0].mxu0
    %2265 = vdwg.mxu0
    %v2266 = vadd.f32 %v2190, %v2263
    %v2267 = vadd.f32 %v2266, %v430
    %v2268 = vxor.u32 %v2267, 2147483648
    %v2269 = vmul.f32 %v2268, 1.442695
    %v2270 = vpow.pop %v2269
    %v2271 = vadd.f32 %v2270, 1.0
    %v2272 = vrcp.pop %v2271
    %v2273 = vmul.f32 1.0, %v2272
    %v2274 = vtanh.pop %v2267
    %v2275 = vmul.f32 %v2273, %v1997
    %2277 = vrot.lane.b32.xlu0 %v2274, 64
    %v2278 = vpop.permute.xlu0 %2277
    %v2280 = vmul.f32 %v2273, %v2278
    %2282 = vrot.lane.b32.xlu0 %v2280, 32
    %v2283 = vpop.permute.xlu0 %2282
    %v2285 = vadd.f32 %v2275, %v2283
    %v2286 = vtanh.pop %v2285
    %2288 = vrot.lane.b32.xlu0 %v2286, 64
    %v2289 = vpop.permute.xlu0 %2288
    %v2291 = vmul.f32 %v2273, %v2289
    %v2292 = vmul.f32 %v2008, %v554
    %v2293 = vsub.f32 %v2291, %v2292
    %vm2294 = vcmp.gt.f32.partialorder %v2293, %v554
    %v2295 = vsel %vm2294, 1, 0
    %v2296 = vcvt.s32.f32 %v2295
    %vm2297 = vcmp.gt.f32.partialorder %v2188, %v855
    %v2298 = vsel %vm2297, 1, 0
    %v2299 = vcvt.s32.f32 %v2298
    %2301 = vrot.lane.b32.xlu0 %v2188, 32
    %v2302 = vpop.permute.xlu0 %2301
    %v2303 = vsel %vm447, %v2302, 0
    %2305 = vmatprep.subr.mxu0 0.0
    %2306 = vmatpush1.msra.mxu0 %v566
    %2307 = vmatprep.subr.mxu0 0.0
    %2308 = vmatpush1.msra.mxu0 %v567
    %2309 = vmatprep.subr.mxu0 0.0
    %2310 = vmatpush1.msra.mxu0 %v568
    %2311 = vmatprep.subr.mxu0 0.0
    %2312 = vmatpush1.msra.mxu0 %v569
    %2313 = vmatprep.subr.mxu0 0.0
    %2314 = vmatpush1.msra.mxu0 0.0
    %2315 = vmatprep.subr.mxu0 0.0
    %2316 = vmatpush1.msra.mxu0 0.0
    %2317 = vmatprep.subr.mxu0 0.0
    %2318 = vmatpush1.msra.mxu0 0.0
    %2319 = vmatprep.subr.mxu0 0.0
    %2320 = vmatpush1.msra.mxu0 0.0
    %2321 = vmatprep.subr.mxu0 0.0
    %2322 = vmatpush1.msra.mxu0 0.0
    %2323 = vmatprep.subr.mxu0 0.0
    %2324 = vmatpush1.msra.mxu0 0.0
    %2325 = vmatprep.subr.mxu0 0.0
    %2326 = vmatpush1.msra.mxu0 0.0
    %2327 = vmatprep.subr.mxu0 0.0
    %2328 = vmatpush1.msra.mxu0 0.0
    %2329 = vmatprep.subr.mxu0 0.0
    %2330 = vmatpush1.msra.mxu0 0.0
    %2331 = vmatprep.subr.mxu0 0.0
    %2332 = vmatpush1.msra.mxu0 0.0
    %2333 = vmatprep.subr.mxu0 0.0
    %2334 = vmatpush1.msra.mxu0 0.0
    %2335 = vmatprep.subr.mxu0 0.0
    %2336 = vmatpush1.msra.mxu0 0.0
    %2337 = vmatprep.subr.mxu0 0.0
    %2338 = vmatpush1.msra.mxu0 0.0
    %2339 = vmatprep.subr.mxu0 0.0
    %2340 = vmatpush1.msra.mxu0 0.0
    %2341 = vmatprep.subr.mxu0 0.0
    %2342 = vmatpush1.msra.mxu0 0.0
    %2343 = vmatprep.subr.mxu0 0.0
    %2344 = vmatpush1.msra.mxu0 0.0
    %2345 = vmatprep.subr.mxu0 0.0
    %2346 = vmatpush1.msra.mxu0 0.0
    %2347 = vmatprep.subr.mxu0 0.0
    %2348 = vmatpush1.msra.mxu0 0.0
    %2349 = vmatprep.subr.mxu0 0.0
    %2350 = vmatpush1.msra.mxu0 0.0
    %2351 = vmatprep.subr.mxu0 0.0
    %2352 = vmatpush1.msra.mxu0 0.0
    %2353 = vmatprep.subr.mxu0 0.0
    %2354 = vmatpush1.msra.mxu0 0.0
    %2355 = vmatprep.subr.mxu0 0.0
    %2356 = vmatpush1.msra.mxu0 0.0
    %2357 = vmatprep.subr.mxu0 0.0
    %2358 = vmatpush1.msra.mxu0 0.0
    %2359 = vmatprep.subr.mxu0 0.0
    %2360 = vmatpush1.msra.mxu0 0.0
    %2361 = vmatprep.subr.mxu0 0.0
    %2362 = vmatpush1.msra.mxu0 0.0
    %2363 = vmatprep.subr.mxu0 0.0
    %2364 = vmatpush1.msra.mxu0 0.0
    %2365 = vmatprep.subr.mxu0 0.0
    %2366 = vmatpush1.msra.mxu0 0.0
    %2367 = vmatprep.subr.mxu0 0.0
    %2368 = vmatpush1.msra.mxu0 0.0
    %2369 = vmatprep.mubr.f32.mxu0 0.0
    %2370 = vmatmul.mubr.f32.gmra.mrb[0].mxu0 %v2303
    %v2371 = vpop.f32.mrb[0].mxu0
    %v2372 = vadd.f32 0.0, %v2371
    %v2373 = vpop.f32.mrb[0].mxu0
    %2374 = vdwg.mxu0
    %2376 = vrot.lane.b32.xlu0 %v2296, 32
    %v2377 = vpop.permute.xlu0 %2376
    %v2378 = vsel %vm447, %v2377, 0
    %2380 = vmatprep.subr.mxu0 0.0
    %2381 = vmatpush1.msra.mxu0 %v562
    %2382 = vmatprep.subr.mxu0 0.0
    %2383 = vmatpush1.msra.mxu0 %v563
    %2384 = vmatprep.subr.mxu0 0.0
    %2385 = vmatpush1.msra.mxu0 %v564
    %2386 = vmatprep.subr.mxu0 0.0
    %2387 = vmatpush1.msra.mxu0 %v565
    %2388 = vmatprep.subr.mxu0 0.0
    %2389 = vmatpush1.msra.mxu0 0.0
    %2390 = vmatprep.subr.mxu0 0.0
    %2391 = vmatpush1.msra.mxu0 0.0
    %2392 = vmatprep.subr.mxu0 0.0
    %2393 = vmatpush1.msra.mxu0 0.0
    %2394 = vmatprep.subr.mxu0 0.0
    %2395 = vmatpush1.msra.mxu0 0.0
    %2396 = vmatprep.subr.mxu0 0.0
    %2397 = vmatpush1.msra.mxu0 0.0
    %2398 = vmatprep.subr.mxu0 0.0
    %2399 = vmatpush1.msra.mxu0 0.0
    %2400 = vmatprep.subr.mxu0 0.0
    %2401 = vmatpush1.msra.mxu0 0.0
    %2402 = vmatprep.subr.mxu0 0.0
    %2403 = vmatpush1.msra.mxu0 0.0
    %2404 = vmatprep.subr.mxu0 0.0
    %2405 = vmatpush1.msra.mxu0 0.0
    %2406 = vmatprep.subr.mxu0 0.0
    %2407 = vmatpush1.msra.mxu0 0.0
    %2408 = vmatprep.subr.mxu0 0.0
    %2409 = vmatpush1.msra.mxu0 0.0
    %2410 = vmatprep.subr.mxu0 0.0
    %2411 = vmatpush1.msra.mxu0 0.0
    %2412 = vmatprep.subr.mxu0 0.0
    %2413 = vmatpush1.msra.mxu0 0.0
    %2414 = vmatprep.subr.mxu0 0.0
    %2415 = vmatpush1.msra.mxu0 0.0
    %2416 = vmatprep.subr.mxu0 0.0
    %2417 = vmatpush1.msra.mxu0 0.0
    %2418 = vmatprep.subr.mxu0 0.0
    %2419 = vmatpush1.msra.mxu0 0.0
    %2420 = vmatprep.subr.mxu0 0.0
    %2421 = vmatpush1.msra.mxu0 0.0
    %2422 = vmatprep.subr.mxu0 0.0
    %2423 = vmatpush1.msra.mxu0 0.0
    %2424 = vmatprep.subr.mxu0 0.0
    %2425 = vmatpush1.msra.mxu0 0.0
    %2426 = vmatprep.subr.mxu0 0.0
    %2427 = vmatpush1.msra.mxu0 0.0
    %2428 = vmatprep.subr.mxu0 0.0
    %2429 = vmatpush1.msra.mxu0 0.0
    %2430 = vmatprep.subr.mxu0 0.0
    %2431 = vmatpush1.msra.mxu0 0.0
    %2432 = vmatprep.subr.mxu0 0.0
    %2433 = vmatpush1.msra.mxu0 0.0
    %2434 = vmatprep.subr.mxu0 0.0
    %2435 = vmatpush1.msra.mxu0 0.0
    %2436 = vmatprep.subr.mxu0 0.0
    %2437 = vmatpush1.msra.mxu0 0.0
    %2438 = vmatprep.subr.mxu0 0.0
    %2439 = vmatpush1.msra.mxu0 0.0
    %2440 = vmatprep.subr.mxu0 0.0
    %2441 = vmatpush1.msra.mxu0 0.0
    %2442 = vmatprep.subr.mxu0 0.0
    %2443 = vmatpush1.msra.mxu0 0.0
    %2444 = vmatprep.mubr.f32.mxu0 0.0
    %2445 = vmatmul.mubr.f32.gmra.mrb[0].mxu0 %v2378
    %v2446 = vpop.f32.mrb[0].mxu0
    %v2447 = vadd.f32 %v2372, %v2446
    %v2448 = vpop.f32.mrb[0].mxu0
    %2449 = vdwg.mxu0
    %v2450 = vadd.f32 %v2447, %v437
    %v2451 = vxor.u32 %v2450, 2147483648
    %v2452 = vmul.f32 %v2451, 1.442695
    %v2453 = vpow.pop %v2452
    %v2454 = vadd.f32 %v2453, 1.0
    %v2455 = vrcp.pop %v2454
    %v2456 = vmul.f32 1.0, %v2455
    %v2457 = vtanh.pop %v2450
    %v2458 = vmul.f32 %v2456, %v2180
    %2460 = vrot.lane.b32.xlu0 %v2457, 64
    %v2461 = vpop.permute.xlu0 %2460
    %v2463 = vmul.f32 %v2456, %v2461
    %2465 = vrot.lane.b32.xlu0 %v2463, 32
    %v2466 = vpop.permute.xlu0 %2465
    %v2468 = vadd.f32 %v2458, %v2466
    %v2469 = vtanh.pop %v2468
    %2471 = vrot.lane.b32.xlu0 %v2469, 64
    %v2472 = vpop.permute.xlu0 %2471
    %v2474 = vmul.f32 %v2456, %v2472
    %v2475 = vmul.f32 %v2299, %v855
    %v2476 = vsub.f32 %v2474, %v2475
    %v2477 = vadd.f32 %v2189, %v2476
    %v2478 = vld [vmem:[#allocation3 + $0x38] sm:$0xff]
    %2480 = vrot.lane.b32.xlu0 %v2293, 32
    %v2481 = vpop.permute.xlu0 %2480
    %v2482 = vsel %vm447, %v2481, 0
    %2484 = vmatprep.subr.mxu0 0.0
    %2485 = vmatpush1.msra.mxu0 %v443
    %2486 = vmatprep.subr.mxu0 0.0
    %2487 = vmatpush1.msra.mxu0 %v444
    %2488 = vmatprep.subr.mxu0 0.0
    %2489 = vmatpush1.msra.mxu0 %v445
    %2490 = vmatprep.subr.mxu0 0.0
    %2491 = vmatpush1.msra.mxu0 %v446
    %2492 = vmatprep.subr.mxu0 0.0
    %2493 = vmatpush1.msra.mxu0 0.0
    %2494 = vmatprep.subr.mxu0 0.0
    %2495 = vmatpush1.msra.mxu0 0.0
    %2496 = vmatprep.subr.mxu0 0.0
    %2497 = vmatpush1.msra.mxu0 0.0
    %2498 = vmatprep.subr.mxu0 0.0
    %2499 = vmatpush1.msra.mxu0 0.0
    %2500 = vmatprep.subr.mxu0 0.0
    %2501 = vmatpush1.msra.mxu0 0.0
    %2502 = vmatprep.subr.mxu0 0.0
    %2503 = vmatpush1.msra.mxu0 0.0
    %2504 = vmatprep.subr.mxu0 0.0
    %2505 = vmatpush1.msra.mxu0 0.0
    %2506 = vmatprep.subr.mxu0 0.0
    %2507 = vmatpush1.msra.mxu0 0.0
    %2508 = vmatprep.subr.mxu0 0.0
    %2509 = vmatpush1.msra.mxu0 0.0
    %2510 = vmatprep.subr.mxu0 0.0
    %2511 = vmatpush1.msra.mxu0 0.0
    %2512 = vmatprep.subr.mxu0 0.0
    %2513 = vmatpush1.msra.mxu0 0.0
    %2514 = vmatprep.subr.mxu0 0.0
    %2515 = vmatpush1.msra.mxu0 0.0
    %2516 = vmatprep.subr.mxu0 0.0
    %2517 = vmatpush1.msra.mxu0 0.0
    %2518 = vmatprep.subr.mxu0 0.0
    %2519 = vmatpush1.msra.mxu0 0.0
    %2520 = vmatprep.subr.mxu0 0.0
    %2521 = vmatpush1.msra.mxu0 0.0
    %2522 = vmatprep.subr.mxu0 0.0
    %2523 = vmatpush1.msra.mxu0 0.0
    %2524 = vmatprep.subr.mxu0 0.0
    %2525 = vmatpush1.msra.mxu0 0.0
    %2526 = vmatprep.subr.mxu0 0.0
    %2527 = vmatpush1.msra.mxu0 0.0
    %2528 = vmatprep.subr.mxu0 0.0
    %2529 = vmatpush1.msra.mxu0 0.0
    %2530 = vmatprep.subr.mxu0 0.0
    %2531 = vmatpush1.msra.mxu0 0.0
    %2532 = vmatprep.subr.mxu0 0.0
    %2533 = vmatpush1.msra.mxu0 0.0
    %2534 = vmatprep.subr.mxu0 0.0
    %2535 = vmatpush1.msra.mxu0 0.0
    %2536 = vmatprep.subr.mxu0 0.0
    %2537 = vmatpush1.msra.mxu0 0.0
    %2538 = vmatprep.subr.mxu0 0.0
    %2539 = vmatpush1.msra.mxu0 0.0
    %2540 = vmatprep.subr.mxu0 0.0
    %2541 = vmatpush1.msra.mxu0 0.0
    %2542 = vmatprep.subr.mxu0 0.0
    %2543 = vmatpush1.msra.mxu0 0.0
    %2544 = vmatprep.subr.mxu0 0.0
    %2545 = vmatpush1.msra.mxu0 0.0
    %2546 = vmatprep.subr.mxu0 0.0
    %2547 = vmatpush1.msra.mxu0 0.0
    %2548 = vmatprep.mubr.f32.mxu0 0.0
    %2549 = vmatmul.mubr.f32.gmra.mrb[0].mxu0 %v2482
    %v2550 = vpop.f32.mrb[0].mxu0
    %v2551 = vadd.f32 0.0, %v2550
    %v2552 = vpop.f32.mrb[0].mxu0
    %2553 = vdwg.mxu0
    %v2554 = vadd.f32 %v2478, %v2551
    %v2555 = vadd.f32 %v2554, %v430
    %v2556 = vxor.u32 %v2555, 2147483648
    %v2557 = vmul.f32 %v2556, 1.442695
    %v2558 = vpow.pop %v2557
    %v2559 = vadd.f32 %v2558, 1.0
    %v2560 = vrcp.pop %v2559
    %v2561 = vmul.f32 1.0, %v2560
    %v2562 = vtanh.pop %v2555
    %v2563 = vmul.f32 %v2561, %v2285
    %2565 = vrot.lane.b32.xlu0 %v2562, 64
    %v2566 = vpop.permute.xlu0 %2565
    %v2568 = vmul.f32 %v2561, %v2566
    %2570 = vrot.lane.b32.xlu0 %v2568, 32
    %v2571 = vpop.permute.xlu0 %2570
    %v2573 = vadd.f32 %v2563, %v2571
    %v2574 = vtanh.pop %v2573
    %2576 = vrot.lane.b32.xlu0 %v2574, 64
    %v2577 = vpop.permute.xlu0 %2576
    %v2579 = vmul.f32 %v2561, %v2577
    %v2580 = vmul.f32 %v2296, %v554
    %v2581 = vsub.f32 %v2579, %v2580
    %vm2582 = vcmp.gt.f32.partialorder %v2581, %v554
    %v2583 = vsel %vm2582, 1, 0
    %v2584 = vcvt.s32.f32 %v2583
    %vm2585 = vcmp.gt.f32.partialorder %v2476, %v855
    %v2586 = vsel %vm2585, 1, 0
    %v2587 = vcvt.s32.f32 %v2586
    %2589 = vrot.lane.b32.xlu0 %v2476, 32
    %v2590 = vpop.permute.xlu0 %2589
    %v2591 = vsel %vm447, %v2590, 0
    %2593 = vmatprep.subr.mxu0 0.0
    %2594 = vmatpush1.msra.mxu0 %v566
    %2595 = vmatprep.subr.mxu0 0.0
    %2596 = vmatpush1.msra.mxu0 %v567
    %2597 = vmatprep.subr.mxu0 0.0
    %2598 = vmatpush1.msra.mxu0 %v568
    %2599 = vmatprep.subr.mxu0 0.0
    %2600 = vmatpush1.msra.mxu0 %v569
    %2601 = vmatprep.subr.mxu0 0.0
    %2602 = vmatpush1.msra.mxu0 0.0
    %2603 = vmatprep.subr.mxu0 0.0
    %2604 = vmatpush1.msra.mxu0 0.0
    %2605 = vmatprep.subr.mxu0 0.0
    %2606 = vmatpush1.msra.mxu0 0.0
    %2607 = vmatprep.subr.mxu0 0.0
    %2608 = vmatpush1.msra.mxu0 0.0
    %2609 = vmatprep.subr.mxu0 0.0
    %2610 = vmatpush1.msra.mxu0 0.0
    %2611 = vmatprep.subr.mxu0 0.0
    %2612 = vmatpush1.msra.mxu0 0.0
    %2613 = vmatprep.subr.mxu0 0.0
    %2614 = vmatpush1.msra.mxu0 0.0
    %2615 = vmatprep.subr.mxu0 0.0
    %2616 = vmatpush1.msra.mxu0 0.0
    %2617 = vmatprep.subr.mxu0 0.0
    %2618 = vmatpush1.msra.mxu0 0.0
    %2619 = vmatprep.subr.mxu0 0.0
    %2620 = vmatpush1.msra.mxu0 0.0
    %2621 = vmatprep.subr.mxu0 0.0
    %2622 = vmatpush1.msra.mxu0 0.0
    %2623 = vmatprep.subr.mxu0 0.0
    %2624 = vmatpush1.msra.mxu0 0.0
    %2625 = vmatprep.subr.mxu0 0.0
    %2626 = vmatpush1.msra.mxu0 0.0
    %2627 = vmatprep.subr.mxu0 0.0
    %2628 = vmatpush1.msra.mxu0 0.0
    %2629 = vmatprep.subr.mxu0 0.0
    %2630 = vmatpush1.msra.mxu0 0.0
    %2631 = vmatprep.subr.mxu0 0.0
    %2632 = vmatpush1.msra.mxu0 0.0
    %2633 = vmatprep.subr.mxu0 0.0
    %2634 = vmatpush1.msra.mxu0 0.0
    %2635 = vmatprep.subr.mxu0 0.0
    %2636 = vmatpush1.msra.mxu0 0.0
    %2637 = vmatprep.subr.mxu0 0.0
    %2638 = vmatpush1.msra.mxu0 0.0
    %2639 = vmatprep.subr.mxu0 0.0
    %2640 = vmatpush1.msra.mxu0 0.0
    %2641 = vmatprep.subr.mxu0 0.0
    %2642 = vmatpush1.msra.mxu0 0.0
    %2643 = vmatprep.subr.mxu0 0.0
    %2644 = vmatpush1.msra.mxu0 0.0
    %2645 = vmatprep.subr.mxu0 0.0
    %2646 = vmatpush1.msra.mxu0 0.0
    %2647 = vmatprep.subr.mxu0 0.0
    %2648 = vmatpush1.msra.mxu0 0.0
    %2649 = vmatprep.subr.mxu0 0.0
    %2650 = vmatpush1.msra.mxu0 0.0
    %2651 = vmatprep.subr.mxu0 0.0
    %2652 = vmatpush1.msra.mxu0 0.0
    %2653 = vmatprep.subr.mxu0 0.0
    %2654 = vmatpush1.msra.mxu0 0.0
    %2655 = vmatprep.subr.mxu0 0.0
    %2656 = vmatpush1.msra.mxu0 0.0
    %2657 = vmatprep.mubr.f32.mxu0 0.0
    %2658 = vmatmul.mubr.f32.gmra.mrb[0].mxu0 %v2591
    %v2659 = vpop.f32.mrb[0].mxu0
    %v2660 = vadd.f32 0.0, %v2659
    %v2661 = vpop.f32.mrb[0].mxu0
    %2662 = vdwg.mxu0
    %2664 = vrot.lane.b32.xlu0 %v2584, 32
    %v2665 = vpop.permute.xlu0 %2664
    %v2666 = vsel %vm447, %v2665, 0
    %2668 = vmatprep.subr.mxu0 0.0
    %2669 = vmatpush1.msra.mxu0 %v562
    %2670 = vmatprep.subr.mxu0 0.0
    %2671 = vmatpush1.msra.mxu0 %v563
    %2672 = vmatprep.subr.mxu0 0.0
    %2673 = vmatpush1.msra.mxu0 %v564
    %2674 = vmatprep.subr.mxu0 0.0
    %2675 = vmatpush1.msra.mxu0 %v565
    %2676 = vmatprep.subr.mxu0 0.0
    %2677 = vmatpush1.msra.mxu0 0.0
    %2678 = vmatprep.subr.mxu0 0.0
    %2679 = vmatpush1.msra.mxu0 0.0
    %2680 = vmatprep.subr.mxu0 0.0
    %2681 = vmatpush1.msra.mxu0 0.0
    %2682 = vmatprep.subr.mxu0 0.0
    %2683 = vmatpush1.msra.mxu0 0.0
    %2684 = vmatprep.subr.mxu0 0.0
    %2685 = vmatpush1.msra.mxu0 0.0
    %2686 = vmatprep.subr.mxu0 0.0
    %2687 = vmatpush1.msra.mxu0 0.0
    %2688 = vmatprep.subr.mxu0 0.0
    %2689 = vmatpush1.msra.mxu0 0.0
    %2690 = vmatprep.subr.mxu0 0.0
    %2691 = vmatpush1.msra.mxu0 0.0
    %2692 = vmatprep.subr.mxu0 0.0
    %2693 = vmatpush1.msra.mxu0 0.0
    %2694 = vmatprep.subr.mxu0 0.0
    %2695 = vmatpush1.msra.mxu0 0.0
    %2696 = vmatprep.subr.mxu0 0.0
    %2697 = vmatpush1.msra.mxu0 0.0
    %2698 = vmatprep.subr.mxu0 0.0
    %2699 = vmatpush1.msra.mxu0 0.0
    %2700 = vmatprep.subr.mxu0 0.0
    %2701 = vmatpush1.msra.mxu0 0.0
    %2702 = vmatprep.subr.mxu0 0.0
    %2703 = vmatpush1.msra.mxu0 0.0
    %2704 = vmatprep.subr.mxu0 0.0
    %2705 = vmatpush1.msra.mxu0 0.0
    %2706 = vmatprep.subr.mxu0 0.0
    %2707 = vmatpush1.msra.mxu0 0.0
    %2708 = vmatprep.subr.mxu0 0.0
    %2709 = vmatpush1.msra.mxu0 0.0
    %2710 = vmatprep.subr.mxu0 0.0
    %2711 = vmatpush1.msra.mxu0 0.0
    %2712 = vmatprep.subr.mxu0 0.0
    %2713 = vmatpush1.msra.mxu0 0.0
    %2714 = vmatprep.subr.mxu0 0.0
    %2715 = vmatpush1.msra.mxu0 0.0
    %2716 = vmatprep.subr.mxu0 0.0
    %2717 = vmatpush1.msra.mxu0 0.0
    %2718 = vmatprep.subr.mxu0 0.0
    %2719 = vmatpush1.msra.mxu0 0.0
    %2720 = vmatprep.subr.mxu0 0.0
    %2721 = vmatpush1.msra.mxu0 0.0
    %2722 = vmatprep.subr.mxu0 0.0
    %2723 = vmatpush1.msra.mxu0 0.0
    %2724 = vmatprep.subr.mxu0 0.0
    %2725 = vmatpush1.msra.mxu0 0.0
    %2726 = vmatprep.subr.mxu0 0.0
    %2727 = vmatpush1.msra.mxu0 0.0
    %2728 = vmatprep.subr.mxu0 0.0
    %2729 = vmatpush1.msra.mxu0 0.0
    %2730 = vmatprep.subr.mxu0 0.0
    %2731 = vmatpush1.msra.mxu0 0.0
    %2732 = vmatprep.mubr.f32.mxu0 0.0
    %2733 = vmatmul.mubr.f32.gmra.mrb[0].mxu0 %v2666
    %v2734 = vpop.f32.mrb[0].mxu0
    %v2735 = vadd.f32 %v2660, %v2734
    %v2736 = vpop.f32.mrb[0].mxu0
    %2737 = vdwg.mxu0
    %v2738 = vadd.f32 %v2735, %v437
    %v2739 = vxor.u32 %v2738, 2147483648
    %v2740 = vmul.f32 %v2739, 1.442695
    %v2741 = vpow.pop %v2740
    %v2742 = vadd.f32 %v2741, 1.0
    %v2743 = vrcp.pop %v2742
    %v2744 = vmul.f32 1.0, %v2743
    %v2745 = vtanh.pop %v2738
    %v2746 = vmul.f32 %v2744, %v2468
    %2748 = vrot.lane.b32.xlu0 %v2745, 64
    %v2749 = vpop.permute.xlu0 %2748
    %v2751 = vmul.f32 %v2744, %v2749
    %2753 = vrot.lane.b32.xlu0 %v2751, 32
    %v2754 = vpop.permute.xlu0 %2753
    %v2756 = vadd.f32 %v2746, %v2754
    %v2757 = vtanh.pop %v2756
    %2759 = vrot.lane.b32.xlu0 %v2757, 64
    %v2760 = vpop.permute.xlu0 %2759
    %v2762 = vmul.f32 %v2744, %v2760
    %v2763 = vmul.f32 %v2587, %v855
    %v2764 = vsub.f32 %v2762, %v2763
    %v2765 = vadd.f32 %v2477, %v2764
    %v2766 = vmul.f32 %v2765, 0.125
    %v2767 = vld [vmem:[%s12] sm:$0xff]
    %v2768 = vld [vmem:[%s12 + $0x8] sm:$0xff]
    %v2769 = vld [vmem:[%s12 + $0x10] sm:$0xff]
    %v2770 = vld [vmem:[%s12 + $0x18] sm:$0xff]
    %v2771 = vld [vmem:[%s13] sm:$0x1]
    %v2773 = vlaneseq
    %v2774 = vshrl.u32 %v2773, 7
    %v2775 = vsub.s32 0, %v2774
    %v2776 = vrot.slane %v2771, %v2775
    %2779 = vrot.lane.b32.xlu0 %v2766, 32
    %v2780 = vpop.permute.xlu0 %2779
    %v2781 = vsel %vm447, %v2780, 0
    %2783 = vmatprep.subr.mxu0 0.0
    %2784 = vmatpush1.msra.mxu0 %v2767
    %2785 = vmatprep.subr.mxu0 0.0
    %2786 = vmatpush1.msra.mxu0 %v2768
    %2787 = vmatprep.subr.mxu0 0.0
    %2788 = vmatpush1.msra.mxu0 %v2769
    %2789 = vmatprep.subr.mxu0 0.0
    %2790 = vmatpush1.msra.mxu0 %v2770
    %2791 = vmatprep.subr.mxu0 0.0
    %2792 = vmatpush1.msra.mxu0 0.0
    %2793 = vmatprep.subr.mxu0 0.0
    %2794 = vmatpush1.msra.mxu0 0.0
    %2795 = vmatprep.subr.mxu0 0.0
    %2796 = vmatpush1.msra.mxu0 0.0
    %2797 = vmatprep.subr.mxu0 0.0
    %2798 = vmatpush1.msra.mxu0 0.0
    %2799 = vmatprep.subr.mxu0 0.0
    %2800 = vmatpush1.msra.mxu0 0.0
    %2801 = vmatprep.subr.mxu0 0.0
    %2802 = vmatpush1.msra.mxu0 0.0
    %2803 = vmatprep.subr.mxu0 0.0
    %2804 = vmatpush1.msra.mxu0 0.0
    %2805 = vmatprep.subr.mxu0 0.0
    %2806 = vmatpush1.msra.mxu0 0.0
    %2807 = vmatprep.subr.mxu0 0.0
    %2808 = vmatpush1.msra.mxu0 0.0
    %2809 = vmatprep.subr.mxu0 0.0
    %2810 = vmatpush1.msra.mxu0 0.0
    %2811 = vmatprep.subr.mxu0 0.0
    %2812 = vmatpush1.msra.mxu0 0.0
    %2813 = vmatprep.subr.mxu0 0.0
    %2814 = vmatpush1.msra.mxu0 0.0
    %2815 = vmatprep.subr.mxu0 0.0
    %2816 = vmatpush1.msra.mxu0 0.0
    %2817 = vmatprep.subr.mxu0 0.0
    %2818 = vmatpush1.msra.mxu0 0.0
    %2819 = vmatprep.subr.mxu0 0.0
    %2820 = vmatpush1.msra.mxu0 0.0
    %2821 = vmatprep.subr.mxu0 0.0
    %2822 = vmatpush1.msra.mxu0 0.0
    %2823 = vmatprep.subr.mxu0 0.0
    %2824 = vmatpush1.msra.mxu0 0.0
    %2825 = vmatprep.subr.mxu0 0.0
    %2826 = vmatpush1.msra.mxu0 0.0
    %2827 = vmatprep.subr.mxu0 0.0
    %2828 = vmatpush1.msra.mxu0 0.0
    %2829 = vmatprep.subr.mxu0 0.0
    %2830 = vmatpush1.msra.mxu0 0.0
    %2831 = vmatprep.subr.mxu0 0.0
    %2832 = vmatpush1.msra.mxu0 0.0
    %2833 = vmatprep.subr.mxu0 0.0
    %2834 = vmatpush1.msra.mxu0 0.0
    %2835 = vmatprep.subr.mxu0 0.0
    %2836 = vmatpush1.msra.mxu0 0.0
    %2837 = vmatprep.subr.mxu0 0.0
    %2838 = vmatpush1.msra.mxu0 0.0
    %2839 = vmatprep.subr.mxu0 0.0
    %2840 = vmatpush1.msra.mxu0 0.0
    %2841 = vmatprep.subr.mxu0 0.0
    %2842 = vmatpush1.msra.mxu0 0.0
    %2843 = vmatprep.subr.mxu0 0.0
    %2844 = vmatpush1.msra.mxu0 0.0
    %2845 = vmatprep.subr.mxu0 0.0
    %2846 = vmatpush1.msra.mxu0 0.0
    %2847 = vmatprep.mubr.f32.mxu0 0.0
    %2848 = vmatmul.mubr.f32.gmra.mrb[0].mxu0 %v2781
    %v2849 = vpop.f32.mrb[0].mxu0
    %v2850 = vadd.f32 %v2776, %v2849
    %v2851 = vpop.f32.mrb[0].mxu0
    %2852 = vdwg.mxu0
    %vm2853 = vcmask 64512
    %2854 = vst.msk [vmem:[#allocation4] sm:$0xff] %vm2853, %v2850
    // Predicated region
    $region58: #{tpu_custom_call.1} parent=1 // pred_check
      _
    $region59: #{tpu_custom_call.1} parent=1 // pred_check_branch
      %2856 = sbr.rel (0) target = $region61
    $region60: #{tpu_custom_call.1} parent=1 // pred_region
      %s2858 = ssub.s32 128, 128
      %2859 = vsyncadd [#allocation5], %s2858
      %s2861 = sshll.u32 [#allocation4], 4
      %s2862 = int_to_ptr.vmem [resolvable:$true] %s2861
      %2864 = dma.vmem_to_hbm [thread:$0]  %s2862, 128, %s14, [#allocation5]
    $region61: #{tpu_custom_call.1} parent=1 // pred_fallthru
      _
    // Predicated region
    $region62: #{tpu_custom_call.1} parent=1 // pred_check
      _
    $region63: #{tpu_custom_call.1} parent=1 // pred_check_branch
      %2866 = sbr.rel (0) target = $region65
    $region64: #{tpu_custom_call.1} parent=1 // pred_region
      %2867 = dma.done [#allocation5], 128
    $region65: #{tpu_custom_call.1} parent=1 // pred_fallthru
      _
    %2868 = vsyncpa [#allocation5], 1

</llo_original>
